<compile_context>
chip_gen: v7x
topology: tpu7x:2x2x1
jax: 0.10.0
libtpu: 0.0.40
codegen_flags: <defaults>
</compile_context>

<pallas_src>
import functools
import math

import jax
import jax.numpy as jnp
import numpy as np
from jax.experimental import pallas as pl
from jax.experimental.pallas import tpu as pltpu


_LANE = 128


def _round_up(x, m):
    return ((x + m - 1) // m) * m


def _pad2(a, rows, cols):
    return jnp.pad(a, ((0, rows - a.shape[0]), (0, cols - a.shape[1])))


def _vmem_budget_bytes():
    """Generation-aware VMEM budget (v5e/v6e: 128 MiB physical, v7x: 64 MiB)."""
    cap = 64 * 1024 * 1024  # conservative fallback (v7x-sized)
    try:
        info = pltpu.get_tpu_info()
        cap = int(getattr(info, "vmem_capacity_bytes", cap))
    except Exception:
        pass
    return min(cap * 3 // 4, 100 * 1024 * 1024)


# -----------------------------------------------------------------------------
# Fused path: the whole GCN stack in a single pallas_call (small/medium graphs).
# Everything (A, H, all W/b) is resident in VMEM; H stays bf16 between layers.
# Note: grid=(1,) leaves one v7x TensorCore idle, but for graphs this small the
# launch/HBM-round-trip savings dominate (per review).
# -----------------------------------------------------------------------------
def _fused_stack_kernel(*refs, num_layers, activations):
    a_ref = refs[0]
    h0_ref = refs[1]
    w_refs = refs[2:2 + num_layers]
    b_refs = refs[2 + num_layers:2 + 2 * num_layers]
    out_ref = refs[2 + 2 * num_layers]

    h = h0_ref[...]                                   # bf16 [n_pad, c_pad]
    for li in range(num_layers):
        xw = jnp.dot(h, w_refs[li][...],
                     preferred_element_type=jnp.float32)
        agg = jnp.dot(a_ref[...], xw.astype(jnp.bfloat16),
                      preferred_element_type=jnp.float32)
        agg = agg + b_refs[li][...]
        if activations[li] == "relu":
            h = jnp.maximum(agg, 0.0).astype(jnp.bfloat16)
        else:                                         # tanh value head
            out_ref[...] = jnp.tanh(agg)


def _forward_fused(x, a_norm_bf16, params, c_pad, budget):
    n_nodes = x.shape[0]
    n_pad = _round_up(n_nodes, _LANE)
    num_layers = len(params)

    a_pad = _pad2(a_norm_bf16, n_pad, n_pad)
    h0 = _pad2(x.astype(jnp.float32), n_pad, c_pad).astype(jnp.bfloat16)
    ws = [_pad2(w.astype(jnp.float32), c_pad, c_pad).astype(jnp.bfloat16)
          for (w, _) in params]
    bs = [_pad2(b.astype(jnp.float32).reshape(1, -1), 1, c_pad)
          for (_, b) in params]
    activations = tuple("relu" if i < num_layers - 1 else "tanh"
                        for i in range(num_layers))

    kernel = functools.partial(_fused_stack_kernel,
                               num_layers=num_layers, activations=activations)
    in_specs = ([pl.BlockSpec((n_pad, n_pad), lambda i: (0, 0)),
                 pl.BlockSpec((n_pad, c_pad), lambda i: (0, 0))]
                + [pl.BlockSpec((c_pad, c_pad), lambda i: (0, 0))
                   for _ in range(num_layers)]
                + [pl.BlockSpec((1, c_pad), lambda i: (0, 0))
                   for _ in range(num_layers)])

    out = pl.pallas_call(
        kernel,
        out_shape=jax.ShapeDtypeStruct((n_pad, c_pad), jnp.float32),
        grid_spec=pltpu.PrefetchScalarGridSpec(
            num_scalar_prefetch=0,
            grid=(1,),
            in_specs=in_specs,
            out_specs=pl.BlockSpec((n_pad, c_pad), lambda i: (0, 0)),
        ),
        compiler_params=pltpu.CompilerParams(
            dimension_semantics=("arbitrary",),
            vmem_limit_bytes=budget,
        ),
    )(a_pad, h0, *ws, *bs)
    return out[:n_nodes, :params[-1][0].shape[1]]


def _fused_fits(n_nodes, c_pad, num_layers, budget):
    n_pad = _round_up(n_nodes, _LANE)
    a_b = 2 * n_pad * n_pad * 2                  # A, possibly double-buffered
    h_b = 2 * n_pad * c_pad * 2
    out_b = 2 * n_pad * c_pad * 4
    w_b = 2 * num_layers * (c_pad * c_pad * 2 + c_pad * 4)
    tmp_b = 3 * n_pad * c_pad * 4                # compiler temps (xw/agg/h)
    return a_b + h_b + out_b + w_b + tmp_b <= int(budget * 0.8)


# -----------------------------------------------------------------------------
# Tiled path, kernel 1: feature transform  XW = H @ W (row-tiled, bf16 in/out,
# f32 accumulate).  Tiny vs. the N^2 aggregation it feeds.
# -----------------------------------------------------------------------------
def _feature_transform_kernel(h_ref, w_ref, xw_ref):
    xw_ref[...] = jnp.dot(h_ref[...], w_ref[...],
                          preferred_element_type=jnp.float32).astype(xw_ref.dtype)


def feature_transform(h_bf16, w_bf16, *, tile_m, budget):
    n_pad, c_in_p = h_bf16.shape
    c_out_p = w_bf16.shape[1]
    return pl.pallas_call(
        _feature_transform_kernel,
        out_shape=jax.ShapeDtypeStruct((n_pad, c_out_p), jnp.bfloat16),
        grid_spec=pltpu.PrefetchScalarGridSpec(
            num_scalar_prefetch=0,
            grid=(n_pad // tile_m,),
            in_specs=[
                pl.BlockSpec((tile_m, c_in_p), lambda i: (i, 0)),
                pl.BlockSpec((c_in_p, c_out_p), lambda i: (0, 0)),
            ],
            out_specs=pl.BlockSpec((tile_m, c_out_p), lambda i: (i, 0)),
        ),
        compiler_params=pltpu.CompilerParams(
            dimension_semantics=("parallel",),
            vmem_limit_bytes=budget,
        ),
    )(h_bf16, w_bf16)


# -----------------------------------------------------------------------------
# Tiled path, kernel 2: aggregation  H_out = act(A @ XW + b)
#   grid = (n_pad/tile_m, n_pad/tile_k), reduction axis last ("arbitrary"),
#   f32 accumulator initialized with the broadcast bias at k==0, activation
#   fused at the final k step; ReLU layers emit bf16 directly.
# -----------------------------------------------------------------------------
def _aggregate_kernel(a_ref, xw_ref, b_ref, out_ref, acc_ref, *, activation):
    k = pl.program_id(1)

    @pl.when(k == 0)
    def _():
        acc_ref[...] = jnp.broadcast_to(b_ref[...], acc_ref.shape)

    acc_ref[...] += jnp.dot(a_ref[...], xw_ref[...],
                            preferred_element_type=jnp.float32)

    @pl.when(k == pl.num_programs(1) - 1)
    def _():
        out = acc_ref[...]
        if activation == "relu":
            out = jnp.maximum(out, 0.0)
        else:                       # tanh value head
            out = jnp.tanh(out)
        out_ref[...] = out.astype(out_ref.dtype)


def aggregate(a_bf16, xw_bf16, b_f32, *, activation, out_dtype,
              tile_m, tile_k, budget):
    n_pad = a_bf16.shape[0]
    c_out_p = xw_bf16.shape[1]
    kernel = functools.partial(_aggregate_kernel, activation=activation)
    return pl.pallas_call(
        kernel,
        out_shape=jax.ShapeDtypeStruct((n_pad, c_out_p), out_dtype),
        grid_spec=pltpu.PrefetchScalarGridSpec(
            num_scalar_prefetch=0,
            grid=(n_pad // tile_m, n_pad // tile_k),
            in_specs=[
                pl.BlockSpec((tile_m, tile_k), lambda i, k: (i, k)),
                pl.BlockSpec((tile_k, c_out_p), lambda i, k: (k, 0)),
                pl.BlockSpec((1, c_out_p), lambda i, k: (0, 0)),
            ],
            out_specs=pl.BlockSpec((tile_m, c_out_p), lambda i, k: (i, 0)),
            scratch_shapes=[pltpu.VMEM((tile_m, c_out_p), jnp.float32)],
        ),
        compiler_params=pltpu.CompilerParams(
            dimension_semantics=("parallel", "arbitrary"),
            vmem_limit_bytes=budget,
        ),
    )(a_bf16, xw_bf16, b_f32)


def _tiled_plan(n_nodes, c_out_p, budget):
    # tile_m: prefer 512, but keep >= 2 row tiles so both v7x TCs get work.
    tile_m = 512
    n_pad = _round_up(n_nodes, tile_m)
    while tile_m > 128 and n_pad // tile_m < 2:
        tile_m //= 2
        n_pad = _round_up(n_nodes, tile_m)

    def fits(tk):
        a_b = 2 * tile_m * tk * 2          # double-buffered bf16 A tile
        xw_b = 2 * tk * c_out_p * 2        # double-buffered bf16 XW tile
        acc_b = tile_m * c_out_p * 4
        out_b = 2 * tile_m * c_out_p * 4
        return a_b + xw_b + acc_b + out_b + (1 << 20) <= budget

    if fits(n_pad):                        # whole row-slab at once: no k loop
        tile_k = n_pad
    else:
        tile_k = 1024
        while tile_k * 2 <= 8192 and fits(tile_k * 2):
            tile_k *= 2
        n_pad = _round_up(n_nodes, tile_k)
    return tile_m, tile_k, n_pad


def _forward_tiled(x, a_norm_bf16, params, budget, tile_override):
    n_nodes, in_c = x.shape
    num_layers = len(params)
    c_out_max_p = max(_round_up(w.shape[1], _LANE) for (w, _) in params)

    if tile_override is not None:
        tile_m, tile_k = tile_override
        n_pad = _round_up(n_nodes, math.lcm(tile_m, tile_k))
    else:
        tile_m, tile_k, n_pad = _tiled_plan(n_nodes, c_out_max_p, budget)

    a_pad = _pad2(a_norm_bf16, n_pad, n_pad)
    h = _pad2(x.astype(jnp.float32), n_pad,
              _round_up(in_c, _LANE)).astype(jnp.bfloat16)

    for i, (w, b) in enumerate(params):
        c_in, c_out = w.shape
        c_in_p = _round_up(c_in, _LANE)
        c_out_p = _round_up(c_out, _LANE)
        w_p = _pad2(w.astype(jnp.float32), c_in_p, c_out_p).astype(jnp.bfloat16)
        b_p = _pad2(b.astype(jnp.float32).reshape(1, -1), 1, c_out_p)

        xw = feature_transform(h, w_p, tile_m=tile_m, budget=budget)
        last = (i == num_layers - 1)
        h = aggregate(a_pad, xw, b_p,
                      activation="tanh" if last else "relu",
                      out_dtype=jnp.float32 if last else jnp.bfloat16,
                      tile_m=tile_m, tile_k=tile_k, budget=budget)

    return h[:n_nodes, :params[-1][0].shape[1]]


# -----------------------------------------------------------------------------
# Glue (plain JAX): GCN-normalized dense adjacency from edge_index.
# Duplicate edges scatter-ADD (matches torch_geometric GCNConv message sum).
# -----------------------------------------------------------------------------
def normalized_adjacency(edge_index, num_nodes):
    src = edge_index[0]
    dst = edge_index[1]
    a = jnp.zeros((num_nodes, num_nodes), jnp.float32)
    a = a.at[dst, src].add(1.0)          # message flows src -> dst
    idx = jnp.arange(num_nodes)
    a = a.at[idx, idx].add(1.0)          # add self loops
    deg = a.sum(axis=1)
    d_inv_sqrt = jnp.where(deg > 0, 1.0 / jnp.sqrt(deg), 0.0)
    return d_inv_sqrt[:, None] * a * d_inv_sqrt[None, :]


# -----------------------------------------------------------------------------
# ActionValue forward: GCN stack (ReLU between layers, out_channels=1) + Tanh.
# -----------------------------------------------------------------------------
def action_value_forward(x, edge_index, params, *, force_path=None,
                         tile_override=None):
    n_nodes, in_c = x.shape
    num_layers = len(params)
    budget = _vmem_budget_bytes()

    c_pad = max([_round_up(in_c, _LANE)]
                + [_round_up(w.shape[1], _LANE) for (w, _) in params])

    # Build A_norm once, cast to bf16 BEFORE padding (cheaper preprocessing).
    a_norm_bf16 = normalized_adjacency(edge_index, n_nodes).astype(jnp.bfloat16)

    use_fused = (force_path == "fused") or (
        force_path is None and _fused_fits(n_nodes, c_pad, num_layers, budget))

    if use_fused:
        return _forward_fused(x, a_norm_bf16, params, c_pad, budget)
    return _forward_tiled(x, a_norm_bf16, params, budget, tile_override)


# Pure-JAX reference.  mxu_dtype=bfloat16 mirrors the kernel's bf16 MXU inputs
# (tight check); mxu_dtype=float32 is the full-precision sanity check.
def action_value_forward_ref(x, edge_index, params, *, mxu_dtype=jnp.float32):
    def q(v):
        return v.astype(mxu_dtype).astype(jnp.float32)

    hi = jax.lax.Precision.HIGHEST
    a = q(normalized_adjacency(edge_index, x.shape[0]))
    h = x.astype(jnp.float32)
    n_layers = len(params)
    for i, (w, b) in enumerate(params):
        xw = q(jnp.dot(q(h), q(w), precision=hi))
        h = jnp.dot(a, xw, precision=hi) + b
        h = jnp.maximum(h, 0.0) if i < n_layers - 1 else jnp.tanh(h)
    return h


# -----------------------------------------------------------------------------
# Deterministic parameter init (glorot-uniform weights, small random bias).
# -----------------------------------------------------------------------------
def init_params(key, in_channels, hidden_channels, num_layers):
    dims = [in_channels] + [hidden_channels] * (num_layers - 1) + [1]  # out=1
    params = []
    for i in range(num_layers):
        c_in, c_out = dims[i], dims[i + 1]
        key, wkey, bkey = jax.random.split(key, 3)
        limit = float(np.sqrt(6.0 / (c_in + c_out)))
        w = jax.random.uniform(wkey, (c_in, c_out), jnp.float32, -limit, limit)
        b = 0.1 * jax.random.normal(bkey, (1, c_out), jnp.float32)
        params.append((w, b))
    return params


def _check(out, x, edge_index, params):
    assert out.shape == (x.shape[0], 1)
    out_np = np.asarray(out)
    ref_bf16 = np.asarray(action_value_forward_ref(
        x, edge_index, params, mxu_dtype=jnp.bfloat16))
    ref_f32 = np.asarray(action_value_forward_ref(
        x, edge_index, params, mxu_dtype=jnp.float32))
    # Tight check vs. a reference mirroring the kernel's bf16 MXU inputs.
    assert np.allclose(out_np, ref_bf16, atol=1e-2, rtol=1e-2), \
        float(np.max(np.abs(out_np - ref_bf16)))
    # Loose sanity check vs. the full-f32 reference (bf16 streaming error).
    assert np.allclose(out_np, ref_f32, atol=4e-2, rtol=4e-2), \
        float(np.max(np.abs(out_np - ref_f32)))


if __name__ == "__main__":
    key = jax.random.PRNGKey(0)

    def grid_graph_edges(side):
        edges = []
        for r in range(side):
            for c in range(side):
                u = r * side + c
                if c + 1 < side:
                    v = u + 1
                    edges += [(u, v), (v, u)]
                if r + 1 < side:
                    v = u + side
                    edges += [(u, v), (v, u)]
        return jnp.asarray(np.array(edges, dtype=np.int32).T)   # [2, E]

    in_channels, hidden_channels, num_layers = 4, 32, 3

    # ---- Test 1: small graph (400 nodes) -> fully fused single-kernel path --
    side1 = 20
    n1 = side1 * side1
    edge_index1 = grid_graph_edges(side1)
    key, xkey, pkey = jax.random.split(key, 3)
    x1 = jax.random.normal(xkey, (n1, in_channels), jnp.float32)
    params = init_params(pkey, in_channels, hidden_channels, num_layers)

    fwd_auto = jax.jit(action_value_forward)
    out1 = jax.block_until_ready(fwd_auto(x1, edge_index1, params))
    _check(out1, x1, edge_index1, params)

    # ---- Test 2: medium graph (1225 nodes) -> tiled path, default plan ------
    side2 = 35
    n2 = side2 * side2
    edge_index2 = grid_graph_edges(side2)
    key, xkey2 = jax.random.split(key)
    x2 = jax.random.normal(xkey2, (n2, in_channels), jnp.float32)

    fwd_tiled = jax.jit(functools.partial(action_value_forward,
                                          force_path="tiled"))
    out2 = jax.block_until_ready(fwd_tiled(x2, edge_index2, params))
    _check(out2, x2, edge_index2, params)

    # ---- Test 3: tiled path with a multi-step k reduction (exercises the ----
    # ---- bias-initialized accumulator across several k tiles)            ----
    fwd_tiled_k = jax.jit(functools.partial(action_value_forward,
                                            force_path="tiled",
                                            tile_override=(256, 512)))
    out3 = jax.block_until_ready(fwd_tiled_k(x2, edge_index2, params))
    _check(out3, x2, edge_index2, params)

    print("KERNEL_OK")
</pallas_src>

<mosaic_0001>
module attributes {stable_mosaic.version = 11 : i64} {
  func.func private @main(%arg0: i32) attributes {dimension_semantics = [#tpu.dimension_semantics<core_parallel>], iteration_bounds = array<i64: 2>, tpu.core_type = #tpu.core_type<sc_scalar_subcore>, window_params = []} {
    return
  }
}

module attributes {stable_mosaic.version = 11 : i64} {
  func.func private @main(%arg0: i32) attributes {dimension_semantics = [#tpu.dimension_semantics<core_parallel>], iteration_bounds = array<i64: 2>, tpu.core_type = #tpu.core_type<sc_scalar_subcore>, window_params = []} {
    return
  }
}

module attributes {stable_mosaic.version = 11 : i64} {
  func.func @_fused_stack_kernel(%arg0: i32, %arg1: memref<512x512xbf16, #tpu.memory_space<vmem>>, %arg2: memref<512x128xbf16, #tpu.memory_space<vmem>>, %arg3: memref<128x128xbf16, #tpu.memory_space<vmem>>, %arg4: memref<128x128xbf16, #tpu.memory_space<vmem>>, %arg5: memref<128x128xbf16, #tpu.memory_space<vmem>>, %arg6: memref<1x128xf32, #tpu.memory_space<vmem>>, %arg7: memref<1x128xf32, #tpu.memory_space<vmem>>, %arg8: memref<1x128xf32, #tpu.memory_space<vmem>>, %arg9: memref<512x128xf32, #tpu.memory_space<vmem>>) attributes {dimension_semantics = [#tpu.dimension_semantics<arbitrary>], iteration_bounds = array<i64: 1>, scalar_prefetch = 0 : i64, scratch_operands = 0 : i64, tpu.core_type = #tpu.core_type<tc>, window_params = [{pipeline_mode = #tpu.pipeline_mode<synchronous>, transform_indices = @transform_0, window_bounds = array<i64: 512, 512>}, {pipeline_mode = #tpu.pipeline_mode<synchronous>, transform_indices = @transform_1, window_bounds = array<i64: 512, 128>}, {pipeline_mode = #tpu.pipeline_mode<synchronous>, transform_indices = @transform_2, window_bounds = array<i64: 128, 128>}, {pipeline_mode = #tpu.pipeline_mode<synchronous>, transform_indices = @transform_3, window_bounds = array<i64: 128, 128>}, {pipeline_mode = #tpu.pipeline_mode<synchronous>, transform_indices = @transform_4, window_bounds = array<i64: 128, 128>}, {pipeline_mode = #tpu.pipeline_mode<synchronous>, transform_indices = @transform_5, window_bounds = array<i64: 1, 128>}, {pipeline_mode = #tpu.pipeline_mode<synchronous>, transform_indices = @transform_6, window_bounds = array<i64: 1, 128>}, {pipeline_mode = #tpu.pipeline_mode<synchronous>, transform_indices = @transform_7, window_bounds = array<i64: 1, 128>}, {pipeline_mode = #tpu.pipeline_mode<synchronous>, transform_indices = @transform_8, window_bounds = array<i64: 512, 128>}]} {
    %c0 = arith.constant 0 : index
    %c0_0 = arith.constant 0 : index
    %0 = vector.load %arg2[%c0, %c0_0] : memref<512x128xbf16, #tpu.memory_space<vmem>>, vector<512x128xbf16>
    %c0_1 = arith.constant 0 : index
    %c0_2 = arith.constant 0 : index
    %1 = vector.load %arg3[%c0_1, %c0_2] : memref<128x128xbf16, #tpu.memory_space<vmem>>, vector<128x128xbf16>
    %cst = arith.constant dense<0.000000e+00> : vector<512x128xf32>
    %2 = tpu.matmul %0, %1, %cst {dimension_numbers = #tpu.dot_dimension_numbers<[1], [0], [0], [1], [0, 0, 1, 1], [], []>} : vector<512x128xbf16>, vector<128x128xbf16>, vector<512x128xf32> -> vector<512x128xf32>
    %c0_3 = arith.constant 0 : index
    %c0_4 = arith.constant 0 : index
    %3 = vector.load %arg1[%c0_3, %c0_4] : memref<512x512xbf16, #tpu.memory_space<vmem>>, vector<512x512xbf16>
    %4 = arith.truncf %2 : vector<512x128xf32> to vector<512x128xbf16>
    %cst_5 = arith.constant dense<0.000000e+00> : vector<512x128xf32>
    %5 = tpu.matmul %3, %4, %cst_5 {dimension_numbers = #tpu.dot_dimension_numbers<[1], [0], [0], [1], [0, 0, 1, 1], [], []>} : vector<512x512xbf16>, vector<512x128xbf16>, vector<512x128xf32> -> vector<512x128xf32>
    %c0_6 = arith.constant 0 : index
    %c0_7 = arith.constant 0 : index
    %6 = vector.load %arg6[%c0_6, %c0_7] : memref<1x128xf32, #tpu.memory_space<vmem>>, vector<1x128xf32>
    %7 = vector.broadcast %6 : vector<1x128xf32> to vector<512x128xf32>
    %8 = arith.addf %5, %7 : vector<512x128xf32>
    %cst_8 = arith.constant 0.000000e+00 : f32
    %9 = vector.broadcast %cst_8 : f32 to vector<512x128xf32>
    %10 = arith.maximumf %8, %9 : vector<512x128xf32>
    %11 = arith.truncf %10 : vector<512x128xf32> to vector<512x128xbf16>
    %c0_9 = arith.constant 0 : index
    %c0_10 = arith.constant 0 : index
    %12 = vector.load %arg4[%c0_9, %c0_10] : memref<128x128xbf16, #tpu.memory_space<vmem>>, vector<128x128xbf16>
    %cst_11 = arith.constant dense<0.000000e+00> : vector<512x128xf32>
    %13 = tpu.matmul %11, %12, %cst_11 {dimension_numbers = #tpu.dot_dimension_numbers<[1], [0], [0], [1], [0, 0, 1, 1], [], []>} : vector<512x128xbf16>, vector<128x128xbf16>, vector<512x128xf32> -> vector<512x128xf32>
    %c0_12 = arith.constant 0 : index
    %c0_13 = arith.constant 0 : index
    %14 = vector.load %arg1[%c0_12, %c0_13] : memref<512x512xbf16, #tpu.memory_space<vmem>>, vector<512x512xbf16>
    %15 = arith.truncf %13 : vector<512x128xf32> to vector<512x128xbf16>
    %cst_14 = arith.constant dense<0.000000e+00> : vector<512x128xf32>
    %16 = tpu.matmul %14, %15, %cst_14 {dimension_numbers = #tpu.dot_dimension_numbers<[1], [0], [0], [1], [0, 0, 1, 1], [], []>} : vector<512x512xbf16>, vector<512x128xbf16>, vector<512x128xf32> -> vector<512x128xf32>
    %c0_15 = arith.constant 0 : index
    %c0_16 = arith.constant 0 : index
    %17 = vector.load %arg7[%c0_15, %c0_16] : memref<1x128xf32, #tpu.memory_space<vmem>>, vector<1x128xf32>
    %18 = vector.broadcast %17 : vector<1x128xf32> to vector<512x128xf32>
    %19 = arith.addf %16, %18 : vector<512x128xf32>
    %cst_17 = arith.constant 0.000000e+00 : f32
    %20 = vector.broadcast %cst_17 : f32 to vector<512x128xf32>
    %21 = arith.maximumf %19, %20 : vector<512x128xf32>
    %22 = arith.truncf %21 : vector<512x128xf32> to vector<512x128xbf16>
    %c0_18 = arith.constant 0 : index
    %c0_19 = arith.constant 0 : index
    %23 = vector.load %arg5[%c0_18, %c0_19] : memref<128x128xbf16, #tpu.memory_space<vmem>>, vector<128x128xbf16>
    %cst_20 = arith.constant dense<0.000000e+00> : vector<512x128xf32>
    %24 = tpu.matmul %22, %23, %cst_20 {dimension_numbers = #tpu.dot_dimension_numbers<[1], [0], [0], [1], [0, 0, 1, 1], [], []>} : vector<512x128xbf16>, vector<128x128xbf16>, vector<512x128xf32> -> vector<512x128xf32>
    %c0_21 = arith.constant 0 : index
    %c0_22 = arith.constant 0 : index
    %25 = vector.load %arg1[%c0_21, %c0_22] : memref<512x512xbf16, #tpu.memory_space<vmem>>, vector<512x512xbf16>
    %26 = arith.truncf %24 : vector<512x128xf32> to vector<512x128xbf16>
    %cst_23 = arith.constant dense<0.000000e+00> : vector<512x128xf32>
    %27 = tpu.matmul %25, %26, %cst_23 {dimension_numbers = #tpu.dot_dimension_numbers<[1], [0], [0], [1], [0, 0, 1, 1], [], []>} : vector<512x512xbf16>, vector<512x128xbf16>, vector<512x128xf32> -> vector<512x128xf32>
    %c0_24 = arith.constant 0 : index
    %c0_25 = arith.constant 0 : index
    %28 = vector.load %arg8[%c0_24, %c0_25] : memref<1x128xf32, #tpu.memory_space<vmem>>, vector<1x128xf32>
    %29 = vector.broadcast %28 : vector<1x128xf32> to vector<512x128xf32>
    %30 = arith.addf %27, %29 : vector<512x128xf32>
    %31 = math.tanh %30 : vector<512x128xf32>
    %c0_26 = arith.constant 0 : index
    %c0_27 = arith.constant 0 : index
    %32 = vector.load %arg9[%c0_26, %c0_27] : memref<512x128xf32, #tpu.memory_space<vmem>>, vector<512x128xf32>
    tpu.vector_store %arg9[%c0_26, %c0_27], %31 {strides = array<i32>} : memref<512x128xf32, #tpu.memory_space<vmem>>, vector<512x128xf32>,
    return
  }
  func.func @transform_0(%arg0: i32) -> (i32, i32) {
    %c0_i32 = arith.constant 0 : i32
    %c0_i32_0 = arith.constant 0 : i32
    %c0_i32_1 = arith.constant 0 : i32
    return %c0_i32, %c0_i32_0 : i32, i32
  }
  func.func @transform_1(%arg0: i32) -> (i32, i32) {
    %c0_i32 = arith.constant 0 : i32
    %c0_i32_0 = arith.constant 0 : i32
    %c0_i32_1 = arith.constant 0 : i32
    return %c0_i32, %c0_i32_0 : i32, i32
  }
  func.func @transform_2(%arg0: i32) -> (i32, i32) {
    %c0_i32 = arith.constant 0 : i32
    %c0_i32_0 = arith.constant 0 : i32
    %c0_i32_1 = arith.constant 0 : i32
    return %c0_i32, %c0_i32_0 : i32, i32
  }
  func.func @transform_3(%arg0: i32) -> (i32, i32) {
    %c0_i32 = arith.constant 0 : i32
    %c0_i32_0 = arith.constant 0 : i32
    %c0_i32_1 = arith.constant 0 : i32
    return %c0_i32, %c0_i32_0 : i32, i32
  }
  func.func @transform_4(%arg0: i32) -> (i32, i32) {
    %c0_i32 = arith.constant 0 : i32
    %c0_i32_0 = arith.constant 0 : i32
    %c0_i32_1 = arith.constant 0 : i32
    return %c0_i32, %c0_i32_0 : i32, i32
  }
  func.func @transform_5(%arg0: i32) -> (i32, i32) {
    %c0_i32 = arith.constant 0 : i32
    %c0_i32_0 = arith.constant 0 : i32
    %c0_i32_1 = arith.constant 0 : i32
    return %c0_i32, %c0_i32_0 : i32, i32
  }
  func.func @transform_6(%arg0: i32) -> (i32, i32) {
    %c0_i32 = arith.constant 0 : i32
    %c0_i32_0 = arith.constant 0 : i32
    %c0_i32_1 = arith.constant 0 : i32
    return %c0_i32, %c0_i32_0 : i32, i32
  }
  func.func @transform_7(%arg0: i32) -> (i32, i32) {
    %c0_i32 = arith.constant 0 : i32
    %c0_i32_0 = arith.constant 0 : i32
    %c0_i32_1 = arith.constant 0 : i32
    return %c0_i32, %c0_i32_0 : i32, i32
  }
  func.func @transform_8(%arg0: i32) -> (i32, i32) {
    %c0_i32 = arith.constant 0 : i32
    %c0_i32_0 = arith.constant 0 : i32
    %c0_i32_1 = arith.constant 0 : i32
    return %c0_i32, %c0_i32_0 : i32, i32
  }
}

</mosaic_0001>

<llo_original>
// kernel: action_value_forward.1
$region0: #{action_value_forward.1}
  #allocation0 [shape = 'u32[]', space=smem, size = 0x4, offset = 0x4, fixed_abs, tag = 'smem constant byte address 0x4 - core index']
  #allocation1 [shape = 'u32[144,128]{1,0:T(1,128)}', space=vmem, size = 0x12000, scoped, tag = 'internal scratch']
  %s0 = inlined_call_operand.vmem [shape: bf16[512,512], index: 0, kind: input, shape index: {}]
  %s1 = inlined_call_operand.vmem [shape: bf16[512,128], index: 1, kind: input, shape index: {}]
  %s2 = inlined_call_operand.vmem [shape: bf16[128,128], index: 2, kind: input, shape index: {}]
  %s3 = inlined_call_operand.vmem [shape: bf16[128,128], index: 3, kind: input, shape index: {}]
  %s4 = inlined_call_operand.vmem [shape: bf16[128,128], index: 4, kind: input, shape index: {}]
  %s5 = inlined_call_operand.vmem [shape: f32[1,128], index: 5, kind: input, shape index: {}]
  %s6 = inlined_call_operand.vmem [shape: f32[1,128], index: 6, kind: input, shape index: {}]
  %s7 = inlined_call_operand.vmem [shape: f32[1,128], index: 7, kind: input, shape index: {}]
  %s8 = inlined_call_operand.vmem [shape: f32[512,128], index: 8, kind: output, shape index: {}]
  %s9 = sld [smem:[#allocation0]]
  $region42: #{action_value_forward.1} parent=0
    _
  %s11 = ssub.s32 1, %s9
  %s12 = scalar_select 0, %s11, %s9
  // Predicated region
  $region2: #{action_value_forward.1} parent=0 // pred_check
    _
  $region3: #{action_value_forward.1} parent=0 // pred_check_branch
    %14 = sbr.rel (0) target = $region5
  $region4: #{action_value_forward.1} parent=0 // pred_region
    _
  $region5: #{action_value_forward.1} parent=0 // pred_fallthru
    _
  // Predicated region
  $region6: #{action_value_forward.1} parent=0 // pred_check
    _
  $region7: #{action_value_forward.1} parent=0 // pred_check_branch
    %16 = sbr.rel (0) target = $region9
  $region8: #{action_value_forward.1} parent=0 // pred_region
    _
  $region9: #{action_value_forward.1} parent=0 // pred_fallthru
    _
  // Predicated region
  $region10: #{action_value_forward.1} parent=0 // pred_check
    _
  $region11: #{action_value_forward.1} parent=0 // pred_check_branch
    %18 = sbr.rel (0) target = $region13
  $region12: #{action_value_forward.1} parent=0 // pred_region
    _
  $region13: #{action_value_forward.1} parent=0 // pred_fallthru
    _
  // Predicated region
  $region14: #{action_value_forward.1} parent=0 // pred_check
    _
  $region15: #{action_value_forward.1} parent=0 // pred_check_branch
    %20 = sbr.rel (0) target = $region17
  $region16: #{action_value_forward.1} parent=0 // pred_region
    _
  $region17: #{action_value_forward.1} parent=0 // pred_fallthru
    _
  // Predicated region
  $region18: #{action_value_forward.1} parent=0 // pred_check
    _
  $region19: #{action_value_forward.1} parent=0 // pred_check_branch
    %22 = sbr.rel (0) target = $region21
  $region20: #{action_value_forward.1} parent=0 // pred_region
    _
  $region21: #{action_value_forward.1} parent=0 // pred_fallthru
    _
  // Predicated region
  $region22: #{action_value_forward.1} parent=0 // pred_check
    _
  $region23: #{action_value_forward.1} parent=0 // pred_check_branch
    %24 = sbr.rel (0) target = $region25
  $region24: #{action_value_forward.1} parent=0 // pred_region
    _
  $region25: #{action_value_forward.1} parent=0 // pred_fallthru
    _
  // Predicated region
  $region26: #{action_value_forward.1} parent=0 // pred_check
    _
  $region27: #{action_value_forward.1} parent=0 // pred_check_branch
    %26 = sbr.rel (0) target = $region29
  $region28: #{action_value_forward.1} parent=0 // pred_region
    _
  $region29: #{action_value_forward.1} parent=0 // pred_fallthru
    _
  // Predicated region
  $region30: #{action_value_forward.1} parent=0 // pred_check
    _
  $region31: #{action_value_forward.1} parent=0 // pred_check_branch
    %28 = sbr.rel (0) target = $region33
  $region32: #{action_value_forward.1} parent=0 // pred_region
    _
  $region33: #{action_value_forward.1} parent=0 // pred_fallthru
    _
  %v30 = vld [vmem:[%s1] sm:$0xf]
  %v31 = vld [vmem:[%s1 + $0x4] sm:$0xf]
  %v32 = vld [vmem:[%s1 + $0x8] sm:$0xf]
  %v33 = vld [vmem:[%s1 + $0xc] sm:$0xf]
  %v34 = vld [vmem:[%s1 + $0x10] sm:$0xf]
  %v35 = vld [vmem:[%s1 + $0x14] sm:$0xf]
  %v36 = vld [vmem:[%s1 + $0x18] sm:$0xf]
  %v37 = vld [vmem:[%s1 + $0x1c] sm:$0xf]
  %v38 = vld [vmem:[%s1 + $0x20] sm:$0xf]
  %v39 = vld [vmem:[%s1 + $0x24] sm:$0xf]
  %v40 = vld [vmem:[%s1 + $0x28] sm:$0xf]
  %v41 = vld [vmem:[%s1 + $0x2c] sm:$0xf]
  %v42 = vld [vmem:[%s1 + $0x30] sm:$0xf]
  %v43 = vld [vmem:[%s1 + $0x34] sm:$0xf]
  %v44 = vld [vmem:[%s1 + $0x38] sm:$0xf]
  %v45 = vld [vmem:[%s1 + $0x3c] sm:$0xf]
  %v46 = vld [vmem:[%s1 + $0x40] sm:$0xf]
  %v47 = vld [vmem:[%s1 + $0x44] sm:$0xf]
  %v48 = vld [vmem:[%s1 + $0x48] sm:$0xf]
  %v49 = vld [vmem:[%s1 + $0x4c] sm:$0xf]
  %v50 = vld [vmem:[%s1 + $0x50] sm:$0xf]
  %v51 = vld [vmem:[%s1 + $0x54] sm:$0xf]
  %v52 = vld [vmem:[%s1 + $0x58] sm:$0xf]
  %v53 = vld [vmem:[%s1 + $0x5c] sm:$0xf]
  %v54 = vld [vmem:[%s1 + $0x60] sm:$0xf]
  %v55 = vld [vmem:[%s1 + $0x64] sm:$0xf]
  %v56 = vld [vmem:[%s1 + $0x68] sm:$0xf]
  %v57 = vld [vmem:[%s1 + $0x6c] sm:$0xf]
  %v58 = vld [vmem:[%s1 + $0x70] sm:$0xf]
  %v59 = vld [vmem:[%s1 + $0x74] sm:$0xf]
  %v60 = vld [vmem:[%s1 + $0x78] sm:$0xf]
  %v61 = vld [vmem:[%s1 + $0x7c] sm:$0xf]
  %v62 = vld [vmem:[%s1 + $0x80] sm:$0xf]
  %v63 = vld [vmem:[%s1 + $0x84] sm:$0xf]
  %v64 = vld [vmem:[%s1 + $0x88] sm:$0xf]
  %v65 = vld [vmem:[%s1 + $0x8c] sm:$0xf]
  %v66 = vld [vmem:[%s1 + $0x90] sm:$0xf]
  %v67 = vld [vmem:[%s1 + $0x94] sm:$0xf]
  %v68 = vld [vmem:[%s1 + $0x98] sm:$0xf]
  %v69 = vld [vmem:[%s1 + $0x9c] sm:$0xf]
  %v70 = vld [vmem:[%s1 + $0xa0] sm:$0xf]
  %v71 = vld [vmem:[%s1 + $0xa4] sm:$0xf]
  %v72 = vld [vmem:[%s1 + $0xa8] sm:$0xf]
  %v73 = vld [vmem:[%s1 + $0xac] sm:$0xf]
  %v74 = vld [vmem:[%s1 + $0xb0] sm:$0xf]
  %v75 = vld [vmem:[%s1 + $0xb4] sm:$0xf]
  %v76 = vld [vmem:[%s1 + $0xb8] sm:$0xf]
  %v77 = vld [vmem:[%s1 + $0xbc] sm:$0xf]
  %v78 = vld [vmem:[%s1 + $0xc0] sm:$0xf]
  %v79 = vld [vmem:[%s1 + $0xc4] sm:$0xf]
  %v80 = vld [vmem:[%s1 + $0xc8] sm:$0xf]
  %v81 = vld [vmem:[%s1 + $0xcc] sm:$0xf]
  %v82 = vld [vmem:[%s1 + $0xd0] sm:$0xf]
  %v83 = vld [vmem:[%s1 + $0xd4] sm:$0xf]
  %v84 = vld [vmem:[%s1 + $0xd8] sm:$0xf]
  %v85 = vld [vmem:[%s1 + $0xdc] sm:$0xf]
  %v86 = vld [vmem:[%s1 + $0xe0] sm:$0xf]
  %v87 = vld [vmem:[%s1 + $0xe4] sm:$0xf]
  %v88 = vld [vmem:[%s1 + $0xe8] sm:$0xf]
  %v89 = vld [vmem:[%s1 + $0xec] sm:$0xf]
  %v90 = vld [vmem:[%s1 + $0xf0] sm:$0xf]
  %v91 = vld [vmem:[%s1 + $0xf4] sm:$0xf]
  %v92 = vld [vmem:[%s1 + $0xf8] sm:$0xf]
  %v93 = vld [vmem:[%s1 + $0xfc] sm:$0xf]
  %v94 = vld [vmem:[%s2] sm:$0xf]
  %v95 = vld [vmem:[%s2 + $0x4] sm:$0xf]
  %v96 = vld [vmem:[%s2 + $0x8] sm:$0xf]
  %v97 = vld [vmem:[%s2 + $0xc] sm:$0xf]
  %v98 = vld [vmem:[%s2 + $0x10] sm:$0xf]
  %v99 = vld [vmem:[%s2 + $0x14] sm:$0xf]
  %v100 = vld [vmem:[%s2 + $0x18] sm:$0xf]
  %v101 = vld [vmem:[%s2 + $0x1c] sm:$0xf]
  %v102 = vld [vmem:[%s2 + $0x20] sm:$0xf]
  %v103 = vld [vmem:[%s2 + $0x24] sm:$0xf]
  %v104 = vld [vmem:[%s2 + $0x28] sm:$0xf]
  %v105 = vld [vmem:[%s2 + $0x2c] sm:$0xf]
  %v106 = vld [vmem:[%s2 + $0x30] sm:$0xf]
  %v107 = vld [vmem:[%s2 + $0x34] sm:$0xf]
  %v108 = vld [vmem:[%s2 + $0x38] sm:$0xf]
  %v109 = vld [vmem:[%s2 + $0x3c] sm:$0xf]
  %v174 = vunpack.c.l.b16 %v30
  %v175 = vunpack.c.l.b16 %v31
  %v176 = vunpack.c.l.b16 %v32
  %v177 = vunpack.c.l.b16 %v33
  %v178 = vunpack.c.l.b16 %v34
  %v179 = vunpack.c.l.b16 %v35
  %v180 = vunpack.c.l.b16 %v36
  %v181 = vunpack.c.l.b16 %v37
  %v182 = vunpack.c.l.b16 %v38
  %v183 = vunpack.c.l.b16 %v39
  %v184 = vunpack.c.l.b16 %v40
  %v185 = vunpack.c.l.b16 %v41
  %v186 = vunpack.c.l.b16 %v42
  %v187 = vunpack.c.l.b16 %v43
  %v188 = vunpack.c.l.b16 %v44
  %v189 = vunpack.c.l.b16 %v45
  %v190 = vunpack.c.l.b16 %v46
  %v191 = vunpack.c.l.b16 %v47
  %v192 = vunpack.c.l.b16 %v48
  %v193 = vunpack.c.l.b16 %v49
  %v194 = vunpack.c.l.b16 %v50
  %v195 = vunpack.c.l.b16 %v51
  %v196 = vunpack.c.l.b16 %v52
  %v197 = vunpack.c.l.b16 %v53
  %v198 = vunpack.c.l.b16 %v54
  %v199 = vunpack.c.l.b16 %v55
  %v200 = vunpack.c.l.b16 %v56
  %v201 = vunpack.c.l.b16 %v57
  %v202 = vunpack.c.l.b16 %v58
  %v203 = vunpack.c.l.b16 %v59
  %v204 = vunpack.c.l.b16 %v60
  %v205 = vunpack.c.l.b16 %v61
  %v206 = vunpack.c.l.b16 %v62
  %v207 = vunpack.c.l.b16 %v63
  %v208 = vunpack.c.l.b16 %v64
  %v209 = vunpack.c.l.b16 %v65
  %v210 = vunpack.c.l.b16 %v66
  %v211 = vunpack.c.l.b16 %v67
  %v212 = vunpack.c.l.b16 %v68
  %v213 = vunpack.c.l.b16 %v69
  %v214 = vunpack.c.l.b16 %v70
  %v215 = vunpack.c.l.b16 %v71
  %v216 = vunpack.c.l.b16 %v72
  %v217 = vunpack.c.l.b16 %v73
  %v218 = vunpack.c.l.b16 %v74
  %v219 = vunpack.c.l.b16 %v75
  %v220 = vunpack.c.l.b16 %v76
  %v221 = vunpack.c.l.b16 %v77
  %v222 = vunpack.c.l.b16 %v78
  %v223 = vunpack.c.l.b16 %v79
  %v224 = vunpack.c.l.b16 %v80
  %v225 = vunpack.c.l.b16 %v81
  %v226 = vunpack.c.l.b16 %v82
  %v227 = vunpack.c.l.b16 %v83
  %v228 = vunpack.c.l.b16 %v84
  %v229 = vunpack.c.l.b16 %v85
  %v230 = vunpack.c.l.b16 %v86
  %v231 = vunpack.c.l.b16 %v87
  %v232 = vunpack.c.l.b16 %v88
  %v233 = vunpack.c.l.b16 %v89
  %v234 = vunpack.c.l.b16 %v90
  %v235 = vunpack.c.l.b16 %v91
  %v236 = vunpack.c.l.b16 %v92
  %v237 = vunpack.c.l.b16 %v93
  %v238 = vpack.c.b16 %v175, %v174
  %v239 = vpack.c.b16 %v177, %v176
  %v240 = vpack.c.b16 %v179, %v178
  %v241 = vpack.c.b16 %v181, %v180
  %v242 = vpack.c.b16 %v183, %v182
  %v243 = vpack.c.b16 %v185, %v184
  %v244 = vpack.c.b16 %v187, %v186
  %v245 = vpack.c.b16 %v189, %v188
  %v246 = vpack.c.b16 %v191, %v190
  %v247 = vpack.c.b16 %v193, %v192
  %v248 = vpack.c.b16 %v195, %v194
  %v249 = vpack.c.b16 %v197, %v196
  %v250 = vpack.c.b16 %v199, %v198
  %v251 = vpack.c.b16 %v201, %v200
  %v252 = vpack.c.b16 %v203, %v202
  %v253 = vpack.c.b16 %v205, %v204
  %v254 = vpack.c.b16 %v207, %v206
  %v255 = vpack.c.b16 %v209, %v208
  %v256 = vpack.c.b16 %v211, %v210
  %v257 = vpack.c.b16 %v213, %v212
  %v258 = vpack.c.b16 %v215, %v214
  %v259 = vpack.c.b16 %v217, %v216
  %v260 = vpack.c.b16 %v219, %v218
  %v261 = vpack.c.b16 %v221, %v220
  %v262 = vpack.c.b16 %v223, %v222
  %v263 = vpack.c.b16 %v225, %v224
  %v264 = vpack.c.b16 %v227, %v226
  %v265 = vpack.c.b16 %v229, %v228
  %v266 = vpack.c.b16 %v231, %v230
  %v267 = vpack.c.b16 %v233, %v232
  %v268 = vpack.c.b16 %v235, %v234
  %v269 = vpack.c.b16 %v237, %v236
  %v318 = vunpack.c.l.b16 %v94
  %v319 = vunpack.c.l.b16 %v95
  %v320 = vunpack.c.l.b16 %v96
  %v321 = vunpack.c.l.b16 %v97
  %v322 = vunpack.c.l.b16 %v98
  %v323 = vunpack.c.l.b16 %v99
  %v324 = vunpack.c.l.b16 %v100
  %v325 = vunpack.c.l.b16 %v101
  %v326 = vunpack.c.l.b16 %v102
  %v327 = vunpack.c.l.b16 %v103
  %v328 = vunpack.c.l.b16 %v104
  %v329 = vunpack.c.l.b16 %v105
  %v330 = vunpack.c.l.b16 %v106
  %v331 = vunpack.c.l.b16 %v107
  %v332 = vunpack.c.l.b16 %v108
  %v333 = vunpack.c.l.b16 %v109
  %v334 = vpack.c.b16 %v319, %v318
  %v335 = vpack.c.b16 %v321, %v320
  %v336 = vpack.c.b16 %v323, %v322
  %v337 = vpack.c.b16 %v325, %v324
  %v338 = vpack.c.b16 %v327, %v326
  %v339 = vpack.c.b16 %v329, %v328
  %v340 = vpack.c.b16 %v331, %v330
  %v341 = vpack.c.b16 %v333, %v332
  %350 = vmatprep.subr.bf16.mxu0 0
  %351 = vmatpush1.bf16.msra.mxu0 %v334
  %352 = vmatprep.subr.bf16.mxu0 0
  %353 = vmatpush1.bf16.msra.mxu0 %v335
  %354 = vmatprep.subr.bf16.mxu0 0
  %355 = vmatpush1.bf16.msra.mxu0 %v336
  %356 = vmatprep.subr.bf16.mxu0 0
  %357 = vmatpush1.bf16.msra.mxu0 %v337
  %358 = vmatprep.subr.bf16.mxu0 0
  %359 = vmatpush1.bf16.msra.mxu0 %v338
  %360 = vmatprep.subr.bf16.mxu0 0
  %361 = vmatpush1.bf16.msra.mxu0 %v339
  %362 = vmatprep.subr.bf16.mxu0 0
  %363 = vmatpush1.bf16.msra.mxu0 %v340
  %364 = vmatprep.subr.bf16.mxu0 0
  %365 = vmatpush1.bf16.msra.mxu0 %v341
  %366 = vmatprep.subr.bf16.mxu0 0
  %367 = vmatpush1.bf16.msra.mxu0 0
  %368 = vmatprep.subr.bf16.mxu0 0
  %369 = vmatpush1.bf16.msra.mxu0 0
  %370 = vmatprep.subr.bf16.mxu0 0
  %371 = vmatpush1.bf16.msra.mxu0 0
  %372 = vmatprep.subr.bf16.mxu0 0
  %373 = vmatpush1.bf16.msra.mxu0 0
  %374 = vmatprep.subr.bf16.mxu0 0
  %375 = vmatpush1.bf16.msra.mxu0 0
  %376 = vmatprep.subr.bf16.mxu0 0
  %377 = vmatpush1.bf16.msra.mxu0 0
  %378 = vmatprep.subr.bf16.mxu0 0
  %379 = vmatpush1.bf16.msra.mxu0 0
  %380 = vmatprep.subr.bf16.mxu0 0
  %381 = vmatpush1.bf16.msra.mxu0 0
  %382 = vmatprep.mubr.bf16.mxu0 0
  %383 = vmatmul.mubr.bf16.gmra.mrb[0].mxu0 %v238
  %v384 = vpop.f32.mrb[0].mxu0
  %v385 = vadd.f32 0.0, %v384
  %v386 = vpop.f32.mrb[0].mxu0
  %v387 = vpop.f32.mrb[0].mxu0
  %v388 = vadd.f32 0.0, %v387
  %v389 = vpop.f32.mrb[0].mxu0
  %390 = vmatprep.mubr.bf16.mxu0 0
  %391 = vmatmul.mubr.bf16.gmra.mrb[0].mxu0 %v239
  %v392 = vpop.f32.mrb[0].mxu0
  %v393 = vadd.f32 0.0, %v392
  %v394 = vpop.f32.mrb[0].mxu0
  %v395 = vpop.f32.mrb[0].mxu0
  %v396 = vadd.f32 0.0, %v395
  %v397 = vpop.f32.mrb[0].mxu0
  %398 = vmatprep.mubr.bf16.mxu0 0
  %399 = vmatmul.mubr.bf16.gmra.mrb[0].mxu0 %v240
  %v400 = vpop.f32.mrb[0].mxu0
  %v401 = vadd.f32 0.0, %v400
  %v402 = vpop.f32.mrb[0].mxu0
  %v403 = vpop.f32.mrb[0].mxu0
  %v404 = vadd.f32 0.0, %v403
  %v405 = vpop.f32.mrb[0].mxu0
  %406 = vmatprep.mubr.bf16.mxu0 0
  %407 = vmatmul.mubr.bf16.gmra.mrb[0].mxu0 %v241
  %v408 = vpop.f32.mrb[0].mxu0
  %v409 = vadd.f32 0.0, %v408
  %v410 = vpop.f32.mrb[0].mxu0
  %v411 = vpop.f32.mrb[0].mxu0
  %v412 = vadd.f32 0.0, %v411
  %v413 = vpop.f32.mrb[0].mxu0
  %414 = vmatprep.mubr.bf16.mxu0 0
  %415 = vmatmul.mubr.bf16.gmra.mrb[0].mxu0 %v242
  %v416 = vpop.f32.mrb[0].mxu0
  %v417 = vadd.f32 0.0, %v416
  %v418 = vpop.f32.mrb[0].mxu0
  %v419 = vpop.f32.mrb[0].mxu0
  %v420 = vadd.f32 0.0, %v419
  %v421 = vpop.f32.mrb[0].mxu0
  %422 = vmatprep.mubr.bf16.mxu0 0
  %423 = vmatmul.mubr.bf16.gmra.mrb[0].mxu0 %v243
  %v424 = vpop.f32.mrb[0].mxu0
  %v425 = vadd.f32 0.0, %v424
  %v426 = vpop.f32.mrb[0].mxu0
  %v427 = vpop.f32.mrb[0].mxu0
  %v428 = vadd.f32 0.0, %v427
  %v429 = vpop.f32.mrb[0].mxu0
  %430 = vmatprep.mubr.bf16.mxu0 0
  %431 = vmatmul.mubr.bf16.gmra.mrb[0].mxu0 %v244
  %v432 = vpop.f32.mrb[0].mxu0
  %v433 = vadd.f32 0.0, %v432
  %v434 = vpop.f32.mrb[0].mxu0
  %v435 = vpop.f32.mrb[0].mxu0
  %v436 = vadd.f32 0.0, %v435
  %v437 = vpop.f32.mrb[0].mxu0
  %438 = vmatprep.mubr.bf16.mxu0 0
  %439 = vmatmul.mubr.bf16.gmra.mrb[0].mxu0 %v245
  %v440 = vpop.f32.mrb[0].mxu0
  %v441 = vadd.f32 0.0, %v440
  %v442 = vpop.f32.mrb[0].mxu0
  %v443 = vpop.f32.mrb[0].mxu0
  %v444 = vadd.f32 0.0, %v443
  %v445 = vpop.f32.mrb[0].mxu0
  %446 = vmatprep.mubr.bf16.mxu0 0
  %447 = vmatmul.mubr.bf16.gmra.mrb[0].mxu0 %v246
  %v448 = vpop.f32.mrb[0].mxu0
  %v449 = vadd.f32 0.0, %v448
  %v450 = vpop.f32.mrb[0].mxu0
  %v451 = vpop.f32.mrb[0].mxu0
  %v452 = vadd.f32 0.0, %v451
  %v453 = vpop.f32.mrb[0].mxu0
  %454 = vmatprep.mubr.bf16.mxu0 0
  %455 = vmatmul.mubr.bf16.gmra.mrb[0].mxu0 %v247
  %v456 = vpop.f32.mrb[0].mxu0
  %v457 = vadd.f32 0.0, %v456
  %v458 = vpop.f32.mrb[0].mxu0
  %v459 = vpop.f32.mrb[0].mxu0
  %v460 = vadd.f32 0.0, %v459
  %v461 = vpop.f32.mrb[0].mxu0
  %462 = vmatprep.mubr.bf16.mxu0 0
  %463 = vmatmul.mubr.bf16.gmra.mrb[0].mxu0 %v248
  %v464 = vpop.f32.mrb[0].mxu0
  %v465 = vadd.f32 0.0, %v464
  %v466 = vpop.f32.mrb[0].mxu0
  %v467 = vpop.f32.mrb[0].mxu0
  %v468 = vadd.f32 0.0, %v467
  %v469 = vpop.f32.mrb[0].mxu0
  %470 = vmatprep.mubr.bf16.mxu0 0
  %471 = vmatmul.mubr.bf16.gmra.mrb[0].mxu0 %v249
  %v472 = vpop.f32.mrb[0].mxu0
  %v473 = vadd.f32 0.0, %v472
  %v474 = vpop.f32.mrb[0].mxu0
  %v475 = vpop.f32.mrb[0].mxu0
  %v476 = vadd.f32 0.0, %v475
  %v477 = vpop.f32.mrb[0].mxu0
  %478 = vmatprep.mubr.bf16.mxu0 0
  %479 = vmatmul.mubr.bf16.gmra.mrb[0].mxu0 %v250
  %v480 = vpop.f32.mrb[0].mxu0
  %v481 = vadd.f32 0.0, %v480
  %v482 = vpop.f32.mrb[0].mxu0
  %v483 = vpop.f32.mrb[0].mxu0
  %v484 = vadd.f32 0.0, %v483
  %v485 = vpop.f32.mrb[0].mxu0
  %486 = vmatprep.mubr.bf16.mxu0 0
  %487 = vmatmul.mubr.bf16.gmra.mrb[0].mxu0 %v251
  %v488 = vpop.f32.mrb[0].mxu0
  %v489 = vadd.f32 0.0, %v488
  %v490 = vpop.f32.mrb[0].mxu0
  %v491 = vpop.f32.mrb[0].mxu0
  %v492 = vadd.f32 0.0, %v491
  %v493 = vpop.f32.mrb[0].mxu0
  %494 = vmatprep.mubr.bf16.mxu0 0
  %495 = vmatmul.mubr.bf16.gmra.mrb[0].mxu0 %v252
  %v496 = vpop.f32.mrb[0].mxu0
  %v497 = vadd.f32 0.0, %v496
  %v498 = vpop.f32.mrb[0].mxu0
  %v499 = vpop.f32.mrb[0].mxu0
  %v500 = vadd.f32 0.0, %v499
  %v501 = vpop.f32.mrb[0].mxu0
  %502 = vmatprep.mubr.bf16.mxu0 0
  %503 = vmatmul.mubr.bf16.gmra.mrb[0].mxu0 %v253
  %v504 = vpop.f32.mrb[0].mxu0
  %v505 = vadd.f32 0.0, %v504
  %v506 = vpop.f32.mrb[0].mxu0
  %v507 = vpop.f32.mrb[0].mxu0
  %v508 = vadd.f32 0.0, %v507
  %v509 = vpop.f32.mrb[0].mxu0
  %510 = vmatprep.mubr.bf16.mxu0 0
  %511 = vmatmul.mubr.bf16.gmra.mrb[0].mxu0 %v254
  %v512 = vpop.f32.mrb[0].mxu0
  %v513 = vadd.f32 0.0, %v512
  %v514 = vpop.f32.mrb[0].mxu0
  %v515 = vpop.f32.mrb[0].mxu0
  %v516 = vadd.f32 0.0, %v515
  %v517 = vpop.f32.mrb[0].mxu0
  %518 = vmatprep.mubr.bf16.mxu0 0
  %519 = vmatmul.mubr.bf16.gmra.mrb[0].mxu0 %v255
  %v520 = vpop.f32.mrb[0].mxu0
  %v521 = vadd.f32 0.0, %v520
  %v522 = vpop.f32.mrb[0].mxu0
  %v523 = vpop.f32.mrb[0].mxu0
  %v524 = vadd.f32 0.0, %v523
  %v525 = vpop.f32.mrb[0].mxu0
  %526 = vmatprep.mubr.bf16.mxu0 0
  %527 = vmatmul.mubr.bf16.gmra.mrb[0].mxu0 %v256
  %v528 = vpop.f32.mrb[0].mxu0
  %v529 = vadd.f32 0.0, %v528
  %v530 = vpop.f32.mrb[0].mxu0
  %v531 = vpop.f32.mrb[0].mxu0
  %v532 = vadd.f32 0.0, %v531
  %v533 = vpop.f32.mrb[0].mxu0
  %534 = vmatprep.mubr.bf16.mxu0 0
  %535 = vmatmul.mubr.bf16.gmra.mrb[0].mxu0 %v257
  %v536 = vpop.f32.mrb[0].mxu0
  %v537 = vadd.f32 0.0, %v536
  %v538 = vpop.f32.mrb[0].mxu0
  %v539 = vpop.f32.mrb[0].mxu0
  %v540 = vadd.f32 0.0, %v539
  %v541 = vpop.f32.mrb[0].mxu0
  %542 = vmatprep.mubr.bf16.mxu0 0
  %543 = vmatmul.mubr.bf16.gmra.mrb[0].mxu0 %v258
  %v544 = vpop.f32.mrb[0].mxu0
  %v545 = vadd.f32 0.0, %v544
  %v546 = vpop.f32.mrb[0].mxu0
  %v547 = vpop.f32.mrb[0].mxu0
  %v548 = vadd.f32 0.0, %v547
  %v549 = vpop.f32.mrb[0].mxu0
  %550 = vmatprep.mubr.bf16.mxu0 0
  %551 = vmatmul.mubr.bf16.gmra.mrb[0].mxu0 %v259
  %v552 = vpop.f32.mrb[0].mxu0
  %v553 = vadd.f32 0.0, %v552
  %v554 = vpop.f32.mrb[0].mxu0
  %v555 = vpop.f32.mrb[0].mxu0
  %v556 = vadd.f32 0.0, %v555
  %v557 = vpop.f32.mrb[0].mxu0
  %558 = vmatprep.mubr.bf16.mxu0 0
  %559 = vmatmul.mubr.bf16.gmra.mrb[0].mxu0 %v260
  %v560 = vpop.f32.mrb[0].mxu0
  %v561 = vadd.f32 0.0, %v560
  %v562 = vpop.f32.mrb[0].mxu0
  %v563 = vpop.f32.mrb[0].mxu0
  %v564 = vadd.f32 0.0, %v563
  %v565 = vpop.f32.mrb[0].mxu0
  %566 = vmatprep.mubr.bf16.mxu0 0
  %567 = vmatmul.mubr.bf16.gmra.mrb[0].mxu0 %v261
  %v568 = vpop.f32.mrb[0].mxu0
  %v569 = vadd.f32 0.0, %v568
  %v570 = vpop.f32.mrb[0].mxu0
  %v571 = vpop.f32.mrb[0].mxu0
  %v572 = vadd.f32 0.0, %v571
  %v573 = vpop.f32.mrb[0].mxu0
  %574 = vmatprep.mubr.bf16.mxu0 0
  %575 = vmatmul.mubr.bf16.gmra.mrb[0].mxu0 %v262
  %v576 = vpop.f32.mrb[0].mxu0
  %v577 = vadd.f32 0.0, %v576
  %v578 = vpop.f32.mrb[0].mxu0
  %v579 = vpop.f32.mrb[0].mxu0
  %v580 = vadd.f32 0.0, %v579
  %v581 = vpop.f32.mrb[0].mxu0
  %582 = vmatprep.mubr.bf16.mxu0 0
  %583 = vmatmul.mubr.bf16.gmra.mrb[0].mxu0 %v263
  %v584 = vpop.f32.mrb[0].mxu0
  %v585 = vadd.f32 0.0, %v584
  %v586 = vpop.f32.mrb[0].mxu0
  %v587 = vpop.f32.mrb[0].mxu0
  %v588 = vadd.f32 0.0, %v587
  %v589 = vpop.f32.mrb[0].mxu0
  %590 = vmatprep.mubr.bf16.mxu0 0
  %591 = vmatmul.mubr.bf16.gmra.mrb[0].mxu0 %v264
  %v592 = vpop.f32.mrb[0].mxu0
  %v593 = vadd.f32 0.0, %v592
  %v594 = vpop.f32.mrb[0].mxu0
  %v595 = vpop.f32.mrb[0].mxu0
  %v596 = vadd.f32 0.0, %v595
  %v597 = vpop.f32.mrb[0].mxu0
  %598 = vmatprep.mubr.bf16.mxu0 0
  %599 = vmatmul.mubr.bf16.gmra.mrb[0].mxu0 %v265
  %v600 = vpop.f32.mrb[0].mxu0
  %v601 = vadd.f32 0.0, %v600
  %v602 = vpop.f32.mrb[0].mxu0
  %v603 = vpop.f32.mrb[0].mxu0
  %v604 = vadd.f32 0.0, %v603
  %v605 = vpop.f32.mrb[0].mxu0
  %606 = vmatprep.mubr.bf16.mxu0 0
  %607 = vmatmul.mubr.bf16.gmra.mrb[0].mxu0 %v266
  %v608 = vpop.f32.mrb[0].mxu0
  %v609 = vadd.f32 0.0, %v608
  %v610 = vpop.f32.mrb[0].mxu0
  %v611 = vpop.f32.mrb[0].mxu0
  %v612 = vadd.f32 0.0, %v611
  %v613 = vpop.f32.mrb[0].mxu0
  %614 = vmatprep.mubr.bf16.mxu0 0
  %615 = vmatmul.mubr.bf16.gmra.mrb[0].mxu0 %v267
  %v616 = vpop.f32.mrb[0].mxu0
  %v617 = vadd.f32 0.0, %v616
  %v618 = vpop.f32.mrb[0].mxu0
  %v619 = vpop.f32.mrb[0].mxu0
  %v620 = vadd.f32 0.0, %v619
  %v621 = vpop.f32.mrb[0].mxu0
  %622 = vmatprep.mubr.bf16.mxu0 0
  %623 = vmatmul.mubr.bf16.gmra.mrb[0].mxu0 %v268
  %v624 = vpop.f32.mrb[0].mxu0
  %v625 = vadd.f32 0.0, %v624
  %v626 = vpop.f32.mrb[0].mxu0
  %v627 = vpop.f32.mrb[0].mxu0
  %v628 = vadd.f32 0.0, %v627
  %v629 = vpop.f32.mrb[0].mxu0
  %630 = vmatprep.mubr.bf16.mxu0 0
  %631 = vmatmul.mubr.bf16.gmra.mrb[0].mxu0 %v269
  %v632 = vpop.f32.mrb[0].mxu0
  %v633 = vadd.f32 0.0, %v632
  %v634 = vpop.f32.mrb[0].mxu0
  %v635 = vpop.f32.mrb[0].mxu0
  %v636 = vadd.f32 0.0, %v635
  %v637 = vpop.f32.mrb[0].mxu0
  %638 = vdwg.mxu0
  %v639 = vld [vmem:[%s0] sm:$0xff]
  %v640 = vld [vmem:[%s0 + $0x8] sm:$0xff]
  %v641 = vld [vmem:[%s0 + $0x10] sm:$0xff]
  %v642 = vld [vmem:[%s0 + $0x18] sm:$0xff]
  %v643 = vld [vmem:[%s0 + $0x20] sm:$0xff]
  %v644 = vld [vmem:[%s0 + $0x28] sm:$0xff]
  %v645 = vld [vmem:[%s0 + $0x30] sm:$0xff]
  %v646 = vld [vmem:[%s0 + $0x38] sm:$0xff]
  %v647 = vld [vmem:[%s0 + $0x40] sm:$0xff]
  %v648 = vld [vmem:[%s0 + $0x48] sm:$0xff]
  %v649 = vld [vmem:[%s0 + $0x50] sm:$0xff]
  %v650 = vld [vmem:[%s0 + $0x58] sm:$0xff]
  %v651 = vld [vmem:[%s0 + $0x60] sm:$0xff]
  %v652 = vld [vmem:[%s0 + $0x68] sm:$0xff]
  %v653 = vld [vmem:[%s0 + $0x70] sm:$0xff]
  %v654 = vld [vmem:[%s0 + $0x78] sm:$0xff]
  %v655 = vld [vmem:[%s0 + $0x80] sm:$0xff]
  %v656 = vld [vmem:[%s0 + $0x88] sm:$0xff]
  %v657 = vld [vmem:[%s0 + $0x90] sm:$0xff]
  %v658 = vld [vmem:[%s0 + $0x98] sm:$0xff]
  %v659 = vld [vmem:[%s0 + $0xa0] sm:$0xff]
  %v660 = vld [vmem:[%s0 + $0xa8] sm:$0xff]
  %v661 = vld [vmem:[%s0 + $0xb0] sm:$0xff]
  %v662 = vld [vmem:[%s0 + $0xb8] sm:$0xff]
  %v663 = vld [vmem:[%s0 + $0xc0] sm:$0xff]
  %v664 = vld [vmem:[%s0 + $0xc8] sm:$0xff]
  %v665 = vld [vmem:[%s0 + $0xd0] sm:$0xff]
  %v666 = vld [vmem:[%s0 + $0xd8] sm:$0xff]
  %v667 = vld [vmem:[%s0 + $0xe0] sm:$0xff]
  %v668 = vld [vmem:[%s0 + $0xe8] sm:$0xff]
  %v669 = vld [vmem:[%s0 + $0xf0] sm:$0xff]
  %v670 = vld [vmem:[%s0 + $0xf8] sm:$0xff]
  %v671 = vld [vmem:[%s0 + $0x100] sm:$0xff]
  %v672 = vld [vmem:[%s0 + $0x108] sm:$0xff]
  %v673 = vld [vmem:[%s0 + $0x110] sm:$0xff]
  %v674 = vld [vmem:[%s0 + $0x118] sm:$0xff]
  %v675 = vld [vmem:[%s0 + $0x120] sm:$0xff]
  %v676 = vld [vmem:[%s0 + $0x128] sm:$0xff]
  %v677 = vld [vmem:[%s0 + $0x130] sm:$0xff]
  %v678 = vld [vmem:[%s0 + $0x138] sm:$0xff]
  %v679 = vld [vmem:[%s0 + $0x140] sm:$0xff]
  %v680 = vld [vmem:[%s0 + $0x148] sm:$0xff]
  %v681 = vld [vmem:[%s0 + $0x150] sm:$0xff]
  %v682 = vld [vmem:[%s0 + $0x158] sm:$0xff]
  %v683 = vld [vmem:[%s0 + $0x160] sm:$0xff]
  %v684 = vld [vmem:[%s0 + $0x168] sm:$0xff]
  %v685 = vld [vmem:[%s0 + $0x170] sm:$0xff]
  %v686 = vld [vmem:[%s0 + $0x178] sm:$0xff]
  %v687 = vld [vmem:[%s0 + $0x180] sm:$0xff]
  %v688 = vld [vmem:[%s0 + $0x188] sm:$0xff]
  %v689 = vld [vmem:[%s0 + $0x190] sm:$0xff]
  %v690 = vld [vmem:[%s0 + $0x198] sm:$0xff]
  %v691 = vld [vmem:[%s0 + $0x1a0] sm:$0xff]
  %v692 = vld [vmem:[%s0 + $0x1a8] sm:$0xff]
  %v693 = vld [vmem:[%s0 + $0x1b0] sm:$0xff]
  %v694 = vld [vmem:[%s0 + $0x1b8] sm:$0xff]
  %v695 = vld [vmem:[%s0 + $0x1c0] sm:$0xff]
  %v696 = vld [vmem:[%s0 + $0x1c8] sm:$0xff]
  %v697 = vld [vmem:[%s0 + $0x1d0] sm:$0xff]
  %v698 = vld [vmem:[%s0 + $0x1d8] sm:$0xff]
  %v699 = vld [vmem:[%s0 + $0x1e0] sm:$0xff]
  %v700 = vld [vmem:[%s0 + $0x1e8] sm:$0xff]
  %v701 = vld [vmem:[%s0 + $0x1f0] sm:$0xff]
  %v702 = vld [vmem:[%s0 + $0x1f8] sm:$0xff]
  %v703 = vld [vmem:[%s0 + $0x200] sm:$0xff]
  %v704 = vld [vmem:[%s0 + $0x208] sm:$0xff]
  %v705 = vld [vmem:[%s0 + $0x210] sm:$0xff]
  %v706 = vld [vmem:[%s0 + $0x218] sm:$0xff]
  %v707 = vld [vmem:[%s0 + $0x220] sm:$0xff]
  %v708 = vld [vmem:[%s0 + $0x228] sm:$0xff]
  %v709 = vld [vmem:[%s0 + $0x230] sm:$0xff]
  %v710 = vld [vmem:[%s0 + $0x238] sm:$0xff]
  %v711 = vld [vmem:[%s0 + $0x240] sm:$0xff]
  %v712 = vld [vmem:[%s0 + $0x248] sm:$0xff]
  %v713 = vld [vmem:[%s0 + $0x250] sm:$0xff]
  %v714 = vld [vmem:[%s0 + $0x258] sm:$0xff]
  %v715 = vld [vmem:[%s0 + $0x260] sm:$0xff]
  %v716 = vld [vmem:[%s0 + $0x268] sm:$0xff]
  %v717 = vld [vmem:[%s0 + $0x270] sm:$0xff]
  %v718 = vld [vmem:[%s0 + $0x278] sm:$0xff]
  %v719 = vld [vmem:[%s0 + $0x280] sm:$0xff]
  %v720 = vld [vmem:[%s0 + $0x288] sm:$0xff]
  %v721 = vld [vmem:[%s0 + $0x290] sm:$0xff]
  %v722 = vld [vmem:[%s0 + $0x298] sm:$0xff]
  %v723 = vld [vmem:[%s0 + $0x2a0] sm:$0xff]
  %v724 = vld [vmem:[%s0 + $0x2a8] sm:$0xff]
  %v725 = vld [vmem:[%s0 + $0x2b0] sm:$0xff]
  %v726 = vld [vmem:[%s0 + $0x2b8] sm:$0xff]
  %v727 = vld [vmem:[%s0 + $0x2c0] sm:$0xff]
  %v728 = vld [vmem:[%s0 + $0x2c8] sm:$0xff]
  %v729 = vld [vmem:[%s0 + $0x2d0] sm:$0xff]
  %v730 = vld [vmem:[%s0 + $0x2d8] sm:$0xff]
  %v731 = vld [vmem:[%s0 + $0x2e0] sm:$0xff]
  %v732 = vld [vmem:[%s0 + $0x2e8] sm:$0xff]
  %v733 = vld [vmem:[%s0 + $0x2f0] sm:$0xff]
  %v734 = vld [vmem:[%s0 + $0x2f8] sm:$0xff]
  %v735 = vld [vmem:[%s0 + $0x300] sm:$0xff]
  %v736 = vld [vmem:[%s0 + $0x308] sm:$0xff]
  %v737 = vld [vmem:[%s0 + $0x310] sm:$0xff]
  %v738 = vld [vmem:[%s0 + $0x318] sm:$0xff]
  %v739 = vld [vmem:[%s0 + $0x320] sm:$0xff]
  %v740 = vld [vmem:[%s0 + $0x328] sm:$0xff]
  %v741 = vld [vmem:[%s0 + $0x330] sm:$0xff]
  %v742 = vld [vmem:[%s0 + $0x338] sm:$0xff]
  %v743 = vld [vmem:[%s0 + $0x340] sm:$0xff]
  %v744 = vld [vmem:[%s0 + $0x348] sm:$0xff]
  %v745 = vld [vmem:[%s0 + $0x350] sm:$0xff]
  %v746 = vld [vmem:[%s0 + $0x358] sm:$0xff]
  %v747 = vld [vmem:[%s0 + $0x360] sm:$0xff]
  %v748 = vld [vmem:[%s0 + $0x368] sm:$0xff]
  %v749 = vld [vmem:[%s0 + $0x370] sm:$0xff]
  %v750 = vld [vmem:[%s0 + $0x378] sm:$0xff]
  %v751 = vld [vmem:[%s0 + $0x380] sm:$0xff]
  %v752 = vld [vmem:[%s0 + $0x388] sm:$0xff]
  %v753 = vld [vmem:[%s0 + $0x390] sm:$0xff]
  %v754 = vld [vmem:[%s0 + $0x398] sm:$0xff]
  %v755 = vld [vmem:[%s0 + $0x3a0] sm:$0xff]
  %v756 = vld [vmem:[%s0 + $0x3a8] sm:$0xff]
  %v757 = vld [vmem:[%s0 + $0x3b0] sm:$0xff]
  %v758 = vld [vmem:[%s0 + $0x3b8] sm:$0xff]
  %v759 = vld [vmem:[%s0 + $0x3c0] sm:$0xff]
  %v760 = vld [vmem:[%s0 + $0x3c8] sm:$0xff]
  %v761 = vld [vmem:[%s0 + $0x3d0] sm:$0xff]
  %v762 = vld [vmem:[%s0 + $0x3d8] sm:$0xff]
  %v763 = vld [vmem:[%s0 + $0x3e0] sm:$0xff]
  %v764 = vld [vmem:[%s0 + $0x3e8] sm:$0xff]
  %v765 = vld [vmem:[%s0 + $0x3f0] sm:$0xff]
  %v766 = vld [vmem:[%s0 + $0x3f8] sm:$0xff]
  %v767 = vpack.c.bf16 %v388, %v385
  %v768 = vpack.c.bf16 %v396, %v393
  %v769 = vpack.c.bf16 %v404, %v401
  %v770 = vpack.c.bf16 %v412, %v409
  %v771 = vpack.c.bf16 %v420, %v417
  %v772 = vpack.c.bf16 %v428, %v425
  %v773 = vpack.c.bf16 %v436, %v433
  %v774 = vpack.c.bf16 %v444, %v441
  %v775 = vpack.c.bf16 %v452, %v449
  %v776 = vpack.c.bf16 %v460, %v457
  %v777 = vpack.c.bf16 %v468, %v465
  %v778 = vpack.c.bf16 %v476, %v473
  %v779 = vpack.c.bf16 %v484, %v481
  %v780 = vpack.c.bf16 %v492, %v489
  %v781 = vpack.c.bf16 %v500, %v497
  %v782 = vpack.c.bf16 %v508, %v505
  %v783 = vpack.c.bf16 %v516, %v513
  %v784 = vpack.c.bf16 %v524, %v521
  %v785 = vpack.c.bf16 %v532, %v529
  %v786 = vpack.c.bf16 %v540, %v537
  %v787 = vpack.c.bf16 %v548, %v545
  %v788 = vpack.c.bf16 %v556, %v553
  %v789 = vpack.c.bf16 %v564, %v561
  %v790 = vpack.c.bf16 %v572, %v569
  %v791 = vpack.c.bf16 %v580, %v577
  %v792 = vpack.c.bf16 %v588, %v585
  %v793 = vpack.c.bf16 %v596, %v593
  %v794 = vpack.c.bf16 %v604, %v601
  %v795 = vpack.c.bf16 %v612, %v609
  %v796 = vpack.c.bf16 %v620, %v617
  %v797 = vpack.c.bf16 %v628, %v625
  %v798 = vpack.c.bf16 %v636, %v633
  %v799 = vld [vmem:[%s5] sm:$0x1]
  %v801 = vlaneseq
  %v802 = vshrl.u32 %v801, 7
  %v803 = vsub.s32 0, %v802
  %v804 = vrot.slane %v799, %v803
  %v934 = vunpack.c.l.b16 %v639
  %v935 = vunpack.c.h.b16 %v639
  %v936 = vunpack.c.l.b16 %v640
  %v937 = vunpack.c.h.b16 %v640
  %v938 = vunpack.c.l.b16 %v641
  %v939 = vunpack.c.h.b16 %v641
  %v940 = vunpack.c.l.b16 %v642
  %v941 = vunpack.c.h.b16 %v642
  %v942 = vunpack.c.l.b16 %v643
  %v943 = vunpack.c.h.b16 %v643
  %v944 = vunpack.c.l.b16 %v644
  %v945 = vunpack.c.h.b16 %v644
  %v946 = vunpack.c.l.b16 %v645
  %v947 = vunpack.c.h.b16 %v645
  %v948 = vunpack.c.l.b16 %v646
  %v949 = vunpack.c.h.b16 %v646
  %v950 = vunpack.c.l.b16 %v647
  %v951 = vunpack.c.h.b16 %v647
  %v952 = vunpack.c.l.b16 %v648
  %v953 = vunpack.c.h.b16 %v648
  %v954 = vunpack.c.l.b16 %v649
  %v955 = vunpack.c.h.b16 %v649
  %v956 = vunpack.c.l.b16 %v650
  %v957 = vunpack.c.h.b16 %v650
  %v958 = vunpack.c.l.b16 %v651
  %v959 = vunpack.c.h.b16 %v651
  %v960 = vunpack.c.l.b16 %v652
  %v961 = vunpack.c.h.b16 %v652
  %v962 = vunpack.c.l.b16 %v653
  %v963 = vunpack.c.h.b16 %v653
  %v964 = vunpack.c.l.b16 %v654
  %v965 = vunpack.c.h.b16 %v654
  %v966 = vunpack.c.l.b16 %v655
  %v967 = vunpack.c.h.b16 %v655
  %v968 = vunpack.c.l.b16 %v656
  %v969 = vunpack.c.h.b16 %v656
  %v970 = vunpack.c.l.b16 %v657
  %v971 = vunpack.c.h.b16 %v657
  %v972 = vunpack.c.l.b16 %v658
  %v973 = vunpack.c.h.b16 %v658
  %v974 = vunpack.c.l.b16 %v659
  %v975 = vunpack.c.h.b16 %v659
  %v976 = vunpack.c.l.b16 %v660
  %v977 = vunpack.c.h.b16 %v660
  %v978 = vunpack.c.l.b16 %v661
  %v979 = vunpack.c.h.b16 %v661
  %v980 = vunpack.c.l.b16 %v662
  %v981 = vunpack.c.h.b16 %v662
  %v982 = vunpack.c.l.b16 %v663
  %v983 = vunpack.c.h.b16 %v663
  %v984 = vunpack.c.l.b16 %v664
  %v985 = vunpack.c.h.b16 %v664
  %v986 = vunpack.c.l.b16 %v665
  %v987 = vunpack.c.h.b16 %v665
  %v988 = vunpack.c.l.b16 %v666
  %v989 = vunpack.c.h.b16 %v666
  %v990 = vunpack.c.l.b16 %v667
  %v991 = vunpack.c.h.b16 %v667
  %v992 = vunpack.c.l.b16 %v668
  %v993 = vunpack.c.h.b16 %v668
  %v994 = vunpack.c.l.b16 %v669
  %v995 = vunpack.c.h.b16 %v669
  %v996 = vunpack.c.l.b16 %v670
  %v997 = vunpack.c.h.b16 %v670
  %v998 = vunpack.c.l.b16 %v671
  %v999 = vunpack.c.h.b16 %v671
  %v1000 = vunpack.c.l.b16 %v672
  %v1001 = vunpack.c.h.b16 %v672
  %v1002 = vunpack.c.l.b16 %v673
  %v1003 = vunpack.c.h.b16 %v673
  %v1004 = vunpack.c.l.b16 %v674
  %v1005 = vunpack.c.h.b16 %v674
  %v1006 = vunpack.c.l.b16 %v675
  %v1007 = vunpack.c.h.b16 %v675
  %v1008 = vunpack.c.l.b16 %v676
  %v1009 = vunpack.c.h.b16 %v676
  %v1010 = vunpack.c.l.b16 %v677
  %v1011 = vunpack.c.h.b16 %v677
  %v1012 = vunpack.c.l.b16 %v678
  %v1013 = vunpack.c.h.b16 %v678
  %v1014 = vunpack.c.l.b16 %v679
  %v1015 = vunpack.c.h.b16 %v679
  %v1016 = vunpack.c.l.b16 %v680
  %v1017 = vunpack.c.h.b16 %v680
  %v1018 = vunpack.c.l.b16 %v681
  %v1019 = vunpack.c.h.b16 %v681
  %v1020 = vunpack.c.l.b16 %v682
  %v1021 = vunpack.c.h.b16 %v682
  %v1022 = vunpack.c.l.b16 %v683
  %v1023 = vunpack.c.h.b16 %v683
  %v1024 = vunpack.c.l.b16 %v684
  %v1025 = vunpack.c.h.b16 %v684
  %v1026 = vunpack.c.l.b16 %v685
  %v1027 = vunpack.c.h.b16 %v685
  %v1028 = vunpack.c.l.b16 %v686
  %v1029 = vunpack.c.h.b16 %v686
  %v1030 = vunpack.c.l.b16 %v687
  %v1031 = vunpack.c.h.b16 %v687
  %v1032 = vunpack.c.l.b16 %v688
  %v1033 = vunpack.c.h.b16 %v688
  %v1034 = vunpack.c.l.b16 %v689
  %v1035 = vunpack.c.h.b16 %v689
  %v1036 = vunpack.c.l.b16 %v690
  %v1037 = vunpack.c.h.b16 %v690
  %v1038 = vunpack.c.l.b16 %v691
  %v1039 = vunpack.c.h.b16 %v691
  %v1040 = vunpack.c.l.b16 %v692
  %v1041 = vunpack.c.h.b16 %v692
  %v1042 = vunpack.c.l.b16 %v693
  %v1043 = vunpack.c.h.b16 %v693
  %v1044 = vunpack.c.l.b16 %v694
  %v1045 = vunpack.c.h.b16 %v694
  %v1046 = vunpack.c.l.b16 %v695
  %v1047 = vunpack.c.h.b16 %v695
  %v1048 = vunpack.c.l.b16 %v696
  %v1049 = vunpack.c.h.b16 %v696
  %v1050 = vunpack.c.l.b16 %v697
  %v1051 = vunpack.c.h.b16 %v697
  %v1052 = vunpack.c.l.b16 %v698
  %v1053 = vunpack.c.h.b16 %v698
  %v1054 = vunpack.c.l.b16 %v699
  %v1055 = vunpack.c.h.b16 %v699
  %v1056 = vunpack.c.l.b16 %v700
  %v1057 = vunpack.c.h.b16 %v700
  %v1058 = vunpack.c.l.b16 %v701
  %v1059 = vunpack.c.h.b16 %v701
  %v1060 = vunpack.c.l.b16 %v702
  %v1061 = vunpack.c.h.b16 %v702
  %v1062 = vunpack.c.l.b16 %v703
  %v1063 = vunpack.c.h.b16 %v703
  %v1064 = vunpack.c.l.b16 %v704
  %v1065 = vunpack.c.h.b16 %v704
  %v1066 = vunpack.c.l.b16 %v705
  %v1067 = vunpack.c.h.b16 %v705
  %v1068 = vunpack.c.l.b16 %v706
  %v1069 = vunpack.c.h.b16 %v706
  %v1070 = vunpack.c.l.b16 %v707
  %v1071 = vunpack.c.h.b16 %v707
  %v1072 = vunpack.c.l.b16 %v708
  %v1073 = vunpack.c.h.b16 %v708
  %v1074 = vunpack.c.l.b16 %v709
  %v1075 = vunpack.c.h.b16 %v709
  %v1076 = vunpack.c.l.b16 %v710
  %v1077 = vunpack.c.h.b16 %v710
  %v1078 = vunpack.c.l.b16 %v711
  %v1079 = vunpack.c.h.b16 %v711
  %v1080 = vunpack.c.l.b16 %v712
  %v1081 = vunpack.c.h.b16 %v712
  %v1082 = vunpack.c.l.b16 %v713
  %v1083 = vunpack.c.h.b16 %v713
  %v1084 = vunpack.c.l.b16 %v714
  %v1085 = vunpack.c.h.b16 %v714
  %v1086 = vunpack.c.l.b16 %v715
  %v1087 = vunpack.c.h.b16 %v715
  %v1088 = vunpack.c.l.b16 %v716
  %v1089 = vunpack.c.h.b16 %v716
  %v1090 = vunpack.c.l.b16 %v717
  %v1091 = vunpack.c.h.b16 %v717
  %v1092 = vunpack.c.l.b16 %v718
  %v1093 = vunpack.c.h.b16 %v718
  %v1094 = vunpack.c.l.b16 %v719
  %v1095 = vunpack.c.h.b16 %v719
  %v1096 = vunpack.c.l.b16 %v720
  %v1097 = vunpack.c.h.b16 %v720
  %v1098 = vunpack.c.l.b16 %v721
  %v1099 = vunpack.c.h.b16 %v721
  %v1100 = vunpack.c.l.b16 %v722
  %v1101 = vunpack.c.h.b16 %v722
  %v1102 = vunpack.c.l.b16 %v723
  %v1103 = vunpack.c.h.b16 %v723
  %v1104 = vunpack.c.l.b16 %v724
  %v1105 = vunpack.c.h.b16 %v724
  %v1106 = vunpack.c.l.b16 %v725
  %v1107 = vunpack.c.h.b16 %v725
  %v1108 = vunpack.c.l.b16 %v726
  %v1109 = vunpack.c.h.b16 %v726
  %v1110 = vunpack.c.l.b16 %v727
  %v1111 = vunpack.c.h.b16 %v727
  %v1112 = vunpack.c.l.b16 %v728
  %v1113 = vunpack.c.h.b16 %v728
  %v1114 = vunpack.c.l.b16 %v729
  %v1115 = vunpack.c.h.b16 %v729
  %v1116 = vunpack.c.l.b16 %v730
  %v1117 = vunpack.c.h.b16 %v730
  %v1118 = vunpack.c.l.b16 %v731
  %v1119 = vunpack.c.h.b16 %v731
  %v1120 = vunpack.c.l.b16 %v732
  %v1121 = vunpack.c.h.b16 %v732
  %v1122 = vunpack.c.l.b16 %v733
  %v1123 = vunpack.c.h.b16 %v733
  %v1124 = vunpack.c.l.b16 %v734
  %v1125 = vunpack.c.h.b16 %v734
  %v1126 = vunpack.c.l.b16 %v735
  %v1127 = vunpack.c.h.b16 %v735
  %v1128 = vunpack.c.l.b16 %v736
  %v1129 = vunpack.c.h.b16 %v736
  %v1130 = vunpack.c.l.b16 %v737
  %v1131 = vunpack.c.h.b16 %v737
  %v1132 = vunpack.c.l.b16 %v738
  %v1133 = vunpack.c.h.b16 %v738
  %v1134 = vunpack.c.l.b16 %v739
  %v1135 = vunpack.c.h.b16 %v739
  %v1136 = vunpack.c.l.b16 %v740
  %v1137 = vunpack.c.h.b16 %v740
  %v1138 = vunpack.c.l.b16 %v741
  %v1139 = vunpack.c.h.b16 %v741
  %v1140 = vunpack.c.l.b16 %v742
  %v1141 = vunpack.c.h.b16 %v742
  %v1142 = vunpack.c.l.b16 %v743
  %v1143 = vunpack.c.h.b16 %v743
  %v1144 = vunpack.c.l.b16 %v744
  %v1145 = vunpack.c.h.b16 %v744
  %v1146 = vunpack.c.l.b16 %v745
  %v1147 = vunpack.c.h.b16 %v745
  %v1148 = vunpack.c.l.b16 %v746
  %v1149 = vunpack.c.h.b16 %v746
  %v1150 = vunpack.c.l.b16 %v747
  %v1151 = vunpack.c.h.b16 %v747
  %v1152 = vunpack.c.l.b16 %v748
  %v1153 = vunpack.c.h.b16 %v748
  %v1154 = vunpack.c.l.b16 %v749
  %v1155 = vunpack.c.h.b16 %v749
  %v1156 = vunpack.c.l.b16 %v750
  %v1157 = vunpack.c.h.b16 %v750
  %v1158 = vunpack.c.l.b16 %v751
  %v1159 = vunpack.c.h.b16 %v751
  %v1160 = vunpack.c.l.b16 %v752
  %v1161 = vunpack.c.h.b16 %v752
  %v1162 = vunpack.c.l.b16 %v753
  %v1163 = vunpack.c.h.b16 %v753
  %v1164 = vunpack.c.l.b16 %v754
  %v1165 = vunpack.c.h.b16 %v754
  %v1166 = vunpack.c.l.b16 %v755
  %v1167 = vunpack.c.h.b16 %v755
  %v1168 = vunpack.c.l.b16 %v756
  %v1169 = vunpack.c.h.b16 %v756
  %v1170 = vunpack.c.l.b16 %v757
  %v1171 = vunpack.c.h.b16 %v757
  %v1172 = vunpack.c.l.b16 %v758
  %v1173 = vunpack.c.h.b16 %v758
  %v1174 = vunpack.c.l.b16 %v759
  %v1175 = vunpack.c.h.b16 %v759
  %v1176 = vunpack.c.l.b16 %v760
  %v1177 = vunpack.c.h.b16 %v760
  %v1178 = vunpack.c.l.b16 %v761
  %v1179 = vunpack.c.h.b16 %v761
  %v1180 = vunpack.c.l.b16 %v762
  %v1181 = vunpack.c.h.b16 %v762
  %v1182 = vunpack.c.l.b16 %v763
  %v1183 = vunpack.c.h.b16 %v763
  %v1184 = vunpack.c.l.b16 %v764
  %v1185 = vunpack.c.h.b16 %v764
  %v1186 = vunpack.c.l.b16 %v765
  %v1187 = vunpack.c.h.b16 %v765
  %v1188 = vunpack.c.l.b16 %v766
  %v1189 = vunpack.c.h.b16 %v766
  %v1190 = vpack.c.b16 %v938, %v934
  %v1191 = vpack.c.b16 %v939, %v935
  %v1192 = vpack.c.b16 %v940, %v936
  %v1193 = vpack.c.b16 %v941, %v937
  %v1194 = vpack.c.b16 %v946, %v942
  %v1195 = vpack.c.b16 %v947, %v943
  %v1196 = vpack.c.b16 %v948, %v944
  %v1197 = vpack.c.b16 %v949, %v945
  %v1198 = vpack.c.b16 %v954, %v950
  %v1199 = vpack.c.b16 %v955, %v951
  %v1200 = vpack.c.b16 %v956, %v952
  %v1201 = vpack.c.b16 %v957, %v953
  %v1202 = vpack.c.b16 %v962, %v958
  %v1203 = vpack.c.b16 %v963, %v959
  %v1204 = vpack.c.b16 %v964, %v960
  %v1205 = vpack.c.b16 %v965, %v961
  %v1206 = vpack.c.b16 %v970, %v966
  %v1207 = vpack.c.b16 %v971, %v967
  %v1208 = vpack.c.b16 %v972, %v968
  %v1209 = vpack.c.b16 %v973, %v969
  %v1210 = vpack.c.b16 %v978, %v974
  %v1211 = vpack.c.b16 %v979, %v975
  %v1212 = vpack.c.b16 %v980, %v976
  %v1213 = vpack.c.b16 %v981, %v977
  %v1214 = vpack.c.b16 %v986, %v982
  %v1215 = vpack.c.b16 %v987, %v983
  %v1216 = vpack.c.b16 %v988, %v984
  %v1217 = vpack.c.b16 %v989, %v985
  %v1218 = vpack.c.b16 %v994, %v990
  %v1219 = vpack.c.b16 %v995, %v991
  %v1220 = vpack.c.b16 %v996, %v992
  %v1221 = vpack.c.b16 %v997, %v993
  %v1222 = vpack.c.b16 %v1002, %v998
  %v1223 = vpack.c.b16 %v1003, %v999
  %v1224 = vpack.c.b16 %v1004, %v1000
  %v1225 = vpack.c.b16 %v1005, %v1001
  %v1226 = vpack.c.b16 %v1010, %v1006
  %v1227 = vpack.c.b16 %v1011, %v1007
  %v1228 = vpack.c.b16 %v1012, %v1008
  %v1229 = vpack.c.b16 %v1013, %v1009
  %v1230 = vpack.c.b16 %v1018, %v1014
  %v1231 = vpack.c.b16 %v1019, %v1015
  %v1232 = vpack.c.b16 %v1020, %v1016
  %v1233 = vpack.c.b16 %v1021, %v1017
  %v1234 = vpack.c.b16 %v1026, %v1022
  %v1235 = vpack.c.b16 %v1027, %v1023
  %v1236 = vpack.c.b16 %v1028, %v1024
  %v1237 = vpack.c.b16 %v1029, %v1025
  %v1238 = vpack.c.b16 %v1034, %v1030
  %v1239 = vpack.c.b16 %v1035, %v1031
  %v1240 = vpack.c.b16 %v1036, %v1032
  %v1241 = vpack.c.b16 %v1037, %v1033
  %v1242 = vpack.c.b16 %v1042, %v1038
  %v1243 = vpack.c.b16 %v1043, %v1039
  %v1244 = vpack.c.b16 %v1044, %v1040
  %v1245 = vpack.c.b16 %v1045, %v1041
  %v1246 = vpack.c.b16 %v1050, %v1046
  %v1247 = vpack.c.b16 %v1051, %v1047
  %v1248 = vpack.c.b16 %v1052, %v1048
  %v1249 = vpack.c.b16 %v1053, %v1049
  %v1250 = vpack.c.b16 %v1058, %v1054
  %v1251 = vpack.c.b16 %v1059, %v1055
  %v1252 = vpack.c.b16 %v1060, %v1056
  %v1253 = vpack.c.b16 %v1061, %v1057
  %v1254 = vpack.c.b16 %v1066, %v1062
  %v1255 = vpack.c.b16 %v1067, %v1063
  %v1256 = vpack.c.b16 %v1068, %v1064
  %v1257 = vpack.c.b16 %v1069, %v1065
  %v1258 = vpack.c.b16 %v1074, %v1070
  %v1259 = vpack.c.b16 %v1075, %v1071
  %v1260 = vpack.c.b16 %v1076, %v1072
  %v1261 = vpack.c.b16 %v1077, %v1073
  %v1262 = vpack.c.b16 %v1082, %v1078
  %v1263 = vpack.c.b16 %v1083, %v1079
  %v1264 = vpack.c.b16 %v1084, %v1080
  %v1265 = vpack.c.b16 %v1085, %v1081
  %v1266 = vpack.c.b16 %v1090, %v1086
  %v1267 = vpack.c.b16 %v1091, %v1087
  %v1268 = vpack.c.b16 %v1092, %v1088
  %v1269 = vpack.c.b16 %v1093, %v1089
  %v1270 = vpack.c.b16 %v1098, %v1094
  %v1271 = vpack.c.b16 %v1099, %v1095
  %v1272 = vpack.c.b16 %v1100, %v1096
  %v1273 = vpack.c.b16 %v1101, %v1097
  %v1274 = vpack.c.b16 %v1106, %v1102
  %v1275 = vpack.c.b16 %v1107, %v1103
  %v1276 = vpack.c.b16 %v1108, %v1104
  %v1277 = vpack.c.b16 %v1109, %v1105
  %v1278 = vpack.c.b16 %v1114, %v1110
  %v1279 = vpack.c.b16 %v1115, %v1111
  %v1280 = vpack.c.b16 %v1116, %v1112
  %v1281 = vpack.c.b16 %v1117, %v1113
  %v1282 = vpack.c.b16 %v1122, %v1118
  %v1283 = vpack.c.b16 %v1123, %v1119
  %v1284 = vpack.c.b16 %v1124, %v1120
  %v1285 = vpack.c.b16 %v1125, %v1121
  %v1286 = vpack.c.b16 %v1130, %v1126
  %v1287 = vpack.c.b16 %v1131, %v1127
  %v1288 = vpack.c.b16 %v1132, %v1128
  %v1289 = vpack.c.b16 %v1133, %v1129
  %v1290 = vpack.c.b16 %v1138, %v1134
  %v1291 = vpack.c.b16 %v1139, %v1135
  %v1292 = vpack.c.b16 %v1140, %v1136
  %v1293 = vpack.c.b16 %v1141, %v1137
  %v1294 = vpack.c.b16 %v1146, %v1142
  %v1295 = vpack.c.b16 %v1147, %v1143
  %v1296 = vpack.c.b16 %v1148, %v1144
  %v1297 = vpack.c.b16 %v1149, %v1145
  %v1298 = vpack.c.b16 %v1154, %v1150
  %v1299 = vpack.c.b16 %v1155, %v1151
  %v1300 = vpack.c.b16 %v1156, %v1152
  %v1301 = vpack.c.b16 %v1157, %v1153
  %v1302 = vpack.c.b16 %v1162, %v1158
  %v1303 = vpack.c.b16 %v1163, %v1159
  %v1304 = vpack.c.b16 %v1164, %v1160
  %v1305 = vpack.c.b16 %v1165, %v1161
  %v1306 = vpack.c.b16 %v1170, %v1166
  %v1307 = vpack.c.b16 %v1171, %v1167
  %v1308 = vpack.c.b16 %v1172, %v1168
  %v1309 = vpack.c.b16 %v1173, %v1169
  %v1310 = vpack.c.b16 %v1178, %v1174
  %v1311 = vpack.c.b16 %v1179, %v1175
  %v1312 = vpack.c.b16 %v1180, %v1176
  %v1313 = vpack.c.b16 %v1181, %v1177
  %v1314 = vpack.c.b16 %v1186, %v1182
  %v1315 = vpack.c.b16 %v1187, %v1183
  %v1316 = vpack.c.b16 %v1188, %v1184
  %v1317 = vpack.c.b16 %v1189, %v1185
  %1446 = vmatprep.subr.bf16.mxu0 0
  %1447 = vmatpush1.bf16.msra.mxu0 %v767
  %1448 = vmatprep.subr.bf16.mxu0 0
  %1449 = vmatpush1.bf16.msra.mxu0 %v768
  %1450 = vmatprep.subr.bf16.mxu0 0
  %1451 = vmatpush1.bf16.msra.mxu0 %v769
  %1452 = vmatprep.subr.bf16.mxu0 0
  %1453 = vmatpush1.bf16.msra.mxu0 %v770
  %1454 = vmatprep.subr.bf16.mxu0 0
  %1455 = vmatpush1.bf16.msra.mxu0 %v771
  %1456 = vmatprep.subr.bf16.mxu0 0
  %1457 = vmatpush1.bf16.msra.mxu0 %v772
  %1458 = vmatprep.subr.bf16.mxu0 0
  %1459 = vmatpush1.bf16.msra.mxu0 %v773
  %1460 = vmatprep.subr.bf16.mxu0 0
  %1461 = vmatpush1.bf16.msra.mxu0 %v774
  %1462 = vmatprep.subr.bf16.mxu0 0
  %1463 = vmatpush1.bf16.msra.mxu0 %v775
  %1464 = vmatprep.subr.bf16.mxu0 0
  %1465 = vmatpush1.bf16.msra.mxu0 %v776
  %1466 = vmatprep.subr.bf16.mxu0 0
  %1467 = vmatpush1.bf16.msra.mxu0 %v777
  %1468 = vmatprep.subr.bf16.mxu0 0
  %1469 = vmatpush1.bf16.msra.mxu0 %v778
  %1470 = vmatprep.subr.bf16.mxu0 0
  %1471 = vmatpush1.bf16.msra.mxu0 %v779
  %1472 = vmatprep.subr.bf16.mxu0 0
  %1473 = vmatpush1.bf16.msra.mxu0 %v780
  %1474 = vmatprep.subr.bf16.mxu0 0
  %1475 = vmatpush1.bf16.msra.mxu0 %v781
  %1476 = vmatprep.subr.bf16.mxu0 0
  %1477 = vmatpush1.bf16.msra.mxu0 %v782
  %1478 = vmatprep.mubr.bf16.mxu0 %v1191
  %1479 = vmatmul.mubr.bf16.gmra.mrb[0].mxu0 %v1190
  %v1480 = vpop.f32.mrb[0].mxu0
  %v1481 = vadd.f32 %v804, %v1480
  %v1482 = vpop.f32.mrb[0].mxu0
  %v1483 = vpop.f32.mrb[0].mxu0
  %v1484 = vadd.f32 %v804, %v1483
  %v1485 = vpop.f32.mrb[0].mxu0
  %1486 = vmatprep.mubr.bf16.mxu0 %v1195
  %1487 = vmatmul.mubr.bf16.gmra.mrb[0].mxu0 %v1194
  %v1488 = vpop.f32.mrb[0].mxu0
  %v1489 = vadd.f32 %v804, %v1488
  %v1490 = vpop.f32.mrb[0].mxu0
  %v1491 = vpop.f32.mrb[0].mxu0
  %v1492 = vadd.f32 %v804, %v1491
  %v1493 = vpop.f32.mrb[0].mxu0
  %1494 = vmatprep.mubr.bf16.mxu0 %v1199
  %1495 = vmatmul.mubr.bf16.gmra.mrb[0].mxu0 %v1198
  %v1496 = vpop.f32.mrb[0].mxu0
  %v1497 = vadd.f32 %v804, %v1496
  %v1498 = vpop.f32.mrb[0].mxu0
  %v1499 = vpop.f32.mrb[0].mxu0
  %v1500 = vadd.f32 %v804, %v1499
  %v1501 = vpop.f32.mrb[0].mxu0
  %1502 = vmatprep.mubr.bf16.mxu0 %v1203
  %1503 = vmatmul.mubr.bf16.gmra.mrb[0].mxu0 %v1202
  %v1504 = vpop.f32.mrb[0].mxu0
  %v1505 = vadd.f32 %v804, %v1504
  %v1506 = vpop.f32.mrb[0].mxu0
  %v1507 = vpop.f32.mrb[0].mxu0
  %v1508 = vadd.f32 %v804, %v1507
  %v1509 = vpop.f32.mrb[0].mxu0
  %1510 = vmatprep.mubr.bf16.mxu0 %v1207
  %1511 = vmatmul.mubr.bf16.gmra.mrb[0].mxu0 %v1206
  %v1512 = vpop.f32.mrb[0].mxu0
  %v1513 = vadd.f32 %v804, %v1512
  %v1514 = vpop.f32.mrb[0].mxu0
  %v1515 = vpop.f32.mrb[0].mxu0
  %v1516 = vadd.f32 %v804, %v1515
  %v1517 = vpop.f32.mrb[0].mxu0
  %1518 = vmatprep.mubr.bf16.mxu0 %v1211
  %1519 = vmatmul.mubr.bf16.gmra.mrb[0].mxu0 %v1210
  %v1520 = vpop.f32.mrb[0].mxu0
  %v1521 = vadd.f32 %v804, %v1520
  %v1522 = vpop.f32.mrb[0].mxu0
  %v1523 = vpop.f32.mrb[0].mxu0
  %v1524 = vadd.f32 %v804, %v1523
  %v1525 = vpop.f32.mrb[0].mxu0
  %1526 = vmatprep.mubr.bf16.mxu0 %v1215
  %1527 = vmatmul.mubr.bf16.gmra.mrb[0].mxu0 %v1214
  %v1528 = vpop.f32.mrb[0].mxu0
  %v1529 = vadd.f32 %v804, %v1528
  %v1530 = vpop.f32.mrb[0].mxu0
  %v1531 = vpop.f32.mrb[0].mxu0
  %v1532 = vadd.f32 %v804, %v1531
  %v1533 = vpop.f32.mrb[0].mxu0
  %1534 = vmatprep.mubr.bf16.mxu0 %v1219
  %1535 = vmatmul.mubr.bf16.gmra.mrb[0].mxu0 %v1218
  %v1536 = vpop.f32.mrb[0].mxu0
  %v1537 = vadd.f32 %v804, %v1536
  %v1538 = vpop.f32.mrb[0].mxu0
  %v1539 = vpop.f32.mrb[0].mxu0
  %v1540 = vadd.f32 %v804, %v1539
  %v1541 = vpop.f32.mrb[0].mxu0
  %1542 = vmatprep.mubr.bf16.mxu0 %v1223
  %1543 = vmatmul.mubr.bf16.gmra.mrb[0].mxu0 %v1222
  %v1544 = vpop.f32.mrb[0].mxu0
  %v1545 = vadd.f32 %v804, %v1544
  %v1546 = vpop.f32.mrb[0].mxu0
  %v1547 = vpop.f32.mrb[0].mxu0
  %v1548 = vadd.f32 %v804, %v1547
  %v1549 = vpop.f32.mrb[0].mxu0
  %1550 = vmatprep.mubr.bf16.mxu0 %v1227
  %1551 = vmatmul.mubr.bf16.gmra.mrb[0].mxu0 %v1226
  %v1552 = vpop.f32.mrb[0].mxu0
  %v1553 = vadd.f32 %v804, %v1552
  %v1554 = vpop.f32.mrb[0].mxu0
  %v1555 = vpop.f32.mrb[0].mxu0
  %v1556 = vadd.f32 %v804, %v1555
  %v1557 = vpop.f32.mrb[0].mxu0
  %1558 = vmatprep.mubr.bf16.mxu0 %v1231
  %1559 = vmatmul.mubr.bf16.gmra.mrb[0].mxu0 %v1230
  %v1560 = vpop.f32.mrb[0].mxu0
  %v1561 = vadd.f32 %v804, %v1560
  %v1562 = vpop.f32.mrb[0].mxu0
  %v1563 = vpop.f32.mrb[0].mxu0
  %v1564 = vadd.f32 %v804, %v1563
  %v1565 = vpop.f32.mrb[0].mxu0
  %1566 = vmatprep.mubr.bf16.mxu0 %v1235
  %1567 = vmatmul.mubr.bf16.gmra.mrb[0].mxu0 %v1234
  %v1568 = vpop.f32.mrb[0].mxu0
  %v1569 = vadd.f32 %v804, %v1568
  %v1570 = vpop.f32.mrb[0].mxu0
  %v1571 = vpop.f32.mrb[0].mxu0
  %v1572 = vadd.f32 %v804, %v1571
  %v1573 = vpop.f32.mrb[0].mxu0
  %1574 = vmatprep.mubr.bf16.mxu0 %v1239
  %1575 = vmatmul.mubr.bf16.gmra.mrb[0].mxu0 %v1238
  %v1576 = vpop.f32.mrb[0].mxu0
  %v1577 = vadd.f32 %v804, %v1576
  %v1578 = vpop.f32.mrb[0].mxu0
  %v1579 = vpop.f32.mrb[0].mxu0
  %v1580 = vadd.f32 %v804, %v1579
  %v1581 = vpop.f32.mrb[0].mxu0
  %1582 = vmatprep.mubr.bf16.mxu0 %v1243
  %1583 = vmatmul.mubr.bf16.gmra.mrb[0].mxu0 %v1242
  %v1584 = vpop.f32.mrb[0].mxu0
  %v1585 = vadd.f32 %v804, %v1584
  %v1586 = vpop.f32.mrb[0].mxu0
  %v1587 = vpop.f32.mrb[0].mxu0
  %v1588 = vadd.f32 %v804, %v1587
  %v1589 = vpop.f32.mrb[0].mxu0
  %1590 = vmatprep.mubr.bf16.mxu0 %v1247
  %1591 = vmatmul.mubr.bf16.gmra.mrb[0].mxu0 %v1246
  %v1592 = vpop.f32.mrb[0].mxu0
  %v1593 = vadd.f32 %v804, %v1592
  %v1594 = vpop.f32.mrb[0].mxu0
  %v1595 = vpop.f32.mrb[0].mxu0
  %v1596 = vadd.f32 %v804, %v1595
  %v1597 = vpop.f32.mrb[0].mxu0
  %1598 = vmatprep.mubr.bf16.mxu0 %v1251
  %1599 = vmatmul.mubr.bf16.gmra.mrb[0].mxu0 %v1250
  %v1600 = vpop.f32.mrb[0].mxu0
  %v1601 = vadd.f32 %v804, %v1600
  %v1602 = vpop.f32.mrb[0].mxu0
  %v1603 = vpop.f32.mrb[0].mxu0
  %v1604 = vadd.f32 %v804, %v1603
  %v1605 = vpop.f32.mrb[0].mxu0
  %1606 = vmatprep.mubr.bf16.mxu0 %v1255
  %1607 = vmatmul.mubr.bf16.gmra.mrb[0].mxu0 %v1254
  %v1608 = vpop.f32.mrb[0].mxu0
  %v1609 = vadd.f32 %v804, %v1608
  %v1610 = vpop.f32.mrb[0].mxu0
  %v1611 = vpop.f32.mrb[0].mxu0
  %v1612 = vadd.f32 %v804, %v1611
  %v1613 = vpop.f32.mrb[0].mxu0
  %1614 = vmatprep.mubr.bf16.mxu0 %v1259
  %1615 = vmatmul.mubr.bf16.gmra.mrb[0].mxu0 %v1258
  %v1616 = vpop.f32.mrb[0].mxu0
  %v1617 = vadd.f32 %v804, %v1616
  %v1618 = vpop.f32.mrb[0].mxu0
  %v1619 = vpop.f32.mrb[0].mxu0
  %v1620 = vadd.f32 %v804, %v1619
  %v1621 = vpop.f32.mrb[0].mxu0
  %1622 = vmatprep.mubr.bf16.mxu0 %v1263
  %1623 = vmatmul.mubr.bf16.gmra.mrb[0].mxu0 %v1262
  %v1624 = vpop.f32.mrb[0].mxu0
  %v1625 = vadd.f32 %v804, %v1624
  %v1626 = vpop.f32.mrb[0].mxu0
  %v1627 = vpop.f32.mrb[0].mxu0
  %v1628 = vadd.f32 %v804, %v1627
  %v1629 = vpop.f32.mrb[0].mxu0
  %1630 = vmatprep.mubr.bf16.mxu0 %v1267
  %1631 = vmatmul.mubr.bf16.gmra.mrb[0].mxu0 %v1266
  %v1632 = vpop.f32.mrb[0].mxu0
  %v1633 = vadd.f32 %v804, %v1632
  %v1634 = vpop.f32.mrb[0].mxu0
  %v1635 = vpop.f32.mrb[0].mxu0
  %v1636 = vadd.f32 %v804, %v1635
  %v1637 = vpop.f32.mrb[0].mxu0
  %1638 = vmatprep.mubr.bf16.mxu0 %v1271
  %1639 = vmatmul.mubr.bf16.gmra.mrb[0].mxu0 %v1270
  %v1640 = vpop.f32.mrb[0].mxu0
  %v1641 = vadd.f32 %v804, %v1640
  %v1642 = vpop.f32.mrb[0].mxu0
  %v1643 = vpop.f32.mrb[0].mxu0
  %v1644 = vadd.f32 %v804, %v1643
  %v1645 = vpop.f32.mrb[0].mxu0
  %1646 = vmatprep.mubr.bf16.mxu0 %v1275
  %1647 = vmatmul.mubr.bf16.gmra.mrb[0].mxu0 %v1274
  %v1648 = vpop.f32.mrb[0].mxu0
  %v1649 = vadd.f32 %v804, %v1648
  %v1650 = vpop.f32.mrb[0].mxu0
  %v1651 = vpop.f32.mrb[0].mxu0
  %v1652 = vadd.f32 %v804, %v1651
  %v1653 = vpop.f32.mrb[0].mxu0
  %1654 = vmatprep.mubr.bf16.mxu0 %v1279
  %1655 = vmatmul.mubr.bf16.gmra.mrb[0].mxu0 %v1278
  %v1656 = vpop.f32.mrb[0].mxu0
  %v1657 = vadd.f32 %v804, %v1656
  %v1658 = vpop.f32.mrb[0].mxu0
  %v1659 = vpop.f32.mrb[0].mxu0
  %v1660 = vadd.f32 %v804, %v1659
  %v1661 = vpop.f32.mrb[0].mxu0
  %1662 = vmatprep.mubr.bf16.mxu0 %v1283
  %1663 = vmatmul.mubr.bf16.gmra.mrb[0].mxu0 %v1282
  %v1664 = vpop.f32.mrb[0].mxu0
  %v1665 = vadd.f32 %v804, %v1664
  %v1666 = vpop.f32.mrb[0].mxu0
  %v1667 = vpop.f32.mrb[0].mxu0
  %v1668 = vadd.f32 %v804, %v1667
  %v1669 = vpop.f32.mrb[0].mxu0
  %1670 = vmatprep.mubr.bf16.mxu0 %v1287
  %1671 = vmatmul.mubr.bf16.gmra.mrb[0].mxu0 %v1286
  %v1672 = vpop.f32.mrb[0].mxu0
  %v1673 = vadd.f32 %v804, %v1672
  %v1674 = vpop.f32.mrb[0].mxu0
  %v1675 = vpop.f32.mrb[0].mxu0
  %v1676 = vadd.f32 %v804, %v1675
  %v1677 = vpop.f32.mrb[0].mxu0
  %1678 = vmatprep.mubr.bf16.mxu0 %v1291
  %1679 = vmatmul.mubr.bf16.gmra.mrb[0].mxu0 %v1290
  %v1680 = vpop.f32.mrb[0].mxu0
  %v1681 = vadd.f32 %v804, %v1680
  %v1682 = vpop.f32.mrb[0].mxu0
  %v1683 = vpop.f32.mrb[0].mxu0
  %v1684 = vadd.f32 %v804, %v1683
  %v1685 = vpop.f32.mrb[0].mxu0
  %1686 = vmatprep.mubr.bf16.mxu0 %v1295
  %1687 = vmatmul.mubr.bf16.gmra.mrb[0].mxu0 %v1294
  %v1688 = vpop.f32.mrb[0].mxu0
  %v1689 = vadd.f32 %v804, %v1688
  %v1690 = vpop.f32.mrb[0].mxu0
  %v1691 = vpop.f32.mrb[0].mxu0
  %v1692 = vadd.f32 %v804, %v1691
  %v1693 = vpop.f32.mrb[0].mxu0
  %1694 = vmatprep.mubr.bf16.mxu0 %v1299
  %1695 = vmatmul.mubr.bf16.gmra.mrb[0].mxu0 %v1298
  %v1696 = vpop.f32.mrb[0].mxu0
  %v1697 = vadd.f32 %v804, %v1696
  %v1698 = vpop.f32.mrb[0].mxu0
  %v1699 = vpop.f32.mrb[0].mxu0
  %v1700 = vadd.f32 %v804, %v1699
  %v1701 = vpop.f32.mrb[0].mxu0
  %1702 = vmatprep.mubr.bf16.mxu0 %v1303
  %1703 = vmatmul.mubr.bf16.gmra.mrb[0].mxu0 %v1302
  %v1704 = vpop.f32.mrb[0].mxu0
  %v1705 = vadd.f32 %v804, %v1704
  %v1706 = vpop.f32.mrb[0].mxu0
  %v1707 = vpop.f32.mrb[0].mxu0
  %v1708 = vadd.f32 %v804, %v1707
  %v1709 = vpop.f32.mrb[0].mxu0
  %1710 = vmatprep.mubr.bf16.mxu0 %v1307
  %1711 = vmatmul.mubr.bf16.gmra.mrb[0].mxu0 %v1306
  %v1712 = vpop.f32.mrb[0].mxu0
  %v1713 = vadd.f32 %v804, %v1712
  %v1714 = vpop.f32.mrb[0].mxu0
  %v1715 = vpop.f32.mrb[0].mxu0
  %v1716 = vadd.f32 %v804, %v1715
  %v1717 = vpop.f32.mrb[0].mxu0
  %1718 = vmatprep.mubr.bf16.mxu0 %v1311
  %1719 = vmatmul.mubr.bf16.gmra.mrb[0].mxu0 %v1310
  %v1720 = vpop.f32.mrb[0].mxu0
  %v1721 = vadd.f32 %v804, %v1720
  %v1722 = vpop.f32.mrb[0].mxu0
  %v1723 = vpop.f32.mrb[0].mxu0
  %v1724 = vadd.f32 %v804, %v1723
  %v1725 = vpop.f32.mrb[0].mxu0
  %1726 = vmatprep.mubr.bf16.mxu0 %v1315
  %1727 = vmatmul.mubr.bf16.gmra.mrb[0].mxu0 %v1314
  %v1728 = vpop.f32.mrb[0].mxu0
  %v1729 = vadd.f32 %v804, %v1728
  %v1730 = vpop.f32.mrb[0].mxu0
  %v1731 = vpop.f32.mrb[0].mxu0
  %v1732 = vadd.f32 %v804, %v1731
  %v1733 = vpop.f32.mrb[0].mxu0
  %1734 = vdwg.mxu0
  %1735 = vmatprep.subr.bf16.mxu0 0
  %1736 = vmatpush1.bf16.msra.mxu0 %v783
  %1737 = vmatprep.subr.bf16.mxu0 0
  %1738 = vmatpush1.bf16.msra.mxu0 %v784
  %1739 = vmatprep.subr.bf16.mxu0 0
  %1740 = vmatpush1.bf16.msra.mxu0 %v785
  %1741 = vmatprep.subr.bf16.mxu0 0
  %1742 = vmatpush1.bf16.msra.mxu0 %v786
  %1743 = vmatprep.subr.bf16.mxu0 0
  %1744 = vmatpush1.bf16.msra.mxu0 %v787
  %1745 = vmatprep.subr.bf16.mxu0 0
  %1746 = vmatpush1.bf16.msra.mxu0 %v788
  %1747 = vmatprep.subr.bf16.mxu0 0
  %1748 = vmatpush1.bf16.msra.mxu0 %v789
  %1749 = vmatprep.subr.bf16.mxu0 0
  %1750 = vmatpush1.bf16.msra.mxu0 %v790
  %1751 = vmatprep.subr.bf16.mxu0 0
  %1752 = vmatpush1.bf16.msra.mxu0 %v791
  %1753 = vmatprep.subr.bf16.mxu0 0
  %1754 = vmatpush1.bf16.msra.mxu0 %v792
  %1755 = vmatprep.subr.bf16.mxu0 0
  %1756 = vmatpush1.bf16.msra.mxu0 %v793
  %1757 = vmatprep.subr.bf16.mxu0 0
  %1758 = vmatpush1.bf16.msra.mxu0 %v794
  %1759 = vmatprep.subr.bf16.mxu0 0
  %1760 = vmatpush1.bf16.msra.mxu0 %v795
  %1761 = vmatprep.subr.bf16.mxu0 0
  %1762 = vmatpush1.bf16.msra.mxu0 %v796
  %1763 = vmatprep.subr.bf16.mxu0 0
  %1764 = vmatpush1.bf16.msra.mxu0 %v797
  %1765 = vmatprep.subr.bf16.mxu0 0
  %1766 = vmatpush1.bf16.msra.mxu0 %v798
  %1767 = vmatprep.mubr.bf16.mxu0 %v1193
  %1768 = vmatmul.mubr.bf16.gmra.mrb[0].mxu0 %v1192
  %v1769 = vpop.f32.mrb[0].mxu0
  %v1770 = vadd.f32 %v1481, %v1769
  %v1771 = vpop.f32.mrb[0].mxu0
  %v1772 = vpop.f32.mrb[0].mxu0
  %v1773 = vadd.f32 %v1484, %v1772
  %v1774 = vpop.f32.mrb[0].mxu0
  %1775 = vmatprep.mubr.bf16.mxu0 %v1197
  %1776 = vmatmul.mubr.bf16.gmra.mrb[0].mxu0 %v1196
  %v1777 = vpop.f32.mrb[0].mxu0
  %v1778 = vadd.f32 %v1489, %v1777
  %v1779 = vpop.f32.mrb[0].mxu0
  %v1780 = vpop.f32.mrb[0].mxu0
  %v1781 = vadd.f32 %v1492, %v1780
  %v1782 = vpop.f32.mrb[0].mxu0
  %1783 = vmatprep.mubr.bf16.mxu0 %v1201
  %1784 = vmatmul.mubr.bf16.gmra.mrb[0].mxu0 %v1200
  %v1785 = vpop.f32.mrb[0].mxu0
  %v1786 = vadd.f32 %v1497, %v1785
  %v1787 = vpop.f32.mrb[0].mxu0
  %v1788 = vpop.f32.mrb[0].mxu0
  %v1789 = vadd.f32 %v1500, %v1788
  %v1790 = vpop.f32.mrb[0].mxu0
  %1791 = vmatprep.mubr.bf16.mxu0 %v1205
  %1792 = vmatmul.mubr.bf16.gmra.mrb[0].mxu0 %v1204
  %v1793 = vpop.f32.mrb[0].mxu0
  %v1794 = vadd.f32 %v1505, %v1793
  %v1795 = vpop.f32.mrb[0].mxu0
  %v1796 = vpop.f32.mrb[0].mxu0
  %v1797 = vadd.f32 %v1508, %v1796
  %v1798 = vpop.f32.mrb[0].mxu0
  %1799 = vmatprep.mubr.bf16.mxu0 %v1209
  %1800 = vmatmul.mubr.bf16.gmra.mrb[0].mxu0 %v1208
  %v1801 = vpop.f32.mrb[0].mxu0
  %v1802 = vadd.f32 %v1513, %v1801
  %v1803 = vpop.f32.mrb[0].mxu0
  %v1804 = vpop.f32.mrb[0].mxu0
  %v1805 = vadd.f32 %v1516, %v1804
  %v1806 = vpop.f32.mrb[0].mxu0
  %1807 = vmatprep.mubr.bf16.mxu0 %v1213
  %1808 = vmatmul.mubr.bf16.gmra.mrb[0].mxu0 %v1212
  %v1809 = vpop.f32.mrb[0].mxu0
  %v1810 = vadd.f32 %v1521, %v1809
  %v1811 = vpop.f32.mrb[0].mxu0
  %v1812 = vpop.f32.mrb[0].mxu0
  %v1813 = vadd.f32 %v1524, %v1812
  %v1814 = vpop.f32.mrb[0].mxu0
  %1815 = vmatprep.mubr.bf16.mxu0 %v1217
  %1816 = vmatmul.mubr.bf16.gmra.mrb[0].mxu0 %v1216
  %v1817 = vpop.f32.mrb[0].mxu0
  %v1818 = vadd.f32 %v1529, %v1817
  %v1819 = vpop.f32.mrb[0].mxu0
  %v1820 = vpop.f32.mrb[0].mxu0
  %v1821 = vadd.f32 %v1532, %v1820
  %v1822 = vpop.f32.mrb[0].mxu0
  %1823 = vmatprep.mubr.bf16.mxu0 %v1221
  %1824 = vmatmul.mubr.bf16.gmra.mrb[0].mxu0 %v1220
  %v1825 = vpop.f32.mrb[0].mxu0
  %v1826 = vadd.f32 %v1537, %v1825
  %v1827 = vpop.f32.mrb[0].mxu0
  %v1828 = vpop.f32.mrb[0].mxu0
  %v1829 = vadd.f32 %v1540, %v1828
  %v1830 = vpop.f32.mrb[0].mxu0
  %1831 = vmatprep.mubr.bf16.mxu0 %v1225
  %1832 = vmatmul.mubr.bf16.gmra.mrb[0].mxu0 %v1224
  %v1833 = vpop.f32.mrb[0].mxu0
  %v1834 = vadd.f32 %v1545, %v1833
  %v1835 = vpop.f32.mrb[0].mxu0
  %v1836 = vpop.f32.mrb[0].mxu0
  %v1837 = vadd.f32 %v1548, %v1836
  %v1838 = vpop.f32.mrb[0].mxu0
  %1839 = vmatprep.mubr.bf16.mxu0 %v1229
  %1840 = vmatmul.mubr.bf16.gmra.mrb[0].mxu0 %v1228
  %v1841 = vpop.f32.mrb[0].mxu0
  %v1842 = vadd.f32 %v1553, %v1841
  %v1843 = vpop.f32.mrb[0].mxu0
  %v1844 = vpop.f32.mrb[0].mxu0
  %v1845 = vadd.f32 %v1556, %v1844
  %v1846 = vpop.f32.mrb[0].mxu0
  %1847 = vmatprep.mubr.bf16.mxu0 %v1233
  %1848 = vmatmul.mubr.bf16.gmra.mrb[0].mxu0 %v1232
  %v1849 = vpop.f32.mrb[0].mxu0
  %v1850 = vadd.f32 %v1561, %v1849
  %v1851 = vpop.f32.mrb[0].mxu0
  %v1852 = vpop.f32.mrb[0].mxu0
  %v1853 = vadd.f32 %v1564, %v1852
  %v1854 = vpop.f32.mrb[0].mxu0
  %1855 = vmatprep.mubr.bf16.mxu0 %v1237
  %1856 = vmatmul.mubr.bf16.gmra.mrb[0].mxu0 %v1236
  %v1857 = vpop.f32.mrb[0].mxu0
  %v1858 = vadd.f32 %v1569, %v1857
  %v1859 = vpop.f32.mrb[0].mxu0
  %v1860 = vpop.f32.mrb[0].mxu0
  %v1861 = vadd.f32 %v1572, %v1860
  %v1862 = vpop.f32.mrb[0].mxu0
  %1863 = vmatprep.mubr.bf16.mxu0 %v1241
  %1864 = vmatmul.mubr.bf16.gmra.mrb[0].mxu0 %v1240
  %v1865 = vpop.f32.mrb[0].mxu0
  %v1866 = vadd.f32 %v1577, %v1865
  %v1867 = vpop.f32.mrb[0].mxu0
  %v1868 = vpop.f32.mrb[0].mxu0
  %v1869 = vadd.f32 %v1580, %v1868
  %v1870 = vpop.f32.mrb[0].mxu0
  %1871 = vmatprep.mubr.bf16.mxu0 %v1245
  %1872 = vmatmul.mubr.bf16.gmra.mrb[0].mxu0 %v1244
  %v1873 = vpop.f32.mrb[0].mxu0
  %v1874 = vadd.f32 %v1585, %v1873
  %v1875 = vpop.f32.mrb[0].mxu0
  %v1876 = vpop.f32.mrb[0].mxu0
  %v1877 = vadd.f32 %v1588, %v1876
  %v1878 = vpop.f32.mrb[0].mxu0
  %1879 = vmatprep.mubr.bf16.mxu0 %v1249
  %1880 = vmatmul.mubr.bf16.gmra.mrb[0].mxu0 %v1248
  %v1881 = vpop.f32.mrb[0].mxu0
  %v1882 = vadd.f32 %v1593, %v1881
  %v1883 = vpop.f32.mrb[0].mxu0
  %v1884 = vpop.f32.mrb[0].mxu0
  %v1885 = vadd.f32 %v1596, %v1884
  %v1886 = vpop.f32.mrb[0].mxu0
  %1887 = vmatprep.mubr.bf16.mxu0 %v1253
  %1888 = vmatmul.mubr.bf16.gmra.mrb[0].mxu0 %v1252
  %v1889 = vpop.f32.mrb[0].mxu0
  %v1890 = vadd.f32 %v1601, %v1889
  %v1891 = vpop.f32.mrb[0].mxu0
  %v1892 = vpop.f32.mrb[0].mxu0
  %v1893 = vadd.f32 %v1604, %v1892
  %v1894 = vpop.f32.mrb[0].mxu0
  %1895 = vmatprep.mubr.bf16.mxu0 %v1257
  %1896 = vmatmul.mubr.bf16.gmra.mrb[0].mxu0 %v1256
  %v1897 = vpop.f32.mrb[0].mxu0
  %v1898 = vadd.f32 %v1609, %v1897
  %v1899 = vpop.f32.mrb[0].mxu0
  %v1900 = vpop.f32.mrb[0].mxu0
  %v1901 = vadd.f32 %v1612, %v1900
  %v1902 = vpop.f32.mrb[0].mxu0
  %1903 = vmatprep.mubr.bf16.mxu0 %v1261
  %1904 = vmatmul.mubr.bf16.gmra.mrb[0].mxu0 %v1260
  %v1905 = vpop.f32.mrb[0].mxu0
  %v1906 = vadd.f32 %v1617, %v1905
  %v1907 = vpop.f32.mrb[0].mxu0
  %v1908 = vpop.f32.mrb[0].mxu0
  %v1909 = vadd.f32 %v1620, %v1908
  %v1910 = vpop.f32.mrb[0].mxu0
  %1911 = vmatprep.mubr.bf16.mxu0 %v1265
  %1912 = vmatmul.mubr.bf16.gmra.mrb[0].mxu0 %v1264
  %v1913 = vpop.f32.mrb[0].mxu0
  %v1914 = vadd.f32 %v1625, %v1913
  %v1915 = vpop.f32.mrb[0].mxu0
  %v1916 = vpop.f32.mrb[0].mxu0
  %v1917 = vadd.f32 %v1628, %v1916
  %v1918 = vpop.f32.mrb[0].mxu0
  %1919 = vmatprep.mubr.bf16.mxu0 %v1269
  %1920 = vmatmul.mubr.bf16.gmra.mrb[0].mxu0 %v1268
  %v1921 = vpop.f32.mrb[0].mxu0
  %v1922 = vadd.f32 %v1633, %v1921
  %v1923 = vpop.f32.mrb[0].mxu0
  %v1924 = vpop.f32.mrb[0].mxu0
  %v1925 = vadd.f32 %v1636, %v1924
  %v1926 = vpop.f32.mrb[0].mxu0
  %1927 = vmatprep.mubr.bf16.mxu0 %v1273
  %1928 = vmatmul.mubr.bf16.gmra.mrb[0].mxu0 %v1272
  %v1929 = vpop.f32.mrb[0].mxu0
  %v1930 = vadd.f32 %v1641, %v1929
  %v1931 = vpop.f32.mrb[0].mxu0
  %v1932 = vpop.f32.mrb[0].mxu0
  %v1933 = vadd.f32 %v1644, %v1932
  %v1934 = vpop.f32.mrb[0].mxu0
  %1935 = vmatprep.mubr.bf16.mxu0 %v1277
  %1936 = vmatmul.mubr.bf16.gmra.mrb[0].mxu0 %v1276
  %v1937 = vpop.f32.mrb[0].mxu0
  %v1938 = vadd.f32 %v1649, %v1937
  %v1939 = vpop.f32.mrb[0].mxu0
  %v1940 = vpop.f32.mrb[0].mxu0
  %v1941 = vadd.f32 %v1652, %v1940
  %v1942 = vpop.f32.mrb[0].mxu0
  %1943 = vmatprep.mubr.bf16.mxu0 %v1281
  %1944 = vmatmul.mubr.bf16.gmra.mrb[0].mxu0 %v1280
  %v1945 = vpop.f32.mrb[0].mxu0
  %v1946 = vadd.f32 %v1657, %v1945
  %v1947 = vpop.f32.mrb[0].mxu0
  %v1948 = vpop.f32.mrb[0].mxu0
  %v1949 = vadd.f32 %v1660, %v1948
  %v1950 = vpop.f32.mrb[0].mxu0
  %1951 = vmatprep.mubr.bf16.mxu0 %v1285
  %1952 = vmatmul.mubr.bf16.gmra.mrb[0].mxu0 %v1284
  %v1953 = vpop.f32.mrb[0].mxu0
  %v1954 = vadd.f32 %v1665, %v1953
  %v1955 = vpop.f32.mrb[0].mxu0
  %v1956 = vpop.f32.mrb[0].mxu0
  %v1957 = vadd.f32 %v1668, %v1956
  %v1958 = vpop.f32.mrb[0].mxu0
  %1959 = vmatprep.mubr.bf16.mxu0 %v1289
  %1960 = vmatmul.mubr.bf16.gmra.mrb[0].mxu0 %v1288
  %v1961 = vpop.f32.mrb[0].mxu0
  %v1962 = vadd.f32 %v1673, %v1961
  %v1963 = vpop.f32.mrb[0].mxu0
  %v1964 = vpop.f32.mrb[0].mxu0
  %v1965 = vadd.f32 %v1676, %v1964
  %v1966 = vpop.f32.mrb[0].mxu0
  %1967 = vmatprep.mubr.bf16.mxu0 %v1293
  %1968 = vmatmul.mubr.bf16.gmra.mrb[0].mxu0 %v1292
  %v1969 = vpop.f32.mrb[0].mxu0
  %v1970 = vadd.f32 %v1681, %v1969
  %v1971 = vpop.f32.mrb[0].mxu0
  %v1972 = vpop.f32.mrb[0].mxu0
  %v1973 = vadd.f32 %v1684, %v1972
  %v1974 = vpop.f32.mrb[0].mxu0
  %1975 = vmatprep.mubr.bf16.mxu0 %v1297
  %1976 = vmatmul.mubr.bf16.gmra.mrb[0].mxu0 %v1296
  %v1977 = vpop.f32.mrb[0].mxu0
  %v1978 = vadd.f32 %v1689, %v1977
  %v1979 = vpop.f32.mrb[0].mxu0
  %v1980 = vpop.f32.mrb[0].mxu0
  %v1981 = vadd.f32 %v1692, %v1980
  %v1982 = vpop.f32.mrb[0].mxu0
  %1983 = vmatprep.mubr.bf16.mxu0 %v1301
  %1984 = vmatmul.mubr.bf16.gmra.mrb[0].mxu0 %v1300
  %v1985 = vpop.f32.mrb[0].mxu0
  %v1986 = vadd.f32 %v1697, %v1985
  %v1987 = vpop.f32.mrb[0].mxu0
  %v1988 = vpop.f32.mrb[0].mxu0
  %v1989 = vadd.f32 %v1700, %v1988
  %v1990 = vpop.f32.mrb[0].mxu0
  %1991 = vmatprep.mubr.bf16.mxu0 %v1305
  %1992 = vmatmul.mubr.bf16.gmra.mrb[0].mxu0 %v1304
  %v1993 = vpop.f32.mrb[0].mxu0
  %v1994 = vadd.f32 %v1705, %v1993
  %v1995 = vpop.f32.mrb[0].mxu0
  %v1996 = vpop.f32.mrb[0].mxu0
  %v1997 = vadd.f32 %v1708, %v1996
  %v1998 = vpop.f32.mrb[0].mxu0
  %1999 = vmatprep.mubr.bf16.mxu0 %v1309
  %2000 = vmatmul.mubr.bf16.gmra.mrb[0].mxu0 %v1308
  %v2001 = vpop.f32.mrb[0].mxu0
  %v2002 = vadd.f32 %v1713, %v2001
  %v2003 = vpop.f32.mrb[0].mxu0
  %v2004 = vpop.f32.mrb[0].mxu0
  %v2005 = vadd.f32 %v1716, %v2004
  %v2006 = vpop.f32.mrb[0].mxu0
  %2007 = vmatprep.mubr.bf16.mxu0 %v1313
  %2008 = vmatmul.mubr.bf16.gmra.mrb[0].mxu0 %v1312
  %v2009 = vpop.f32.mrb[0].mxu0
  %v2010 = vadd.f32 %v1721, %v2009
  %v2011 = vpop.f32.mrb[0].mxu0
  %v2012 = vpop.f32.mrb[0].mxu0
  %v2013 = vadd.f32 %v1724, %v2012
  %v2014 = vpop.f32.mrb[0].mxu0
  %2015 = vmatprep.mubr.bf16.mxu0 %v1317
  %2016 = vmatmul.mubr.bf16.gmra.mrb[0].mxu0 %v1316
  %v2017 = vpop.f32.mrb[0].mxu0
  %v2018 = vadd.f32 %v1729, %v2017
  %v2019 = vpop.f32.mrb[0].mxu0
  %v2020 = vpop.f32.mrb[0].mxu0
  %v2021 = vadd.f32 %v1732, %v2020
  %v2022 = vpop.f32.mrb[0].mxu0
  %2023 = vdwg.mxu0
  %v2024 = vmax.f32 %v1770, 0.0
  %v2025 = vmax.f32 %v1773, 0.0
  %v2026 = vmax.f32 %v1778, 0.0
  %v2027 = vmax.f32 %v1781, 0.0
  %v2028 = vmax.f32 %v1786, 0.0
  %v2029 = vmax.f32 %v1789, 0.0
  %v2030 = vmax.f32 %v1794, 0.0
  %v2031 = vmax.f32 %v1797, 0.0
  %v2032 = vmax.f32 %v1802, 0.0
  %v2033 = vmax.f32 %v1805, 0.0
  %v2034 = vmax.f32 %v1810, 0.0
  %v2035 = vmax.f32 %v1813, 0.0
  %v2036 = vmax.f32 %v1818, 0.0
  %v2037 = vmax.f32 %v1821, 0.0
  %v2038 = vmax.f32 %v1826, 0.0
  %v2039 = vmax.f32 %v1829, 0.0
  %v2040 = vmax.f32 %v1834, 0.0
  %v2041 = vmax.f32 %v1837, 0.0
  %v2042 = vmax.f32 %v1842, 0.0
  %v2043 = vmax.f32 %v1845, 0.0
  %v2044 = vmax.f32 %v1850, 0.0
  %v2045 = vmax.f32 %v1853, 0.0
  %v2046 = vmax.f32 %v1858, 0.0
  %v2047 = vmax.f32 %v1861, 0.0
  %v2048 = vmax.f32 %v1866, 0.0
  %v2049 = vmax.f32 %v1869, 0.0
  %v2050 = vmax.f32 %v1874, 0.0
  %v2051 = vmax.f32 %v1877, 0.0
  %v2052 = vmax.f32 %v1882, 0.0
  %v2053 = vmax.f32 %v1885, 0.0
  %v2054 = vmax.f32 %v1890, 0.0
  %v2055 = vmax.f32 %v1893, 0.0
  %v2056 = vmax.f32 %v1898, 0.0
  %v2057 = vmax.f32 %v1901, 0.0
  %v2058 = vmax.f32 %v1906, 0.0
  %v2059 = vmax.f32 %v1909, 0.0
  %v2060 = vmax.f32 %v1914, 0.0
  %v2061 = vmax.f32 %v1917, 0.0
  %v2062 = vmax.f32 %v1922, 0.0
  %v2063 = vmax.f32 %v1925, 0.0
  %v2064 = vmax.f32 %v1930, 0.0
  %v2065 = vmax.f32 %v1933, 0.0
  %v2066 = vmax.f32 %v1938, 0.0
  %v2067 = vmax.f32 %v1941, 0.0
  %v2068 = vmax.f32 %v1946, 0.0
  %v2069 = vmax.f32 %v1949, 0.0
  %v2070 = vmax.f32 %v1954, 0.0
  %v2071 = vmax.f32 %v1957, 0.0
  %v2072 = vmax.f32 %v1962, 0.0
  %v2073 = vmax.f32 %v1965, 0.0
  %v2074 = vmax.f32 %v1970, 0.0
  %v2075 = vmax.f32 %v1973, 0.0
  %v2076 = vmax.f32 %v1978, 0.0
  %v2077 = vmax.f32 %v1981, 0.0
  %v2078 = vmax.f32 %v1986, 0.0
  %v2079 = vmax.f32 %v1989, 0.0
  %v2080 = vmax.f32 %v1994, 0.0
  %v2081 = vmax.f32 %v1997, 0.0
  %v2082 = vmax.f32 %v2002, 0.0
  %v2083 = vmax.f32 %v2005, 0.0
  %v2084 = vmax.f32 %v2010, 0.0
  %v2085 = vmax.f32 %v2013, 0.0
  %v2086 = vmax.f32 %v2018, 0.0
  %v2087 = vmax.f32 %v2021, 0.0
  %v2088 = vpack.c.bf16 %v2025, %v2024
  %v2089 = vpack.c.bf16 %v2027, %v2026
  %v2090 = vpack.c.bf16 %v2029, %v2028
  %v2091 = vpack.c.bf16 %v2031, %v2030
  %v2092 = vpack.c.bf16 %v2033, %v2032
  %v2093 = vpack.c.bf16 %v2035, %v2034
  %v2094 = vpack.c.bf16 %v2037, %v2036
  %v2095 = vpack.c.bf16 %v2039, %v2038
  %v2096 = vpack.c.bf16 %v2041, %v2040
  %v2097 = vpack.c.bf16 %v2043, %v2042
  %v2098 = vpack.c.bf16 %v2045, %v2044
  %v2099 = vpack.c.bf16 %v2047, %v2046
  %v2100 = vpack.c.bf16 %v2049, %v2048
  %v2101 = vpack.c.bf16 %v2051, %v2050
  %v2102 = vpack.c.bf16 %v2053, %v2052
  %v2103 = vpack.c.bf16 %v2055, %v2054
  %v2104 = vpack.c.bf16 %v2057, %v2056
  %v2105 = vpack.c.bf16 %v2059, %v2058
  %v2106 = vpack.c.bf16 %v2061, %v2060
  %v2107 = vpack.c.bf16 %v2063, %v2062
  %v2108 = vpack.c.bf16 %v2065, %v2064
  %v2109 = vpack.c.bf16 %v2067, %v2066
  %v2110 = vpack.c.bf16 %v2069, %v2068
  %v2111 = vpack.c.bf16 %v2071, %v2070
  %v2112 = vpack.c.bf16 %v2073, %v2072
  %v2113 = vpack.c.bf16 %v2075, %v2074
  %v2114 = vpack.c.bf16 %v2077, %v2076
  %v2115 = vpack.c.bf16 %v2079, %v2078
  %v2116 = vpack.c.bf16 %v2081, %v2080
  %v2117 = vpack.c.bf16 %v2083, %v2082
  %v2118 = vpack.c.bf16 %v2085, %v2084
  %v2119 = vpack.c.bf16 %v2087, %v2086
  %v2120 = vld [vmem:[%s3] sm:$0xf]
  %v2121 = vld [vmem:[%s3 + $0x4] sm:$0xf]
  %v2122 = vld [vmem:[%s3 + $0x8] sm:$0xf]
  %v2123 = vld [vmem:[%s3 + $0xc] sm:$0xf]
  %v2124 = vld [vmem:[%s3 + $0x10] sm:$0xf]
  %v2125 = vld [vmem:[%s3 + $0x14] sm:$0xf]
  %v2126 = vld [vmem:[%s3 + $0x18] sm:$0xf]
  %v2127 = vld [vmem:[%s3 + $0x1c] sm:$0xf]
  %v2128 = vld [vmem:[%s3 + $0x20] sm:$0xf]
  %v2129 = vld [vmem:[%s3 + $0x24] sm:$0xf]
  %v2130 = vld [vmem:[%s3 + $0x28] sm:$0xf]
  %v2131 = vld [vmem:[%s3 + $0x2c] sm:$0xf]
  %v2132 = vld [vmem:[%s3 + $0x30] sm:$0xf]
  %v2133 = vld [vmem:[%s3 + $0x34] sm:$0xf]
  %v2134 = vld [vmem:[%s3 + $0x38] sm:$0xf]
  %v2135 = vld [vmem:[%s3 + $0x3c] sm:$0xf]
  %v2152 = vunpack.c.l.b16 %v2120
  %v2153 = vunpack.c.l.b16 %v2121
  %v2154 = vunpack.c.l.b16 %v2122
  %v2155 = vunpack.c.l.b16 %v2123
  %v2156 = vunpack.c.l.b16 %v2124
  %v2157 = vunpack.c.l.b16 %v2125
  %v2158 = vunpack.c.l.b16 %v2126
  %v2159 = vunpack.c.l.b16 %v2127
  %v2160 = vunpack.c.l.b16 %v2128
  %v2161 = vunpack.c.l.b16 %v2129
  %v2162 = vunpack.c.l.b16 %v2130
  %v2163 = vunpack.c.l.b16 %v2131
  %v2164 = vunpack.c.l.b16 %v2132
  %v2165 = vunpack.c.l.b16 %v2133
  %v2166 = vunpack.c.l.b16 %v2134
  %v2167 = vunpack.c.l.b16 %v2135
  %v2168 = vpack.c.b16 %v2153, %v2152
  %v2169 = vpack.c.b16 %v2155, %v2154
  %v2170 = vpack.c.b16 %v2157, %v2156
  %v2171 = vpack.c.b16 %v2159, %v2158
  %v2172 = vpack.c.b16 %v2161, %v2160
  %v2173 = vpack.c.b16 %v2163, %v2162
  %v2174 = vpack.c.b16 %v2165, %v2164
  %v2175 = vpack.c.b16 %v2167, %v2166
  %2184 = vmatprep.subr.bf16.mxu0 0
  %2185 = vmatpush1.bf16.msra.mxu0 %v2168
  %2186 = vmatprep.subr.bf16.mxu0 0
  %2187 = vmatpush1.bf16.msra.mxu0 %v2169
  %2188 = vmatprep.subr.bf16.mxu0 0
  %2189 = vmatpush1.bf16.msra.mxu0 %v2170
  %2190 = vmatprep.subr.bf16.mxu0 0
  %2191 = vmatpush1.bf16.msra.mxu0 %v2171
  %2192 = vmatprep.subr.bf16.mxu0 0
  %2193 = vmatpush1.bf16.msra.mxu0 %v2172
  %2194 = vmatprep.subr.bf16.mxu0 0
  %2195 = vmatpush1.bf16.msra.mxu0 %v2173
  %2196 = vmatprep.subr.bf16.mxu0 0
  %2197 = vmatpush1.bf16.msra.mxu0 %v2174
  %2198 = vmatprep.subr.bf16.mxu0 0
  %2199 = vmatpush1.bf16.msra.mxu0 %v2175
  %2200 = vmatprep.subr.bf16.mxu0 0
  %2201 = vmatpush1.bf16.msra.mxu0 0
  %2202 = vmatprep.subr.bf16.mxu0 0
  %2203 = vmatpush1.bf16.msra.mxu0 0
  %2204 = vmatprep.subr.bf16.mxu0 0
  %2205 = vmatpush1.bf16.msra.mxu0 0
  %2206 = vmatprep.subr.bf16.mxu0 0
  %2207 = vmatpush1.bf16.msra.mxu0 0
  %2208 = vmatprep.subr.bf16.mxu0 0
  %2209 = vmatpush1.bf16.msra.mxu0 0
  %2210 = vmatprep.subr.bf16.mxu0 0
  %2211 = vmatpush1.bf16.msra.mxu0 0
  %2212 = vmatprep.subr.bf16.mxu0 0
  %2213 = vmatpush1.bf16.msra.mxu0 0
  %2214 = vmatprep.subr.bf16.mxu0 0
  %2215 = vmatpush1.bf16.msra.mxu0 0
  %2216 = vmatprep.mubr.bf16.mxu0 0
  %2217 = vmatmul.mubr.bf16.gmra.mrb[0].mxu0 %v2088
  %v2218 = vpop.f32.mrb[0].mxu0
  %v2219 = vadd.f32 0.0, %v2218
  %v2220 = vpop.f32.mrb[0].mxu0
  %v2221 = vpop.f32.mrb[0].mxu0
  %v2222 = vadd.f32 0.0, %v2221
  %v2223 = vpop.f32.mrb[0].mxu0
  %2224 = vmatprep.mubr.bf16.mxu0 0
  %2225 = vmatmul.mubr.bf16.gmra.mrb[0].mxu0 %v2089
  %v2226 = vpop.f32.mrb[0].mxu0
  %v2227 = vadd.f32 0.0, %v2226
  %v2228 = vpop.f32.mrb[0].mxu0
  %v2229 = vpop.f32.mrb[0].mxu0
  %v2230 = vadd.f32 0.0, %v2229
  %v2231 = vpop.f32.mrb[0].mxu0
  %2232 = vmatprep.mubr.bf16.mxu0 0
  %2233 = vmatmul.mubr.bf16.gmra.mrb[0].mxu0 %v2090
  %v2234 = vpop.f32.mrb[0].mxu0
  %v2235 = vadd.f32 0.0, %v2234
  %v2236 = vpop.f32.mrb[0].mxu0
  %v2237 = vpop.f32.mrb[0].mxu0
  %v2238 = vadd.f32 0.0, %v2237
  %v2239 = vpop.f32.mrb[0].mxu0
  %2240 = vmatprep.mubr.bf16.mxu0 0
  %2241 = vmatmul.mubr.bf16.gmra.mrb[0].mxu0 %v2091
  %v2242 = vpop.f32.mrb[0].mxu0
  %v2243 = vadd.f32 0.0, %v2242
  %v2244 = vpop.f32.mrb[0].mxu0
  %v2245 = vpop.f32.mrb[0].mxu0
  %v2246 = vadd.f32 0.0, %v2245
  %v2247 = vpop.f32.mrb[0].mxu0
  %2248 = vmatprep.mubr.bf16.mxu0 0
  %2249 = vmatmul.mubr.bf16.gmra.mrb[0].mxu0 %v2092
  %v2250 = vpop.f32.mrb[0].mxu0
  %v2251 = vadd.f32 0.0, %v2250
  %v2252 = vpop.f32.mrb[0].mxu0
  %v2253 = vpop.f32.mrb[0].mxu0
  %v2254 = vadd.f32 0.0, %v2253
  %v2255 = vpop.f32.mrb[0].mxu0
  %2256 = vmatprep.mubr.bf16.mxu0 0
  %2257 = vmatmul.mubr.bf16.gmra.mrb[0].mxu0 %v2093
  %v2258 = vpop.f32.mrb[0].mxu0
  %v2259 = vadd.f32 0.0, %v2258
  %v2260 = vpop.f32.mrb[0].mxu0
  %v2261 = vpop.f32.mrb[0].mxu0
  %v2262 = vadd.f32 0.0, %v2261
  %v2263 = vpop.f32.mrb[0].mxu0
  %2264 = vmatprep.mubr.bf16.mxu0 0
  %2265 = vmatmul.mubr.bf16.gmra.mrb[0].mxu0 %v2094
  %v2266 = vpop.f32.mrb[0].mxu0
  %v2267 = vadd.f32 0.0, %v2266
  %v2268 = vpop.f32.mrb[0].mxu0
  %v2269 = vpop.f32.mrb[0].mxu0
  %v2270 = vadd.f32 0.0, %v2269
  %v2271 = vpop.f32.mrb[0].mxu0
  %2272 = vmatprep.mubr.bf16.mxu0 0
  %2273 = vmatmul.mubr.bf16.gmra.mrb[0].mxu0 %v2095
  %v2274 = vpop.f32.mrb[0].mxu0
  %v2275 = vadd.f32 0.0, %v2274
  %v2276 = vpop.f32.mrb[0].mxu0
  %v2277 = vpop.f32.mrb[0].mxu0
  %v2278 = vadd.f32 0.0, %v2277
  %v2279 = vpop.f32.mrb[0].mxu0
  %2280 = vmatprep.mubr.bf16.mxu0 0
  %2281 = vmatmul.mubr.bf16.gmra.mrb[0].mxu0 %v2096
  %v2282 = vpop.f32.mrb[0].mxu0
  %v2283 = vadd.f32 0.0, %v2282
  %v2284 = vpop.f32.mrb[0].mxu0
  %v2285 = vpop.f32.mrb[0].mxu0
  %v2286 = vadd.f32 0.0, %v2285
  %v2287 = vpop.f32.mrb[0].mxu0
  %2288 = vmatprep.mubr.bf16.mxu0 0
  %2289 = vmatmul.mubr.bf16.gmra.mrb[0].mxu0 %v2097
  %v2290 = vpop.f32.mrb[0].mxu0
  %v2291 = vadd.f32 0.0, %v2290
  %v2292 = vpop.f32.mrb[0].mxu0
  %v2293 = vpop.f32.mrb[0].mxu0
  %v2294 = vadd.f32 0.0, %v2293
  %v2295 = vpop.f32.mrb[0].mxu0
  %2296 = vmatprep.mubr.bf16.mxu0 0
  %2297 = vmatmul.mubr.bf16.gmra.mrb[0].mxu0 %v2098
  %v2298 = vpop.f32.mrb[0].mxu0
  %v2299 = vadd.f32 0.0, %v2298
  %v2300 = vpop.f32.mrb[0].mxu0
  %v2301 = vpop.f32.mrb[0].mxu0
  %v2302 = vadd.f32 0.0, %v2301
  %v2303 = vpop.f32.mrb[0].mxu0
  %2304 = vmatprep.mubr.bf16.mxu0 0
  %2305 = vmatmul.mubr.bf16.gmra.mrb[0].mxu0 %v2099
  %v2306 = vpop.f32.mrb[0].mxu0
  %v2307 = vadd.f32 0.0, %v2306
  %v2308 = vpop.f32.mrb[0].mxu0
  %v2309 = vpop.f32.mrb[0].mxu0
  %v2310 = vadd.f32 0.0, %v2309
  %v2311 = vpop.f32.mrb[0].mxu0
  %2312 = vmatprep.mubr.bf16.mxu0 0
  %2313 = vmatmul.mubr.bf16.gmra.mrb[0].mxu0 %v2100
  %v2314 = vpop.f32.mrb[0].mxu0
  %v2315 = vadd.f32 0.0, %v2314
  %v2316 = vpop.f32.mrb[0].mxu0
  %v2317 = vpop.f32.mrb[0].mxu0
  %v2318 = vadd.f32 0.0, %v2317
  %v2319 = vpop.f32.mrb[0].mxu0
  %2320 = vmatprep.mubr.bf16.mxu0 0
  %2321 = vmatmul.mubr.bf16.gmra.mrb[0].mxu0 %v2101
  %v2322 = vpop.f32.mrb[0].mxu0
  %v2323 = vadd.f32 0.0, %v2322
  %v2324 = vpop.f32.mrb[0].mxu0
  %v2325 = vpop.f32.mrb[0].mxu0
  %v2326 = vadd.f32 0.0, %v2325
  %v2327 = vpop.f32.mrb[0].mxu0
  %2328 = vmatprep.mubr.bf16.mxu0 0
  %2329 = vmatmul.mubr.bf16.gmra.mrb[0].mxu0 %v2102
  %v2330 = vpop.f32.mrb[0].mxu0
  %v2331 = vadd.f32 0.0, %v2330
  %v2332 = vpop.f32.mrb[0].mxu0
  %v2333 = vpop.f32.mrb[0].mxu0
  %v2334 = vadd.f32 0.0, %v2333
  %v2335 = vpop.f32.mrb[0].mxu0
  %2336 = vmatprep.mubr.bf16.mxu0 0
  %2337 = vmatmul.mubr.bf16.gmra.mrb[0].mxu0 %v2103
  %v2338 = vpop.f32.mrb[0].mxu0
  %v2339 = vadd.f32 0.0, %v2338
  %v2340 = vpop.f32.mrb[0].mxu0
  %v2341 = vpop.f32.mrb[0].mxu0
  %v2342 = vadd.f32 0.0, %v2341
  %v2343 = vpop.f32.mrb[0].mxu0
  %2344 = vmatprep.mubr.bf16.mxu0 0
  %2345 = vmatmul.mubr.bf16.gmra.mrb[0].mxu0 %v2104
  %v2346 = vpop.f32.mrb[0].mxu0
  %v2347 = vadd.f32 0.0, %v2346
  %v2348 = vpop.f32.mrb[0].mxu0
  %v2349 = vpop.f32.mrb[0].mxu0
  %v2350 = vadd.f32 0.0, %v2349
  %v2351 = vpop.f32.mrb[0].mxu0
  %2352 = vmatprep.mubr.bf16.mxu0 0
  %2353 = vmatmul.mubr.bf16.gmra.mrb[0].mxu0 %v2105
  %v2354 = vpop.f32.mrb[0].mxu0
  %v2355 = vadd.f32 0.0, %v2354
  %v2356 = vpop.f32.mrb[0].mxu0
  %v2357 = vpop.f32.mrb[0].mxu0
  %v2358 = vadd.f32 0.0, %v2357
  %v2359 = vpop.f32.mrb[0].mxu0
  %2360 = vmatprep.mubr.bf16.mxu0 0
  %2361 = vmatmul.mubr.bf16.gmra.mrb[0].mxu0 %v2106
  %v2362 = vpop.f32.mrb[0].mxu0
  %v2363 = vadd.f32 0.0, %v2362
  %v2364 = vpop.f32.mrb[0].mxu0
  %v2365 = vpop.f32.mrb[0].mxu0
  %v2366 = vadd.f32 0.0, %v2365
  %v2367 = vpop.f32.mrb[0].mxu0
  %2368 = vmatprep.mubr.bf16.mxu0 0
  %2369 = vmatmul.mubr.bf16.gmra.mrb[0].mxu0 %v2107
  %v2370 = vpop.f32.mrb[0].mxu0
  %v2371 = vadd.f32 0.0, %v2370
  %v2372 = vpop.f32.mrb[0].mxu0
  %v2373 = vpop.f32.mrb[0].mxu0
  %v2374 = vadd.f32 0.0, %v2373
  %v2375 = vpop.f32.mrb[0].mxu0
  %2376 = vmatprep.mubr.bf16.mxu0 0
  %2377 = vmatmul.mubr.bf16.gmra.mrb[0].mxu0 %v2108
  %v2378 = vpop.f32.mrb[0].mxu0
  %v2379 = vadd.f32 0.0, %v2378
  %v2380 = vpop.f32.mrb[0].mxu0
  %v2381 = vpop.f32.mrb[0].mxu0
  %v2382 = vadd.f32 0.0, %v2381
  %v2383 = vpop.f32.mrb[0].mxu0
  %2384 = vmatprep.mubr.bf16.mxu0 0
  %2385 = vmatmul.mubr.bf16.gmra.mrb[0].mxu0 %v2109
  %v2386 = vpop.f32.mrb[0].mxu0
  %v2387 = vadd.f32 0.0, %v2386
  %v2388 = vpop.f32.mrb[0].mxu0
  %v2389 = vpop.f32.mrb[0].mxu0
  %v2390 = vadd.f32 0.0, %v2389
  %v2391 = vpop.f32.mrb[0].mxu0
  %2392 = vmatprep.mubr.bf16.mxu0 0
  %2393 = vmatmul.mubr.bf16.gmra.mrb[0].mxu0 %v2110
  %v2394 = vpop.f32.mrb[0].mxu0
  %v2395 = vadd.f32 0.0, %v2394
  %v2396 = vpop.f32.mrb[0].mxu0
  %v2397 = vpop.f32.mrb[0].mxu0
  %v2398 = vadd.f32 0.0, %v2397
  %v2399 = vpop.f32.mrb[0].mxu0
  %2400 = vmatprep.mubr.bf16.mxu0 0
  %2401 = vmatmul.mubr.bf16.gmra.mrb[0].mxu0 %v2111
  %v2402 = vpop.f32.mrb[0].mxu0
  %v2403 = vadd.f32 0.0, %v2402
  %v2404 = vpop.f32.mrb[0].mxu0
  %v2405 = vpop.f32.mrb[0].mxu0
  %v2406 = vadd.f32 0.0, %v2405
  %v2407 = vpop.f32.mrb[0].mxu0
  %2408 = vmatprep.mubr.bf16.mxu0 0
  %2409 = vmatmul.mubr.bf16.gmra.mrb[0].mxu0 %v2112
  %v2410 = vpop.f32.mrb[0].mxu0
  %v2411 = vadd.f32 0.0, %v2410
  %v2412 = vpop.f32.mrb[0].mxu0
  %v2413 = vpop.f32.mrb[0].mxu0
  %v2414 = vadd.f32 0.0, %v2413
  %v2415 = vpop.f32.mrb[0].mxu0
  %2416 = vmatprep.mubr.bf16.mxu0 0
  %2417 = vmatmul.mubr.bf16.gmra.mrb[0].mxu0 %v2113
  %v2418 = vpop.f32.mrb[0].mxu0
  %v2419 = vadd.f32 0.0, %v2418
  %v2420 = vpop.f32.mrb[0].mxu0
  %v2421 = vpop.f32.mrb[0].mxu0
  %v2422 = vadd.f32 0.0, %v2421
  %v2423 = vpop.f32.mrb[0].mxu0
  %2424 = vmatprep.mubr.bf16.mxu0 0
  %2425 = vmatmul.mubr.bf16.gmra.mrb[0].mxu0 %v2114
  %v2426 = vpop.f32.mrb[0].mxu0
  %v2427 = vadd.f32 0.0, %v2426
  %v2428 = vpop.f32.mrb[0].mxu0
  %v2429 = vpop.f32.mrb[0].mxu0
  %v2430 = vadd.f32 0.0, %v2429
  %v2431 = vpop.f32.mrb[0].mxu0
  %2432 = vmatprep.mubr.bf16.mxu0 0
  %2433 = vmatmul.mubr.bf16.gmra.mrb[0].mxu0 %v2115
  %v2434 = vpop.f32.mrb[0].mxu0
  %v2435 = vadd.f32 0.0, %v2434
  %v2436 = vpop.f32.mrb[0].mxu0
  %v2437 = vpop.f32.mrb[0].mxu0
  %v2438 = vadd.f32 0.0, %v2437
  %v2439 = vpop.f32.mrb[0].mxu0
  %2440 = vmatprep.mubr.bf16.mxu0 0
  %2441 = vmatmul.mubr.bf16.gmra.mrb[0].mxu0 %v2116
  %v2442 = vpop.f32.mrb[0].mxu0
  %v2443 = vadd.f32 0.0, %v2442
  %v2444 = vpop.f32.mrb[0].mxu0
  %v2445 = vpop.f32.mrb[0].mxu0
  %v2446 = vadd.f32 0.0, %v2445
  %v2447 = vpop.f32.mrb[0].mxu0
  %2448 = vmatprep.mubr.bf16.mxu0 0
  %2449 = vmatmul.mubr.bf16.gmra.mrb[0].mxu0 %v2117
  %v2450 = vpop.f32.mrb[0].mxu0
  %v2451 = vadd.f32 0.0, %v2450
  %v2452 = vpop.f32.mrb[0].mxu0
  %v2453 = vpop.f32.mrb[0].mxu0
  %v2454 = vadd.f32 0.0, %v2453
  %v2455 = vpop.f32.mrb[0].mxu0
  %2456 = vmatprep.mubr.bf16.mxu0 0
  %2457 = vmatmul.mubr.bf16.gmra.mrb[0].mxu0 %v2118
  %v2458 = vpop.f32.mrb[0].mxu0
  %v2459 = vadd.f32 0.0, %v2458
  %v2460 = vpop.f32.mrb[0].mxu0
  %v2461 = vpop.f32.mrb[0].mxu0
  %v2462 = vadd.f32 0.0, %v2461
  %v2463 = vpop.f32.mrb[0].mxu0
  %2464 = vmatprep.mubr.bf16.mxu0 0
  %2465 = vmatmul.mubr.bf16.gmra.mrb[0].mxu0 %v2119
  %v2466 = vpop.f32.mrb[0].mxu0
  %v2467 = vadd.f32 0.0, %v2466
  %v2468 = vpop.f32.mrb[0].mxu0
  %v2469 = vpop.f32.mrb[0].mxu0
  %v2470 = vadd.f32 0.0, %v2469
  %v2471 = vpop.f32.mrb[0].mxu0
  %2472 = vdwg.mxu0
  %v2473 = vpack.c.bf16 %v2222, %v2219
  %v2474 = vpack.c.bf16 %v2230, %v2227
  %v2475 = vpack.c.bf16 %v2238, %v2235
  %v2476 = vpack.c.bf16 %v2246, %v2243
  %v2477 = vpack.c.bf16 %v2254, %v2251
  %v2478 = vpack.c.bf16 %v2262, %v2259
  %v2479 = vpack.c.bf16 %v2270, %v2267
  %v2480 = vpack.c.bf16 %v2278, %v2275
  %v2481 = vpack.c.bf16 %v2286, %v2283
  %v2482 = vpack.c.bf16 %v2294, %v2291
  %v2483 = vpack.c.bf16 %v2302, %v2299
  %v2484 = vpack.c.bf16 %v2310, %v2307
  %v2485 = vpack.c.bf16 %v2318, %v2315
  %v2486 = vpack.c.bf16 %v2326, %v2323
  %v2487 = vpack.c.bf16 %v2334, %v2331
  %v2488 = vpack.c.bf16 %v2342, %v2339
  %v2489 = vpack.c.bf16 %v2350, %v2347
  %v2490 = vpack.c.bf16 %v2358, %v2355
  %v2491 = vpack.c.bf16 %v2366, %v2363
  %v2492 = vpack.c.bf16 %v2374, %v2371
  %v2493 = vpack.c.bf16 %v2382, %v2379
  %v2494 = vpack.c.bf16 %v2390, %v2387
  %v2495 = vpack.c.bf16 %v2398, %v2395
  %v2496 = vpack.c.bf16 %v2406, %v2403
  %v2497 = vpack.c.bf16 %v2414, %v2411
  %v2498 = vpack.c.bf16 %v2422, %v2419
  %v2499 = vpack.c.bf16 %v2430, %v2427
  %v2500 = vpack.c.bf16 %v2438, %v2435
  %v2501 = vpack.c.bf16 %v2446, %v2443
  %v2502 = vpack.c.bf16 %v2454, %v2451
  %v2503 = vpack.c.bf16 %v2462, %v2459
  %v2504 = vpack.c.bf16 %v2470, %v2467
  %v2505 = vld [vmem:[%s6] sm:$0x1]
  %v2507 = vlaneseq
  %v2508 = vshrl.u32 %v2507, 7
  %v2509 = vsub.s32 0, %v2508
  %v2510 = vrot.slane %v2505, %v2509
  %2512 = vmatprep.subr.bf16.mxu0 0
  %2513 = vmatpush1.bf16.msra.mxu0 %v2473
  %2514 = vmatprep.subr.bf16.mxu0 0
  %2515 = vmatpush1.bf16.msra.mxu0 %v2474
  %2516 = vmatprep.subr.bf16.mxu0 0
  %2517 = vmatpush1.bf16.msra.mxu0 %v2475
  %2518 = vmatprep.subr.bf16.mxu0 0
  %2519 = vmatpush1.bf16.msra.mxu0 %v2476
  %2520 = vmatprep.subr.bf16.mxu0 0
  %2521 = vmatpush1.bf16.msra.mxu0 %v2477
  %2522 = vmatprep.subr.bf16.mxu0 0
  %2523 = vmatpush1.bf16.msra.mxu0 %v2478
  %2524 = vmatprep.subr.bf16.mxu0 0
  %2525 = vmatpush1.bf16.msra.mxu0 %v2479
  %2526 = vmatprep.subr.bf16.mxu0 0
  %2527 = vmatpush1.bf16.msra.mxu0 %v2480
  %2528 = vmatprep.subr.bf16.mxu0 0
  %2529 = vmatpush1.bf16.msra.mxu0 %v2481
  %2530 = vmatprep.subr.bf16.mxu0 0
  %2531 = vmatpush1.bf16.msra.mxu0 %v2482
  %2532 = vmatprep.subr.bf16.mxu0 0
  %2533 = vmatpush1.bf16.msra.mxu0 %v2483
  %2534 = vmatprep.subr.bf16.mxu0 0
  %2535 = vmatpush1.bf16.msra.mxu0 %v2484
  %2536 = vmatprep.subr.bf16.mxu0 0
  %2537 = vmatpush1.bf16.msra.mxu0 %v2485
  %2538 = vmatprep.subr.bf16.mxu0 0
  %2539 = vmatpush1.bf16.msra.mxu0 %v2486
  %2540 = vmatprep.subr.bf16.mxu0 0
  %2541 = vmatpush1.bf16.msra.mxu0 %v2487
  %2542 = vmatprep.subr.bf16.mxu0 0
  %2543 = vmatpush1.bf16.msra.mxu0 %v2488
  %2544 = vmatprep.mubr.bf16.mxu0 %v1191
  %2545 = vmatmul.mubr.bf16.gmra.mrb[0].mxu0 %v1190
  %v2546 = vpop.f32.mrb[0].mxu0
  %v2547 = vadd.f32 %v2510, %v2546
  %v2548 = vpop.f32.mrb[0].mxu0
  %v2549 = vpop.f32.mrb[0].mxu0
  %v2550 = vadd.f32 %v2510, %v2549
  %v2551 = vpop.f32.mrb[0].mxu0
  %2552 = vmatprep.mubr.bf16.mxu0 %v1195
  %2553 = vmatmul.mubr.bf16.gmra.mrb[0].mxu0 %v1194
  %v2554 = vpop.f32.mrb[0].mxu0
  %v2555 = vadd.f32 %v2510, %v2554
  %v2556 = vpop.f32.mrb[0].mxu0
  %v2557 = vpop.f32.mrb[0].mxu0
  %v2558 = vadd.f32 %v2510, %v2557
  %v2559 = vpop.f32.mrb[0].mxu0
  %2560 = vmatprep.mubr.bf16.mxu0 %v1199
  %2561 = vmatmul.mubr.bf16.gmra.mrb[0].mxu0 %v1198
  %v2562 = vpop.f32.mrb[0].mxu0
  %v2563 = vadd.f32 %v2510, %v2562
  %v2564 = vpop.f32.mrb[0].mxu0
  %v2565 = vpop.f32.mrb[0].mxu0
  %v2566 = vadd.f32 %v2510, %v2565
  %v2567 = vpop.f32.mrb[0].mxu0
  %2568 = vmatprep.mubr.bf16.mxu0 %v1203
  %2569 = vmatmul.mubr.bf16.gmra.mrb[0].mxu0 %v1202
  %v2570 = vpop.f32.mrb[0].mxu0
  %v2571 = vadd.f32 %v2510, %v2570
  %v2572 = vpop.f32.mrb[0].mxu0
  %v2573 = vpop.f32.mrb[0].mxu0
  %v2574 = vadd.f32 %v2510, %v2573
  %v2575 = vpop.f32.mrb[0].mxu0
  %2576 = vmatprep.mubr.bf16.mxu0 %v1207
  %2577 = vmatmul.mubr.bf16.gmra.mrb[0].mxu0 %v1206
  %v2578 = vpop.f32.mrb[0].mxu0
  %v2579 = vadd.f32 %v2510, %v2578
  %v2580 = vpop.f32.mrb[0].mxu0
  %v2581 = vpop.f32.mrb[0].mxu0
  %v2582 = vadd.f32 %v2510, %v2581
  %v2583 = vpop.f32.mrb[0].mxu0
  %2584 = vmatprep.mubr.bf16.mxu0 %v1211
  %2585 = vmatmul.mubr.bf16.gmra.mrb[0].mxu0 %v1210
  %v2586 = vpop.f32.mrb[0].mxu0
  %v2587 = vadd.f32 %v2510, %v2586
  %v2588 = vpop.f32.mrb[0].mxu0
  %v2589 = vpop.f32.mrb[0].mxu0
  %v2590 = vadd.f32 %v2510, %v2589
  %v2591 = vpop.f32.mrb[0].mxu0
  %2592 = vmatprep.mubr.bf16.mxu0 %v1215
  %2593 = vmatmul.mubr.bf16.gmra.mrb[0].mxu0 %v1214
  %v2594 = vpop.f32.mrb[0].mxu0
  %v2595 = vadd.f32 %v2510, %v2594
  %v2596 = vpop.f32.mrb[0].mxu0
  %v2597 = vpop.f32.mrb[0].mxu0
  %v2598 = vadd.f32 %v2510, %v2597
  %v2599 = vpop.f32.mrb[0].mxu0
  %2600 = vmatprep.mubr.bf16.mxu0 %v1219
  %2601 = vmatmul.mubr.bf16.gmra.mrb[0].mxu0 %v1218
  %v2602 = vpop.f32.mrb[0].mxu0
  %v2603 = vadd.f32 %v2510, %v2602
  %v2604 = vpop.f32.mrb[0].mxu0
  %v2605 = vpop.f32.mrb[0].mxu0
  %v2606 = vadd.f32 %v2510, %v2605
  %v2607 = vpop.f32.mrb[0].mxu0
  %2608 = vmatprep.mubr.bf16.mxu0 %v1223
  %2609 = vmatmul.mubr.bf16.gmra.mrb[0].mxu0 %v1222
  %v2610 = vpop.f32.mrb[0].mxu0
  %v2611 = vadd.f32 %v2510, %v2610
  %v2612 = vpop.f32.mrb[0].mxu0
  %v2613 = vpop.f32.mrb[0].mxu0
  %v2614 = vadd.f32 %v2510, %v2613
  %v2615 = vpop.f32.mrb[0].mxu0
  %2616 = vmatprep.mubr.bf16.mxu0 %v1227
  %2617 = vmatmul.mubr.bf16.gmra.mrb[0].mxu0 %v1226
  %v2618 = vpop.f32.mrb[0].mxu0
  %v2619 = vadd.f32 %v2510, %v2618
  %v2620 = vpop.f32.mrb[0].mxu0
  %v2621 = vpop.f32.mrb[0].mxu0
  %v2622 = vadd.f32 %v2510, %v2621
  %v2623 = vpop.f32.mrb[0].mxu0
  %2624 = vmatprep.mubr.bf16.mxu0 %v1231
  %2625 = vmatmul.mubr.bf16.gmra.mrb[0].mxu0 %v1230
  %v2626 = vpop.f32.mrb[0].mxu0
  %v2627 = vadd.f32 %v2510, %v2626
  %v2628 = vpop.f32.mrb[0].mxu0
  %v2629 = vpop.f32.mrb[0].mxu0
  %v2630 = vadd.f32 %v2510, %v2629
  %v2631 = vpop.f32.mrb[0].mxu0
  %2632 = vmatprep.mubr.bf16.mxu0 %v1235
  %2633 = vmatmul.mubr.bf16.gmra.mrb[0].mxu0 %v1234
  %v2634 = vpop.f32.mrb[0].mxu0
  %v2635 = vadd.f32 %v2510, %v2634
  %v2636 = vpop.f32.mrb[0].mxu0
  %v2637 = vpop.f32.mrb[0].mxu0
  %v2638 = vadd.f32 %v2510, %v2637
  %v2639 = vpop.f32.mrb[0].mxu0
  %2640 = vmatprep.mubr.bf16.mxu0 %v1239
  %2641 = vmatmul.mubr.bf16.gmra.mrb[0].mxu0 %v1238
  %v2642 = vpop.f32.mrb[0].mxu0
  %v2643 = vadd.f32 %v2510, %v2642
  %v2644 = vpop.f32.mrb[0].mxu0
  %v2645 = vpop.f32.mrb[0].mxu0
  %v2646 = vadd.f32 %v2510, %v2645
  %v2647 = vpop.f32.mrb[0].mxu0
  %2648 = vmatprep.mubr.bf16.mxu0 %v1243
  %2649 = vmatmul.mubr.bf16.gmra.mrb[0].mxu0 %v1242
  %v2650 = vpop.f32.mrb[0].mxu0
  %v2651 = vadd.f32 %v2510, %v2650
  %v2652 = vpop.f32.mrb[0].mxu0
  %v2653 = vpop.f32.mrb[0].mxu0
  %v2654 = vadd.f32 %v2510, %v2653
  %v2655 = vpop.f32.mrb[0].mxu0
  %2656 = vmatprep.mubr.bf16.mxu0 %v1247
  %2657 = vmatmul.mubr.bf16.gmra.mrb[0].mxu0 %v1246
  %v2658 = vpop.f32.mrb[0].mxu0
  %v2659 = vadd.f32 %v2510, %v2658
  %v2660 = vpop.f32.mrb[0].mxu0
  %v2661 = vpop.f32.mrb[0].mxu0
  %v2662 = vadd.f32 %v2510, %v2661
  %v2663 = vpop.f32.mrb[0].mxu0
  %2664 = vmatprep.mubr.bf16.mxu0 %v1251
  %2665 = vmatmul.mubr.bf16.gmra.mrb[0].mxu0 %v1250
  %v2666 = vpop.f32.mrb[0].mxu0
  %v2667 = vadd.f32 %v2510, %v2666
  %v2668 = vpop.f32.mrb[0].mxu0
  %v2669 = vpop.f32.mrb[0].mxu0
  %v2670 = vadd.f32 %v2510, %v2669
  %v2671 = vpop.f32.mrb[0].mxu0
  %2672 = vmatprep.mubr.bf16.mxu0 %v1255
  %2673 = vmatmul.mubr.bf16.gmra.mrb[0].mxu0 %v1254
  %v2674 = vpop.f32.mrb[0].mxu0
  %v2675 = vadd.f32 %v2510, %v2674
  %v2676 = vpop.f32.mrb[0].mxu0
  %v2677 = vpop.f32.mrb[0].mxu0
  %v2678 = vadd.f32 %v2510, %v2677
  %v2679 = vpop.f32.mrb[0].mxu0
  %2680 = vmatprep.mubr.bf16.mxu0 %v1259
  %2681 = vmatmul.mubr.bf16.gmra.mrb[0].mxu0 %v1258
  %v2682 = vpop.f32.mrb[0].mxu0
  %v2683 = vadd.f32 %v2510, %v2682
  %v2684 = vpop.f32.mrb[0].mxu0
  %v2685 = vpop.f32.mrb[0].mxu0
  %v2686 = vadd.f32 %v2510, %v2685
  %v2687 = vpop.f32.mrb[0].mxu0
  %2688 = vmatprep.mubr.bf16.mxu0 %v1263
  %2689 = vmatmul.mubr.bf16.gmra.mrb[0].mxu0 %v1262
  %v2690 = vpop.f32.mrb[0].mxu0
  %v2691 = vadd.f32 %v2510, %v2690
  %v2692 = vpop.f32.mrb[0].mxu0
  %v2693 = vpop.f32.mrb[0].mxu0
  %v2694 = vadd.f32 %v2510, %v2693
  %v2695 = vpop.f32.mrb[0].mxu0
  %2696 = vmatprep.mubr.bf16.mxu0 %v1267
  %2697 = vmatmul.mubr.bf16.gmra.mrb[0].mxu0 %v1266
  %v2698 = vpop.f32.mrb[0].mxu0
  %v2699 = vadd.f32 %v2510, %v2698
  %v2700 = vpop.f32.mrb[0].mxu0
  %v2701 = vpop.f32.mrb[0].mxu0
  %v2702 = vadd.f32 %v2510, %v2701
  %v2703 = vpop.f32.mrb[0].mxu0
  %2704 = vmatprep.mubr.bf16.mxu0 %v1271
  %2705 = vmatmul.mubr.bf16.gmra.mrb[0].mxu0 %v1270
  %v2706 = vpop.f32.mrb[0].mxu0
  %v2707 = vadd.f32 %v2510, %v2706
  %v2708 = vpop.f32.mrb[0].mxu0
  %v2709 = vpop.f32.mrb[0].mxu0
  %v2710 = vadd.f32 %v2510, %v2709
  %v2711 = vpop.f32.mrb[0].mxu0
  %2712 = vmatprep.mubr.bf16.mxu0 %v1275
  %2713 = vmatmul.mubr.bf16.gmra.mrb[0].mxu0 %v1274
  %v2714 = vpop.f32.mrb[0].mxu0
  %v2715 = vadd.f32 %v2510, %v2714
  %v2716 = vpop.f32.mrb[0].mxu0
  %v2717 = vpop.f32.mrb[0].mxu0
  %v2718 = vadd.f32 %v2510, %v2717
  %v2719 = vpop.f32.mrb[0].mxu0
  %2720 = vmatprep.mubr.bf16.mxu0 %v1279
  %2721 = vmatmul.mubr.bf16.gmra.mrb[0].mxu0 %v1278
  %v2722 = vpop.f32.mrb[0].mxu0
  %v2723 = vadd.f32 %v2510, %v2722
  %v2724 = vpop.f32.mrb[0].mxu0
  %v2725 = vpop.f32.mrb[0].mxu0
  %v2726 = vadd.f32 %v2510, %v2725
  %v2727 = vpop.f32.mrb[0].mxu0
  %2728 = vmatprep.mubr.bf16.mxu0 %v1283
  %2729 = vmatmul.mubr.bf16.gmra.mrb[0].mxu0 %v1282
  %v2730 = vpop.f32.mrb[0].mxu0
  %v2731 = vadd.f32 %v2510, %v2730
  %v2732 = vpop.f32.mrb[0].mxu0
  %v2733 = vpop.f32.mrb[0].mxu0
  %v2734 = vadd.f32 %v2510, %v2733
  %v2735 = vpop.f32.mrb[0].mxu0
  %2736 = vmatprep.mubr.bf16.mxu0 %v1287
  %2737 = vmatmul.mubr.bf16.gmra.mrb[0].mxu0 %v1286
  %v2738 = vpop.f32.mrb[0].mxu0
  %v2739 = vadd.f32 %v2510, %v2738
  %v2740 = vpop.f32.mrb[0].mxu0
  %v2741 = vpop.f32.mrb[0].mxu0
  %v2742 = vadd.f32 %v2510, %v2741
  %v2743 = vpop.f32.mrb[0].mxu0
  %2744 = vmatprep.mubr.bf16.mxu0 %v1291
  %2745 = vmatmul.mubr.bf16.gmra.mrb[0].mxu0 %v1290
  %v2746 = vpop.f32.mrb[0].mxu0
  %v2747 = vadd.f32 %v2510, %v2746
  %v2748 = vpop.f32.mrb[0].mxu0
  %v2749 = vpop.f32.mrb[0].mxu0
  %v2750 = vadd.f32 %v2510, %v2749
  %v2751 = vpop.f32.mrb[0].mxu0
  %2752 = vmatprep.mubr.bf16.mxu0 %v1295
  %2753 = vmatmul.mubr.bf16.gmra.mrb[0].mxu0 %v1294
  %v2754 = vpop.f32.mrb[0].mxu0
  %v2755 = vadd.f32 %v2510, %v2754
  %v2756 = vpop.f32.mrb[0].mxu0
  %v2757 = vpop.f32.mrb[0].mxu0
  %v2758 = vadd.f32 %v2510, %v2757
  %v2759 = vpop.f32.mrb[0].mxu0
  %2760 = vmatprep.mubr.bf16.mxu0 %v1299
  %2761 = vmatmul.mubr.bf16.gmra.mrb[0].mxu0 %v1298
  %v2762 = vpop.f32.mrb[0].mxu0
  %v2763 = vadd.f32 %v2510, %v2762
  %v2764 = vpop.f32.mrb[0].mxu0
  %v2765 = vpop.f32.mrb[0].mxu0
  %v2766 = vadd.f32 %v2510, %v2765
  %v2767 = vpop.f32.mrb[0].mxu0
  %2768 = vmatprep.mubr.bf16.mxu0 %v1303
  %2769 = vmatmul.mubr.bf16.gmra.mrb[0].mxu0 %v1302
  %v2770 = vpop.f32.mrb[0].mxu0
  %v2771 = vadd.f32 %v2510, %v2770
  %v2772 = vpop.f32.mrb[0].mxu0
  %v2773 = vpop.f32.mrb[0].mxu0
  %v2774 = vadd.f32 %v2510, %v2773
  %v2775 = vpop.f32.mrb[0].mxu0
  %2776 = vmatprep.mubr.bf16.mxu0 %v1307
  %2777 = vmatmul.mubr.bf16.gmra.mrb[0].mxu0 %v1306
  %v2778 = vpop.f32.mrb[0].mxu0
  %v2779 = vadd.f32 %v2510, %v2778
  %v2780 = vpop.f32.mrb[0].mxu0
  %v2781 = vpop.f32.mrb[0].mxu0
  %v2782 = vadd.f32 %v2510, %v2781
  %v2783 = vpop.f32.mrb[0].mxu0
  %2784 = vmatprep.mubr.bf16.mxu0 %v1311
  %2785 = vmatmul.mubr.bf16.gmra.mrb[0].mxu0 %v1310
  %v2786 = vpop.f32.mrb[0].mxu0
  %v2787 = vadd.f32 %v2510, %v2786
  %v2788 = vpop.f32.mrb[0].mxu0
  %v2789 = vpop.f32.mrb[0].mxu0
  %v2790 = vadd.f32 %v2510, %v2789
  %v2791 = vpop.f32.mrb[0].mxu0
  %2792 = vmatprep.mubr.bf16.mxu0 %v1315
  %2793 = vmatmul.mubr.bf16.gmra.mrb[0].mxu0 %v1314
  %v2794 = vpop.f32.mrb[0].mxu0
  %v2795 = vadd.f32 %v2510, %v2794
  %v2796 = vpop.f32.mrb[0].mxu0
  %v2797 = vpop.f32.mrb[0].mxu0
  %v2798 = vadd.f32 %v2510, %v2797
  %v2799 = vpop.f32.mrb[0].mxu0
  %2800 = vdwg.mxu0
  %2801 = vmatprep.subr.bf16.mxu0 0
  %2802 = vmatpush1.bf16.msra.mxu0 %v2489
  %2803 = vmatprep.subr.bf16.mxu0 0
  %2804 = vmatpush1.bf16.msra.mxu0 %v2490
  %2805 = vmatprep.subr.bf16.mxu0 0
  %2806 = vmatpush1.bf16.msra.mxu0 %v2491
  %2807 = vmatprep.subr.bf16.mxu0 0
  %2808 = vmatpush1.bf16.msra.mxu0 %v2492
  %2809 = vmatprep.subr.bf16.mxu0 0
  %2810 = vmatpush1.bf16.msra.mxu0 %v2493
  %2811 = vmatprep.subr.bf16.mxu0 0
  %2812 = vmatpush1.bf16.msra.mxu0 %v2494
  %2813 = vmatprep.subr.bf16.mxu0 0
  %2814 = vmatpush1.bf16.msra.mxu0 %v2495
  %2815 = vmatprep.subr.bf16.mxu0 0
  %2816 = vmatpush1.bf16.msra.mxu0 %v2496
  %2817 = vmatprep.subr.bf16.mxu0 0
  %2818 = vmatpush1.bf16.msra.mxu0 %v2497
  %2819 = vmatprep.subr.bf16.mxu0 0
  %2820 = vmatpush1.bf16.msra.mxu0 %v2498
  %2821 = vmatprep.subr.bf16.mxu0 0
  %2822 = vmatpush1.bf16.msra.mxu0 %v2499
  %2823 = vmatprep.subr.bf16.mxu0 0
  %2824 = vmatpush1.bf16.msra.mxu0 %v2500
  %2825 = vmatprep.subr.bf16.mxu0 0
  %2826 = vmatpush1.bf16.msra.mxu0 %v2501
  %2827 = vmatprep.subr.bf16.mxu0 0
  %2828 = vmatpush1.bf16.msra.mxu0 %v2502
  %2829 = vmatprep.subr.bf16.mxu0 0
  %2830 = vmatpush1.bf16.msra.mxu0 %v2503
  %2831 = vmatprep.subr.bf16.mxu0 0
  %2832 = vmatpush1.bf16.msra.mxu0 %v2504
  %2833 = vmatprep.mubr.bf16.mxu0 %v1193
  %2834 = vmatmul.mubr.bf16.gmra.mrb[0].mxu0 %v1192
  %v2835 = vpop.f32.mrb[0].mxu0
  %v2836 = vadd.f32 %v2547, %v2835
  %v2837 = vpop.f32.mrb[0].mxu0
  %v2838 = vpop.f32.mrb[0].mxu0
  %v2839 = vadd.f32 %v2550, %v2838
  %v2840 = vpop.f32.mrb[0].mxu0
  %2841 = vmatprep.mubr.bf16.mxu0 %v1197
  %2842 = vmatmul.mubr.bf16.gmra.mrb[0].mxu0 %v1196
  %v2843 = vpop.f32.mrb[0].mxu0
  %v2844 = vadd.f32 %v2555, %v2843
  %v2845 = vpop.f32.mrb[0].mxu0
  %v2846 = vpop.f32.mrb[0].mxu0
  %v2847 = vadd.f32 %v2558, %v2846
  %v2848 = vpop.f32.mrb[0].mxu0
  %2849 = vmatprep.mubr.bf16.mxu0 %v1201
  %2850 = vmatmul.mubr.bf16.gmra.mrb[0].mxu0 %v1200
  %v2851 = vpop.f32.mrb[0].mxu0
  %v2852 = vadd.f32 %v2563, %v2851
  %v2853 = vpop.f32.mrb[0].mxu0
  %v2854 = vpop.f32.mrb[0].mxu0
  %v2855 = vadd.f32 %v2566, %v2854
  %v2856 = vpop.f32.mrb[0].mxu0
  %2857 = vmatprep.mubr.bf16.mxu0 %v1205
  %2858 = vmatmul.mubr.bf16.gmra.mrb[0].mxu0 %v1204
  %v2859 = vpop.f32.mrb[0].mxu0
  %v2860 = vadd.f32 %v2571, %v2859
  %v2861 = vpop.f32.mrb[0].mxu0
  %v2862 = vpop.f32.mrb[0].mxu0
  %v2863 = vadd.f32 %v2574, %v2862
  %v2864 = vpop.f32.mrb[0].mxu0
  %2865 = vmatprep.mubr.bf16.mxu0 %v1209
  %2866 = vmatmul.mubr.bf16.gmra.mrb[0].mxu0 %v1208
  %v2867 = vpop.f32.mrb[0].mxu0
  %v2868 = vadd.f32 %v2579, %v2867
  %v2869 = vpop.f32.mrb[0].mxu0
  %v2870 = vpop.f32.mrb[0].mxu0
  %v2871 = vadd.f32 %v2582, %v2870
  %v2872 = vpop.f32.mrb[0].mxu0
  %2873 = vmatprep.mubr.bf16.mxu0 %v1213
  %2874 = vmatmul.mubr.bf16.gmra.mrb[0].mxu0 %v1212
  %v2875 = vpop.f32.mrb[0].mxu0
  %v2876 = vadd.f32 %v2587, %v2875
  %v2877 = vpop.f32.mrb[0].mxu0
  %v2878 = vpop.f32.mrb[0].mxu0
  %v2879 = vadd.f32 %v2590, %v2878
  %v2880 = vpop.f32.mrb[0].mxu0
  %2881 = vmatprep.mubr.bf16.mxu0 %v1217
  %2882 = vmatmul.mubr.bf16.gmra.mrb[0].mxu0 %v1216
  %v2883 = vpop.f32.mrb[0].mxu0
  %v2884 = vadd.f32 %v2595, %v2883
  %v2885 = vpop.f32.mrb[0].mxu0
  %v2886 = vpop.f32.mrb[0].mxu0
  %v2887 = vadd.f32 %v2598, %v2886
  %v2888 = vpop.f32.mrb[0].mxu0
  %2889 = vmatprep.mubr.bf16.mxu0 %v1221
  %2890 = vmatmul.mubr.bf16.gmra.mrb[0].mxu0 %v1220
  %v2891 = vpop.f32.mrb[0].mxu0
  %v2892 = vadd.f32 %v2603, %v2891
  %v2893 = vpop.f32.mrb[0].mxu0
  %v2894 = vpop.f32.mrb[0].mxu0
  %v2895 = vadd.f32 %v2606, %v2894
  %v2896 = vpop.f32.mrb[0].mxu0
  %2897 = vmatprep.mubr.bf16.mxu0 %v1225
  %2898 = vmatmul.mubr.bf16.gmra.mrb[0].mxu0 %v1224
  %v2899 = vpop.f32.mrb[0].mxu0
  %v2900 = vadd.f32 %v2611, %v2899
  %v2901 = vpop.f32.mrb[0].mxu0
  %v2902 = vpop.f32.mrb[0].mxu0
  %v2903 = vadd.f32 %v2614, %v2902
  %v2904 = vpop.f32.mrb[0].mxu0
  %2905 = vmatprep.mubr.bf16.mxu0 %v1229
  %2906 = vmatmul.mubr.bf16.gmra.mrb[0].mxu0 %v1228
  %v2907 = vpop.f32.mrb[0].mxu0
  %v2908 = vadd.f32 %v2619, %v2907
  %v2909 = vpop.f32.mrb[0].mxu0
  %v2910 = vpop.f32.mrb[0].mxu0
  %v2911 = vadd.f32 %v2622, %v2910
  %v2912 = vpop.f32.mrb[0].mxu0
  %2913 = vmatprep.mubr.bf16.mxu0 %v1233
  %2914 = vmatmul.mubr.bf16.gmra.mrb[0].mxu0 %v1232
  %v2915 = vpop.f32.mrb[0].mxu0
  %v2916 = vadd.f32 %v2627, %v2915
  %v2917 = vpop.f32.mrb[0].mxu0
  %v2918 = vpop.f32.mrb[0].mxu0
  %v2919 = vadd.f32 %v2630, %v2918
  %v2920 = vpop.f32.mrb[0].mxu0
  %2921 = vmatprep.mubr.bf16.mxu0 %v1237
  %2922 = vmatmul.mubr.bf16.gmra.mrb[0].mxu0 %v1236
  %v2923 = vpop.f32.mrb[0].mxu0
  %v2924 = vadd.f32 %v2635, %v2923
  %v2925 = vpop.f32.mrb[0].mxu0
  %v2926 = vpop.f32.mrb[0].mxu0
  %v2927 = vadd.f32 %v2638, %v2926
  %v2928 = vpop.f32.mrb[0].mxu0
  %2929 = vmatprep.mubr.bf16.mxu0 %v1241
  %2930 = vmatmul.mubr.bf16.gmra.mrb[0].mxu0 %v1240
  %v2931 = vpop.f32.mrb[0].mxu0
  %v2932 = vadd.f32 %v2643, %v2931
  %v2933 = vpop.f32.mrb[0].mxu0
  %v2934 = vpop.f32.mrb[0].mxu0
  %v2935 = vadd.f32 %v2646, %v2934
  %v2936 = vpop.f32.mrb[0].mxu0
  %2937 = vmatprep.mubr.bf16.mxu0 %v1245
  %2938 = vmatmul.mubr.bf16.gmra.mrb[0].mxu0 %v1244
  %v2939 = vpop.f32.mrb[0].mxu0
  %v2940 = vadd.f32 %v2651, %v2939
  %v2941 = vpop.f32.mrb[0].mxu0
  %v2942 = vpop.f32.mrb[0].mxu0
  %v2943 = vadd.f32 %v2654, %v2942
  %v2944 = vpop.f32.mrb[0].mxu0
  %2945 = vmatprep.mubr.bf16.mxu0 %v1249
  %2946 = vmatmul.mubr.bf16.gmra.mrb[0].mxu0 %v1248
  %v2947 = vpop.f32.mrb[0].mxu0
  %v2948 = vadd.f32 %v2659, %v2947
  %v2949 = vpop.f32.mrb[0].mxu0
  %v2950 = vpop.f32.mrb[0].mxu0
  %v2951 = vadd.f32 %v2662, %v2950
  %v2952 = vpop.f32.mrb[0].mxu0
  %2953 = vmatprep.mubr.bf16.mxu0 %v1253
  %2954 = vmatmul.mubr.bf16.gmra.mrb[0].mxu0 %v1252
  %v2955 = vpop.f32.mrb[0].mxu0
  %v2956 = vadd.f32 %v2667, %v2955
  %v2957 = vpop.f32.mrb[0].mxu0
  %v2958 = vpop.f32.mrb[0].mxu0
  %v2959 = vadd.f32 %v2670, %v2958
  %v2960 = vpop.f32.mrb[0].mxu0
  %2961 = vmatprep.mubr.bf16.mxu0 %v1257
  %2962 = vmatmul.mubr.bf16.gmra.mrb[0].mxu0 %v1256
  %v2963 = vpop.f32.mrb[0].mxu0
  %v2964 = vadd.f32 %v2675, %v2963
  %v2965 = vpop.f32.mrb[0].mxu0
  %v2966 = vpop.f32.mrb[0].mxu0
  %v2967 = vadd.f32 %v2678, %v2966
  %v2968 = vpop.f32.mrb[0].mxu0
  %2969 = vmatprep.mubr.bf16.mxu0 %v1261
  %2970 = vmatmul.mubr.bf16.gmra.mrb[0].mxu0 %v1260
  %v2971 = vpop.f32.mrb[0].mxu0
  %v2972 = vadd.f32 %v2683, %v2971
  %v2973 = vpop.f32.mrb[0].mxu0
  %v2974 = vpop.f32.mrb[0].mxu0
  %v2975 = vadd.f32 %v2686, %v2974
  %v2976 = vpop.f32.mrb[0].mxu0
  %2977 = vmatprep.mubr.bf16.mxu0 %v1265
  %2978 = vmatmul.mubr.bf16.gmra.mrb[0].mxu0 %v1264
  %v2979 = vpop.f32.mrb[0].mxu0
  %v2980 = vadd.f32 %v2691, %v2979
  %v2981 = vpop.f32.mrb[0].mxu0
  %v2982 = vpop.f32.mrb[0].mxu0
  %v2983 = vadd.f32 %v2694, %v2982
  %v2984 = vpop.f32.mrb[0].mxu0
  %2985 = vmatprep.mubr.bf16.mxu0 %v1269
  %2986 = vmatmul.mubr.bf16.gmra.mrb[0].mxu0 %v1268
  %v2987 = vpop.f32.mrb[0].mxu0
  %v2988 = vadd.f32 %v2699, %v2987
  %v2989 = vpop.f32.mrb[0].mxu0
  %v2990 = vpop.f32.mrb[0].mxu0
  %v2991 = vadd.f32 %v2702, %v2990
  %v2992 = vpop.f32.mrb[0].mxu0
  %2993 = vmatprep.mubr.bf16.mxu0 %v1273
  %2994 = vmatmul.mubr.bf16.gmra.mrb[0].mxu0 %v1272
  %v2995 = vpop.f32.mrb[0].mxu0
  %v2996 = vadd.f32 %v2707, %v2995
  %v2997 = vpop.f32.mrb[0].mxu0
  %v2998 = vpop.f32.mrb[0].mxu0
  %v2999 = vadd.f32 %v2710, %v2998
  %v3000 = vpop.f32.mrb[0].mxu0
  %3001 = vmatprep.mubr.bf16.mxu0 %v1277
  %3002 = vmatmul.mubr.bf16.gmra.mrb[0].mxu0 %v1276
  %v3003 = vpop.f32.mrb[0].mxu0
  %v3004 = vadd.f32 %v2715, %v3003
  %v3005 = vpop.f32.mrb[0].mxu0
  %v3006 = vpop.f32.mrb[0].mxu0
  %v3007 = vadd.f32 %v2718, %v3006
  %v3008 = vpop.f32.mrb[0].mxu0
  %3009 = vmatprep.mubr.bf16.mxu0 %v1281
  %3010 = vmatmul.mubr.bf16.gmra.mrb[0].mxu0 %v1280
  %v3011 = vpop.f32.mrb[0].mxu0
  %v3012 = vadd.f32 %v2723, %v3011
  %v3013 = vpop.f32.mrb[0].mxu0
  %v3014 = vpop.f32.mrb[0].mxu0
  %v3015 = vadd.f32 %v2726, %v3014
  %v3016 = vpop.f32.mrb[0].mxu0
  %3017 = vmatprep.mubr.bf16.mxu0 %v1285
  %3018 = vmatmul.mubr.bf16.gmra.mrb[0].mxu0 %v1284
  %v3019 = vpop.f32.mrb[0].mxu0
  %v3020 = vadd.f32 %v2731, %v3019
  %v3021 = vpop.f32.mrb[0].mxu0
  %v3022 = vpop.f32.mrb[0].mxu0
  %v3023 = vadd.f32 %v2734, %v3022
  %v3024 = vpop.f32.mrb[0].mxu0
  %3025 = vmatprep.mubr.bf16.mxu0 %v1289
  %3026 = vmatmul.mubr.bf16.gmra.mrb[0].mxu0 %v1288
  %v3027 = vpop.f32.mrb[0].mxu0
  %v3028 = vadd.f32 %v2739, %v3027
  %v3029 = vpop.f32.mrb[0].mxu0
  %v3030 = vpop.f32.mrb[0].mxu0
  %v3031 = vadd.f32 %v2742, %v3030
  %v3032 = vpop.f32.mrb[0].mxu0
  %3033 = vmatprep.mubr.bf16.mxu0 %v1293
  %3034 = vmatmul.mubr.bf16.gmra.mrb[0].mxu0 %v1292
  %v3035 = vpop.f32.mrb[0].mxu0
  %v3036 = vadd.f32 %v2747, %v3035
  %v3037 = vpop.f32.mrb[0].mxu0
  %v3038 = vpop.f32.mrb[0].mxu0
  %v3039 = vadd.f32 %v2750, %v3038
  %v3040 = vpop.f32.mrb[0].mxu0
  %3041 = vmatprep.mubr.bf16.mxu0 %v1297
  %3042 = vmatmul.mubr.bf16.gmra.mrb[0].mxu0 %v1296
  %v3043 = vpop.f32.mrb[0].mxu0
  %v3044 = vadd.f32 %v2755, %v3043
  %v3045 = vpop.f32.mrb[0].mxu0
  %v3046 = vpop.f32.mrb[0].mxu0
  %v3047 = vadd.f32 %v2758, %v3046
  %v3048 = vpop.f32.mrb[0].mxu0
  %3049 = vmatprep.mubr.bf16.mxu0 %v1301
  %3050 = vmatmul.mubr.bf16.gmra.mrb[0].mxu0 %v1300
  %v3051 = vpop.f32.mrb[0].mxu0
  %v3052 = vadd.f32 %v2763, %v3051
  %v3053 = vpop.f32.mrb[0].mxu0
  %v3054 = vpop.f32.mrb[0].mxu0
  %v3055 = vadd.f32 %v2766, %v3054
  %v3056 = vpop.f32.mrb[0].mxu0
  %3057 = vmatprep.mubr.bf16.mxu0 %v1305
  %3058 = vmatmul.mubr.bf16.gmra.mrb[0].mxu0 %v1304
  %v3059 = vpop.f32.mrb[0].mxu0
  %v3060 = vadd.f32 %v2771, %v3059
  %v3061 = vpop.f32.mrb[0].mxu0
  %v3062 = vpop.f32.mrb[0].mxu0
  %v3063 = vadd.f32 %v2774, %v3062
  %v3064 = vpop.f32.mrb[0].mxu0
  %3065 = vmatprep.mubr.bf16.mxu0 %v1309
  %3066 = vmatmul.mubr.bf16.gmra.mrb[0].mxu0 %v1308
  %v3067 = vpop.f32.mrb[0].mxu0
  %v3068 = vadd.f32 %v2779, %v3067
  %v3069 = vpop.f32.mrb[0].mxu0
  %v3070 = vpop.f32.mrb[0].mxu0
  %v3071 = vadd.f32 %v2782, %v3070
  %v3072 = vpop.f32.mrb[0].mxu0
  %3073 = vmatprep.mubr.bf16.mxu0 %v1313
  %3074 = vmatmul.mubr.bf16.gmra.mrb[0].mxu0 %v1312
  %v3075 = vpop.f32.mrb[0].mxu0
  %v3076 = vadd.f32 %v2787, %v3075
  %v3077 = vpop.f32.mrb[0].mxu0
  %v3078 = vpop.f32.mrb[0].mxu0
  %v3079 = vadd.f32 %v2790, %v3078
  %v3080 = vpop.f32.mrb[0].mxu0
  %3081 = vmatprep.mubr.bf16.mxu0 %v1317
  %3082 = vmatmul.mubr.bf16.gmra.mrb[0].mxu0 %v1316
  %v3083 = vpop.f32.mrb[0].mxu0
  %v3084 = vadd.f32 %v2795, %v3083
  %v3085 = vpop.f32.mrb[0].mxu0
  %v3086 = vpop.f32.mrb[0].mxu0
  %v3087 = vadd.f32 %v2798, %v3086
  %v3088 = vpop.f32.mrb[0].mxu0
  %3089 = vdwg.mxu0
  %v3090 = vmax.f32 %v2836, 0.0
  %v3091 = vmax.f32 %v2839, 0.0
  %v3092 = vmax.f32 %v2844, 0.0
  %v3093 = vmax.f32 %v2847, 0.0
  %v3094 = vmax.f32 %v2852, 0.0
  %v3095 = vmax.f32 %v2855, 0.0
  %v3096 = vmax.f32 %v2860, 0.0
  %v3097 = vmax.f32 %v2863, 0.0
  %v3098 = vmax.f32 %v2868, 0.0
  %v3099 = vmax.f32 %v2871, 0.0
  %v3100 = vmax.f32 %v2876, 0.0
  %v3101 = vmax.f32 %v2879, 0.0
  %v3102 = vmax.f32 %v2884, 0.0
  %v3103 = vmax.f32 %v2887, 0.0
  %v3104 = vmax.f32 %v2892, 0.0
  %v3105 = vmax.f32 %v2895, 0.0
  %v3106 = vmax.f32 %v2900, 0.0
  %v3107 = vmax.f32 %v2903, 0.0
  %v3108 = vmax.f32 %v2908, 0.0
  %v3109 = vmax.f32 %v2911, 0.0
  %v3110 = vmax.f32 %v2916, 0.0
  %v3111 = vmax.f32 %v2919, 0.0
  %v3112 = vmax.f32 %v2924, 0.0
  %v3113 = vmax.f32 %v2927, 0.0
  %v3114 = vmax.f32 %v2932, 0.0
  %v3115 = vmax.f32 %v2935, 0.0
  %v3116 = vmax.f32 %v2940, 0.0
  %v3117 = vmax.f32 %v2943, 0.0
  %v3118 = vmax.f32 %v2948, 0.0
  %v3119 = vmax.f32 %v2951, 0.0
  %v3120 = vmax.f32 %v2956, 0.0
  %v3121 = vmax.f32 %v2959, 0.0
  %v3122 = vmax.f32 %v2964, 0.0
  %v3123 = vmax.f32 %v2967, 0.0
  %v3124 = vmax.f32 %v2972, 0.0
  %v3125 = vmax.f32 %v2975, 0.0
  %v3126 = vmax.f32 %v2980, 0.0
  %v3127 = vmax.f32 %v2983, 0.0
  %v3128 = vmax.f32 %v2988, 0.0
  %v3129 = vmax.f32 %v2991, 0.0
  %v3130 = vmax.f32 %v2996, 0.0
  %v3131 = vmax.f32 %v2999, 0.0
  %v3132 = vmax.f32 %v3004, 0.0
  %v3133 = vmax.f32 %v3007, 0.0
  %v3134 = vmax.f32 %v3012, 0.0
  %v3135 = vmax.f32 %v3015, 0.0
  %v3136 = vmax.f32 %v3020, 0.0
  %v3137 = vmax.f32 %v3023, 0.0
  %v3138 = vmax.f32 %v3028, 0.0
  %v3139 = vmax.f32 %v3031, 0.0
  %v3140 = vmax.f32 %v3036, 0.0
  %v3141 = vmax.f32 %v3039, 0.0
  %v3142 = vmax.f32 %v3044, 0.0
  %v3143 = vmax.f32 %v3047, 0.0
  %v3144 = vmax.f32 %v3052, 0.0
  %v3145 = vmax.f32 %v3055, 0.0
  %v3146 = vmax.f32 %v3060, 0.0
  %v3147 = vmax.f32 %v3063, 0.0
  %v3148 = vmax.f32 %v3068, 0.0
  %v3149 = vmax.f32 %v3071, 0.0
  %v3150 = vmax.f32 %v3076, 0.0
  %v3151 = vmax.f32 %v3079, 0.0
  %v3152 = vmax.f32 %v3084, 0.0
  %v3153 = vmax.f32 %v3087, 0.0
  %v3154 = vpack.c.bf16 %v3091, %v3090
  %v3155 = vpack.c.bf16 %v3093, %v3092
  %v3156 = vpack.c.bf16 %v3095, %v3094
  %v3157 = vpack.c.bf16 %v3097, %v3096
  %v3158 = vpack.c.bf16 %v3099, %v3098
  %v3159 = vpack.c.bf16 %v3101, %v3100
  %v3160 = vpack.c.bf16 %v3103, %v3102
  %v3161 = vpack.c.bf16 %v3105, %v3104
  %v3162 = vpack.c.bf16 %v3107, %v3106
  %v3163 = vpack.c.bf16 %v3109, %v3108
  %v3164 = vpack.c.bf16 %v3111, %v3110
  %v3165 = vpack.c.bf16 %v3113, %v3112
  %v3166 = vpack.c.bf16 %v3115, %v3114
  %v3167 = vpack.c.bf16 %v3117, %v3116
  %v3168 = vpack.c.bf16 %v3119, %v3118
  %v3169 = vpack.c.bf16 %v3121, %v3120
  %v3170 = vpack.c.bf16 %v3123, %v3122
  %v3171 = vpack.c.bf16 %v3125, %v3124
  %v3172 = vpack.c.bf16 %v3127, %v3126
  %v3173 = vpack.c.bf16 %v3129, %v3128
  %v3174 = vpack.c.bf16 %v3131, %v3130
  %v3175 = vpack.c.bf16 %v3133, %v3132
  %v3176 = vpack.c.bf16 %v3135, %v3134
  %v3177 = vpack.c.bf16 %v3137, %v3136
  %v3178 = vpack.c.bf16 %v3139, %v3138
  %v3179 = vpack.c.bf16 %v3141, %v3140
  %v3180 = vpack.c.bf16 %v3143, %v3142
  %v3181 = vpack.c.bf16 %v3145, %v3144
  %v3182 = vpack.c.bf16 %v3147, %v3146
  %v3183 = vpack.c.bf16 %v3149, %v3148
  %v3184 = vpack.c.bf16 %v3151, %v3150
  %v3185 = vpack.c.bf16 %v3153, %v3152
  %v3186 = vld [vmem:[%s4] sm:$0xf]
  %v3187 = vld [vmem:[%s4 + $0x4] sm:$0xf]
  %v3188 = vld [vmem:[%s4 + $0x8] sm:$0xf]
  %v3189 = vld [vmem:[%s4 + $0xc] sm:$0xf]
  %v3190 = vld [vmem:[%s4 + $0x10] sm:$0xf]
  %v3191 = vld [vmem:[%s4 + $0x14] sm:$0xf]
  %v3192 = vld [vmem:[%s4 + $0x18] sm:$0xf]
  %v3193 = vld [vmem:[%s4 + $0x1c] sm:$0xf]
  %v3194 = vld [vmem:[%s4 + $0x20] sm:$0xf]
  %v3195 = vld [vmem:[%s4 + $0x24] sm:$0xf]
  %v3196 = vld [vmem:[%s4 + $0x28] sm:$0xf]
  %v3197 = vld [vmem:[%s4 + $0x2c] sm:$0xf]
  %v3198 = vld [vmem:[%s4 + $0x30] sm:$0xf]
  %v3199 = vld [vmem:[%s4 + $0x34] sm:$0xf]
  %v3200 = vld [vmem:[%s4 + $0x38] sm:$0xf]
  %v3201 = vld [vmem:[%s4 + $0x3c] sm:$0xf]
  %v3218 = vunpack.c.l.b16 %v3186
  %v3219 = vunpack.c.l.b16 %v3187
  %v3220 = vunpack.c.l.b16 %v3188
  %v3221 = vunpack.c.l.b16 %v3189
  %v3222 = vunpack.c.l.b16 %v3190
  %v3223 = vunpack.c.l.b16 %v3191
  %v3224 = vunpack.c.l.b16 %v3192
  %v3225 = vunpack.c.l.b16 %v3193
  %v3226 = vunpack.c.l.b16 %v3194
  %v3227 = vunpack.c.l.b16 %v3195
  %v3228 = vunpack.c.l.b16 %v3196
  %v3229 = vunpack.c.l.b16 %v3197
  %v3230 = vunpack.c.l.b16 %v3198
  %v3231 = vunpack.c.l.b16 %v3199
  %v3232 = vunpack.c.l.b16 %v3200
  %v3233 = vunpack.c.l.b16 %v3201
  %v3234 = vpack.c.b16 %v3219, %v3218
  %v3235 = vpack.c.b16 %v3221, %v3220
  %v3236 = vpack.c.b16 %v3223, %v3222
  %v3237 = vpack.c.b16 %v3225, %v3224
  %v3238 = vpack.c.b16 %v3227, %v3226
  %v3239 = vpack.c.b16 %v3229, %v3228
  %v3240 = vpack.c.b16 %v3231, %v3230
  %v3241 = vpack.c.b16 %v3233, %v3232
  %3250 = vmatprep.subr.bf16.mxu0 0
  %3251 = vmatpush1.bf16.msra.mxu0 %v3234
  %3252 = vmatprep.subr.bf16.mxu0 0
  %3253 = vmatpush1.bf16.msra.mxu0 %v3235
  %3254 = vmatprep.subr.bf16.mxu0 0
  %3255 = vmatpush1.bf16.msra.mxu0 %v3236
  %3256 = vmatprep.subr.bf16.mxu0 0
  %3257 = vmatpush1.bf16.msra.mxu0 %v3237
  %3258 = vmatprep.subr.bf16.mxu0 0
  %3259 = vmatpush1.bf16.msra.mxu0 %v3238
  %3260 = vmatprep.subr.bf16.mxu0 0
  %3261 = vmatpush1.bf16.msra.mxu0 %v3239
  %3262 = vmatprep.subr.bf16.mxu0 0
  %3263 = vmatpush1.bf16.msra.mxu0 %v3240
  %3264 = vmatprep.subr.bf16.mxu0 0
  %3265 = vmatpush1.bf16.msra.mxu0 %v3241
  %3266 = vmatprep.subr.bf16.mxu0 0
  %3267 = vmatpush1.bf16.msra.mxu0 0
  %3268 = vmatprep.subr.bf16.mxu0 0
  %3269 = vmatpush1.bf16.msra.mxu0 0
  %3270 = vmatprep.subr.bf16.mxu0 0
  %3271 = vmatpush1.bf16.msra.mxu0 0
  %3272 = vmatprep.subr.bf16.mxu0 0
  %3273 = vmatpush1.bf16.msra.mxu0 0
  %3274 = vmatprep.subr.bf16.mxu0 0
  %3275 = vmatpush1.bf16.msra.mxu0 0
  %3276 = vmatprep.subr.bf16.mxu0 0
  %3277 = vmatpush1.bf16.msra.mxu0 0
  %3278 = vmatprep.subr.bf16.mxu0 0
  %3279 = vmatpush1.bf16.msra.mxu0 0
  %3280 = vmatprep.subr.bf16.mxu0 0
  %3281 = vmatpush1.bf16.msra.mxu0 0
  %3282 = vmatprep.mubr.bf16.mxu0 0
  %3283 = vmatmul.mubr.bf16.gmra.mrb[0].mxu0 %v3154
  %v3284 = vpop.f32.mrb[0].mxu0
  %v3285 = vadd.f32 0.0, %v3284
  %v3286 = vpop.f32.mrb[0].mxu0
  %v3287 = vpop.f32.mrb[0].mxu0
  %v3288 = vadd.f32 0.0, %v3287
  %v3289 = vpop.f32.mrb[0].mxu0
  %3290 = vmatprep.mubr.bf16.mxu0 0
  %3291 = vmatmul.mubr.bf16.gmra.mrb[0].mxu0 %v3155
  %v3292 = vpop.f32.mrb[0].mxu0
  %v3293 = vadd.f32 0.0, %v3292
  %v3294 = vpop.f32.mrb[0].mxu0
  %v3295 = vpop.f32.mrb[0].mxu0
  %v3296 = vadd.f32 0.0, %v3295
  %v3297 = vpop.f32.mrb[0].mxu0
  %3298 = vmatprep.mubr.bf16.mxu0 0
  %3299 = vmatmul.mubr.bf16.gmra.mrb[0].mxu0 %v3156
  %v3300 = vpop.f32.mrb[0].mxu0
  %v3301 = vadd.f32 0.0, %v3300
  %v3302 = vpop.f32.mrb[0].mxu0
  %v3303 = vpop.f32.mrb[0].mxu0
  %v3304 = vadd.f32 0.0, %v3303
  %v3305 = vpop.f32.mrb[0].mxu0
  %3306 = vmatprep.mubr.bf16.mxu0 0
  %3307 = vmatmul.mubr.bf16.gmra.mrb[0].mxu0 %v3157
  %v3308 = vpop.f32.mrb[0].mxu0
  %v3309 = vadd.f32 0.0, %v3308
  %v3310 = vpop.f32.mrb[0].mxu0
  %v3311 = vpop.f32.mrb[0].mxu0
  %v3312 = vadd.f32 0.0, %v3311
  %v3313 = vpop.f32.mrb[0].mxu0
  %3314 = vmatprep.mubr.bf16.mxu0 0
  %3315 = vmatmul.mubr.bf16.gmra.mrb[0].mxu0 %v3158
  %v3316 = vpop.f32.mrb[0].mxu0
  %v3317 = vadd.f32 0.0, %v3316
  %v3318 = vpop.f32.mrb[0].mxu0
  %v3319 = vpop.f32.mrb[0].mxu0
  %v3320 = vadd.f32 0.0, %v3319
  %v3321 = vpop.f32.mrb[0].mxu0
  %3322 = vmatprep.mubr.bf16.mxu0 0
  %3323 = vmatmul.mubr.bf16.gmra.mrb[0].mxu0 %v3159
  %v3324 = vpop.f32.mrb[0].mxu0
  %v3325 = vadd.f32 0.0, %v3324
  %v3326 = vpop.f32.mrb[0].mxu0
  %v3327 = vpop.f32.mrb[0].mxu0
  %v3328 = vadd.f32 0.0, %v3327
  %v3329 = vpop.f32.mrb[0].mxu0
  %3330 = vmatprep.mubr.bf16.mxu0 0
  %3331 = vmatmul.mubr.bf16.gmra.mrb[0].mxu0 %v3160
  %v3332 = vpop.f32.mrb[0].mxu0
  %v3333 = vadd.f32 0.0, %v3332
  %v3334 = vpop.f32.mrb[0].mxu0
  %v3335 = vpop.f32.mrb[0].mxu0
  %v3336 = vadd.f32 0.0, %v3335
  %v3337 = vpop.f32.mrb[0].mxu0
  %3338 = vmatprep.mubr.bf16.mxu0 0
  %3339 = vmatmul.mubr.bf16.gmra.mrb[0].mxu0 %v3161
  %v3340 = vpop.f32.mrb[0].mxu0
  %v3341 = vadd.f32 0.0, %v3340
  %v3342 = vpop.f32.mrb[0].mxu0
  %v3343 = vpop.f32.mrb[0].mxu0
  %v3344 = vadd.f32 0.0, %v3343
  %v3345 = vpop.f32.mrb[0].mxu0
  %3346 = vmatprep.mubr.bf16.mxu0 0
  %3347 = vmatmul.mubr.bf16.gmra.mrb[0].mxu0 %v3162
  %v3348 = vpop.f32.mrb[0].mxu0
  %v3349 = vadd.f32 0.0, %v3348
  %v3350 = vpop.f32.mrb[0].mxu0
  %v3351 = vpop.f32.mrb[0].mxu0
  %v3352 = vadd.f32 0.0, %v3351
  %v3353 = vpop.f32.mrb[0].mxu0
  %3354 = vmatprep.mubr.bf16.mxu0 0
  %3355 = vmatmul.mubr.bf16.gmra.mrb[0].mxu0 %v3163
  %v3356 = vpop.f32.mrb[0].mxu0
  %v3357 = vadd.f32 0.0, %v3356
  %v3358 = vpop.f32.mrb[0].mxu0
  %v3359 = vpop.f32.mrb[0].mxu0
  %v3360 = vadd.f32 0.0, %v3359
  %v3361 = vpop.f32.mrb[0].mxu0
  %3362 = vmatprep.mubr.bf16.mxu0 0
  %3363 = vmatmul.mubr.bf16.gmra.mrb[0].mxu0 %v3164
  %v3364 = vpop.f32.mrb[0].mxu0
  %v3365 = vadd.f32 0.0, %v3364
  %v3366 = vpop.f32.mrb[0].mxu0
  %v3367 = vpop.f32.mrb[0].mxu0
  %v3368 = vadd.f32 0.0, %v3367
  %v3369 = vpop.f32.mrb[0].mxu0
  %3370 = vmatprep.mubr.bf16.mxu0 0
  %3371 = vmatmul.mubr.bf16.gmra.mrb[0].mxu0 %v3165
  %v3372 = vpop.f32.mrb[0].mxu0
  %v3373 = vadd.f32 0.0, %v3372
  %v3374 = vpop.f32.mrb[0].mxu0
  %v3375 = vpop.f32.mrb[0].mxu0
  %v3376 = vadd.f32 0.0, %v3375
  %v3377 = vpop.f32.mrb[0].mxu0
  %3378 = vmatprep.mubr.bf16.mxu0 0
  %3379 = vmatmul.mubr.bf16.gmra.mrb[0].mxu0 %v3166
  %v3380 = vpop.f32.mrb[0].mxu0
  %v3381 = vadd.f32 0.0, %v3380
  %v3382 = vpop.f32.mrb[0].mxu0
  %v3383 = vpop.f32.mrb[0].mxu0
  %v3384 = vadd.f32 0.0, %v3383
  %v3385 = vpop.f32.mrb[0].mxu0
  %3386 = vmatprep.mubr.bf16.mxu0 0
  %3387 = vmatmul.mubr.bf16.gmra.mrb[0].mxu0 %v3167
  %v3388 = vpop.f32.mrb[0].mxu0
  %v3389 = vadd.f32 0.0, %v3388
  %v3390 = vpop.f32.mrb[0].mxu0
  %v3391 = vpop.f32.mrb[0].mxu0
  %v3392 = vadd.f32 0.0, %v3391
  %v3393 = vpop.f32.mrb[0].mxu0
  %3394 = vmatprep.mubr.bf16.mxu0 0
  %3395 = vmatmul.mubr.bf16.gmra.mrb[0].mxu0 %v3168
  %v3396 = vpop.f32.mrb[0].mxu0
  %v3397 = vadd.f32 0.0, %v3396
  %v3398 = vpop.f32.mrb[0].mxu0
  %v3399 = vpop.f32.mrb[0].mxu0
  %v3400 = vadd.f32 0.0, %v3399
  %v3401 = vpop.f32.mrb[0].mxu0
  %3402 = vmatprep.mubr.bf16.mxu0 0
  %3403 = vmatmul.mubr.bf16.gmra.mrb[0].mxu0 %v3169
  %v3404 = vpop.f32.mrb[0].mxu0
  %v3405 = vadd.f32 0.0, %v3404
  %v3406 = vpop.f32.mrb[0].mxu0
  %v3407 = vpop.f32.mrb[0].mxu0
  %v3408 = vadd.f32 0.0, %v3407
  %v3409 = vpop.f32.mrb[0].mxu0
  %3410 = vmatprep.mubr.bf16.mxu0 0
  %3411 = vmatmul.mubr.bf16.gmra.mrb[0].mxu0 %v3170
  %v3412 = vpop.f32.mrb[0].mxu0
  %v3413 = vadd.f32 0.0, %v3412
  %v3414 = vpop.f32.mrb[0].mxu0
  %v3415 = vpop.f32.mrb[0].mxu0
  %v3416 = vadd.f32 0.0, %v3415
  %v3417 = vpop.f32.mrb[0].mxu0
  %3418 = vmatprep.mubr.bf16.mxu0 0
  %3419 = vmatmul.mubr.bf16.gmra.mrb[0].mxu0 %v3171
  %v3420 = vpop.f32.mrb[0].mxu0
  %v3421 = vadd.f32 0.0, %v3420
  %v3422 = vpop.f32.mrb[0].mxu0
  %v3423 = vpop.f32.mrb[0].mxu0
  %v3424 = vadd.f32 0.0, %v3423
  %v3425 = vpop.f32.mrb[0].mxu0
  %3426 = vmatprep.mubr.bf16.mxu0 0
  %3427 = vmatmul.mubr.bf16.gmra.mrb[0].mxu0 %v3172
  %v3428 = vpop.f32.mrb[0].mxu0
  %v3429 = vadd.f32 0.0, %v3428
  %v3430 = vpop.f32.mrb[0].mxu0
  %v3431 = vpop.f32.mrb[0].mxu0
  %v3432 = vadd.f32 0.0, %v3431
  %v3433 = vpop.f32.mrb[0].mxu0
  %3434 = vmatprep.mubr.bf16.mxu0 0
  %3435 = vmatmul.mubr.bf16.gmra.mrb[0].mxu0 %v3173
  %v3436 = vpop.f32.mrb[0].mxu0
  %v3437 = vadd.f32 0.0, %v3436
  %v3438 = vpop.f32.mrb[0].mxu0
  %v3439 = vpop.f32.mrb[0].mxu0
  %v3440 = vadd.f32 0.0, %v3439
  %v3441 = vpop.f32.mrb[0].mxu0
  %3442 = vmatprep.mubr.bf16.mxu0 0
  %3443 = vmatmul.mubr.bf16.gmra.mrb[0].mxu0 %v3174
  %v3444 = vpop.f32.mrb[0].mxu0
  %v3445 = vadd.f32 0.0, %v3444
  %v3446 = vpop.f32.mrb[0].mxu0
  %v3447 = vpop.f32.mrb[0].mxu0
  %v3448 = vadd.f32 0.0, %v3447
  %v3449 = vpop.f32.mrb[0].mxu0
  %3450 = vmatprep.mubr.bf16.mxu0 0
  %3451 = vmatmul.mubr.bf16.gmra.mrb[0].mxu0 %v3175
  %v3452 = vpop.f32.mrb[0].mxu0
  %v3453 = vadd.f32 0.0, %v3452
  %v3454 = vpop.f32.mrb[0].mxu0
  %v3455 = vpop.f32.mrb[0].mxu0
  %v3456 = vadd.f32 0.0, %v3455
  %v3457 = vpop.f32.mrb[0].mxu0
  %3458 = vmatprep.mubr.bf16.mxu0 0
  %3459 = vmatmul.mubr.bf16.gmra.mrb[0].mxu0 %v3176
  %v3460 = vpop.f32.mrb[0].mxu0
  %v3461 = vadd.f32 0.0, %v3460
  %v3462 = vpop.f32.mrb[0].mxu0
  %v3463 = vpop.f32.mrb[0].mxu0
  %v3464 = vadd.f32 0.0, %v3463
  %v3465 = vpop.f32.mrb[0].mxu0
  %3466 = vmatprep.mubr.bf16.mxu0 0
  %3467 = vmatmul.mubr.bf16.gmra.mrb[0].mxu0 %v3177
  %v3468 = vpop.f32.mrb[0].mxu0
  %v3469 = vadd.f32 0.0, %v3468
  %v3470 = vpop.f32.mrb[0].mxu0
  %v3471 = vpop.f32.mrb[0].mxu0
  %v3472 = vadd.f32 0.0, %v3471
  %v3473 = vpop.f32.mrb[0].mxu0
  %3474 = vmatprep.mubr.bf16.mxu0 0
  %3475 = vmatmul.mubr.bf16.gmra.mrb[0].mxu0 %v3178
  %v3476 = vpop.f32.mrb[0].mxu0
  %v3477 = vadd.f32 0.0, %v3476
  %v3478 = vpop.f32.mrb[0].mxu0
  %v3479 = vpop.f32.mrb[0].mxu0
  %v3480 = vadd.f32 0.0, %v3479
  %v3481 = vpop.f32.mrb[0].mxu0
  %3482 = vmatprep.mubr.bf16.mxu0 0
  %3483 = vmatmul.mubr.bf16.gmra.mrb[0].mxu0 %v3179
  %v3484 = vpop.f32.mrb[0].mxu0
  %v3485 = vadd.f32 0.0, %v3484
  %v3486 = vpop.f32.mrb[0].mxu0
  %v3487 = vpop.f32.mrb[0].mxu0
  %v3488 = vadd.f32 0.0, %v3487
  %v3489 = vpop.f32.mrb[0].mxu0
  %3490 = vmatprep.mubr.bf16.mxu0 0
  %3491 = vmatmul.mubr.bf16.gmra.mrb[0].mxu0 %v3180
  %v3492 = vpop.f32.mrb[0].mxu0
  %v3493 = vadd.f32 0.0, %v3492
  %v3494 = vpop.f32.mrb[0].mxu0
  %v3495 = vpop.f32.mrb[0].mxu0
  %v3496 = vadd.f32 0.0, %v3495
  %v3497 = vpop.f32.mrb[0].mxu0
  %3498 = vmatprep.mubr.bf16.mxu0 0
  %3499 = vmatmul.mubr.bf16.gmra.mrb[0].mxu0 %v3181
  %v3500 = vpop.f32.mrb[0].mxu0
  %v3501 = vadd.f32 0.0, %v3500
  %v3502 = vpop.f32.mrb[0].mxu0
  %v3503 = vpop.f32.mrb[0].mxu0
  %v3504 = vadd.f32 0.0, %v3503
  %v3505 = vpop.f32.mrb[0].mxu0
  %3506 = vmatprep.mubr.bf16.mxu0 0
  %3507 = vmatmul.mubr.bf16.gmra.mrb[0].mxu0 %v3182
  %v3508 = vpop.f32.mrb[0].mxu0
  %v3509 = vadd.f32 0.0, %v3508
  %v3510 = vpop.f32.mrb[0].mxu0
  %v3511 = vpop.f32.mrb[0].mxu0
  %v3512 = vadd.f32 0.0, %v3511
  %v3513 = vpop.f32.mrb[0].mxu0
  %3514 = vmatprep.mubr.bf16.mxu0 0
  %3515 = vmatmul.mubr.bf16.gmra.mrb[0].mxu0 %v3183
  %v3516 = vpop.f32.mrb[0].mxu0
  %v3517 = vadd.f32 0.0, %v3516
  %v3518 = vpop.f32.mrb[0].mxu0
  %v3519 = vpop.f32.mrb[0].mxu0
  %v3520 = vadd.f32 0.0, %v3519
  %v3521 = vpop.f32.mrb[0].mxu0
  %3522 = vmatprep.mubr.bf16.mxu0 0
  %3523 = vmatmul.mubr.bf16.gmra.mrb[0].mxu0 %v3184
  %v3524 = vpop.f32.mrb[0].mxu0
  %v3525 = vadd.f32 0.0, %v3524
  %v3526 = vpop.f32.mrb[0].mxu0
  %v3527 = vpop.f32.mrb[0].mxu0
  %v3528 = vadd.f32 0.0, %v3527
  %v3529 = vpop.f32.mrb[0].mxu0
  %3530 = vmatprep.mubr.bf16.mxu0 0
  %3531 = vmatmul.mubr.bf16.gmra.mrb[0].mxu0 %v3185
  %v3532 = vpop.f32.mrb[0].mxu0
  %v3533 = vadd.f32 0.0, %v3532
  %v3534 = vpop.f32.mrb[0].mxu0
  %v3535 = vpop.f32.mrb[0].mxu0
  %v3536 = vadd.f32 0.0, %v3535
  %v3537 = vpop.f32.mrb[0].mxu0
  %3538 = vdwg.mxu0
  %v3539 = vpack.c.bf16 %v3288, %v3285
  %v3540 = vpack.c.bf16 %v3296, %v3293
  %v3541 = vpack.c.bf16 %v3304, %v3301
  %v3542 = vpack.c.bf16 %v3312, %v3309
  %v3543 = vpack.c.bf16 %v3320, %v3317
  %v3544 = vpack.c.bf16 %v3328, %v3325
  %v3545 = vpack.c.bf16 %v3336, %v3333
  %v3546 = vpack.c.bf16 %v3344, %v3341
  %v3547 = vpack.c.bf16 %v3352, %v3349
  %v3548 = vpack.c.bf16 %v3360, %v3357
  %v3549 = vpack.c.bf16 %v3368, %v3365
  %v3550 = vpack.c.bf16 %v3376, %v3373
  %v3551 = vpack.c.bf16 %v3384, %v3381
  %v3552 = vpack.c.bf16 %v3392, %v3389
  %v3553 = vpack.c.bf16 %v3400, %v3397
  %v3554 = vpack.c.bf16 %v3408, %v3405
  %v3555 = vpack.c.bf16 %v3416, %v3413
  %v3556 = vpack.c.bf16 %v3424, %v3421
  %v3557 = vpack.c.bf16 %v3432, %v3429
  %v3558 = vpack.c.bf16 %v3440, %v3437
  %v3559 = vpack.c.bf16 %v3448, %v3445
  %v3560 = vpack.c.bf16 %v3456, %v3453
  %v3561 = vpack.c.bf16 %v3464, %v3461
  %v3562 = vpack.c.bf16 %v3472, %v3469
  %v3563 = vpack.c.bf16 %v3480, %v3477
  %v3564 = vpack.c.bf16 %v3488, %v3485
  %v3565 = vpack.c.bf16 %v3496, %v3493
  %v3566 = vpack.c.bf16 %v3504, %v3501
  %v3567 = vpack.c.bf16 %v3512, %v3509
  %v3568 = vpack.c.bf16 %v3520, %v3517
  %v3569 = vpack.c.bf16 %v3528, %v3525
  %v3570 = vpack.c.bf16 %v3536, %v3533
  %v3571 = vld [vmem:[%s7] sm:$0x1]
  %v3573 = vlaneseq
  %v3574 = vshrl.u32 %v3573, 7
  %v3575 = vsub.s32 0, %v3574
  %v3576 = vrot.slane %v3571, %v3575
  %3578 = vmatprep.subr.bf16.mxu0 0
  %3579 = vmatpush1.bf16.msra.mxu0 %v3539
  %3580 = vmatprep.subr.bf16.mxu0 0
  %3581 = vmatpush1.bf16.msra.mxu0 %v3540
  %3582 = vmatprep.subr.bf16.mxu0 0
  %3583 = vmatpush1.bf16.msra.mxu0 %v3541
  %3584 = vmatprep.subr.bf16.mxu0 0
  %3585 = vmatpush1.bf16.msra.mxu0 %v3542
  %3586 = vmatprep.subr.bf16.mxu0 0
  %3587 = vmatpush1.bf16.msra.mxu0 %v3543
  %3588 = vmatprep.subr.bf16.mxu0 0
  %3589 = vmatpush1.bf16.msra.mxu0 %v3544
  %3590 = vmatprep.subr.bf16.mxu0 0
  %3591 = vmatpush1.bf16.msra.mxu0 %v3545
  %3592 = vmatprep.subr.bf16.mxu0 0
  %3593 = vmatpush1.bf16.msra.mxu0 %v3546
  %3594 = vmatprep.subr.bf16.mxu0 0
  %3595 = vmatpush1.bf16.msra.mxu0 %v3547
  %3596 = vmatprep.subr.bf16.mxu0 0
  %3597 = vmatpush1.bf16.msra.mxu0 %v3548
  %3598 = vmatprep.subr.bf16.mxu0 0
  %3599 = vmatpush1.bf16.msra.mxu0 %v3549
  %3600 = vmatprep.subr.bf16.mxu0 0
  %3601 = vmatpush1.bf16.msra.mxu0 %v3550
  %3602 = vmatprep.subr.bf16.mxu0 0
  %3603 = vmatpush1.bf16.msra.mxu0 %v3551
  %3604 = vmatprep.subr.bf16.mxu0 0
  %3605 = vmatpush1.bf16.msra.mxu0 %v3552
  %3606 = vmatprep.subr.bf16.mxu0 0
  %3607 = vmatpush1.bf16.msra.mxu0 %v3553
  %3608 = vmatprep.subr.bf16.mxu0 0
  %3609 = vmatpush1.bf16.msra.mxu0 %v3554
  %3610 = vmatprep.mubr.bf16.mxu0 %v1191
  %3611 = vmatmul.mubr.bf16.gmra.mrb[0].mxu0 %v1190
  %v3612 = vpop.f32.mrb[0].mxu0
  %v3613 = vadd.f32 %v3576, %v3612
  %v3614 = vpop.f32.mrb[0].mxu0
  %v3615 = vpop.f32.mrb[0].mxu0
  %v3616 = vadd.f32 %v3576, %v3615
  %v3617 = vpop.f32.mrb[0].mxu0
  %3618 = vmatprep.mubr.bf16.mxu0 %v1195
  %3619 = vmatmul.mubr.bf16.gmra.mrb[0].mxu0 %v1194
  %v3620 = vpop.f32.mrb[0].mxu0
  %v3621 = vadd.f32 %v3576, %v3620
  %v3622 = vpop.f32.mrb[0].mxu0
  %v3623 = vpop.f32.mrb[0].mxu0
  %v3624 = vadd.f32 %v3576, %v3623
  %v3625 = vpop.f32.mrb[0].mxu0
  %3626 = vmatprep.mubr.bf16.mxu0 %v1199
  %3627 = vmatmul.mubr.bf16.gmra.mrb[0].mxu0 %v1198
  %v3628 = vpop.f32.mrb[0].mxu0
  %v3629 = vadd.f32 %v3576, %v3628
  %v3630 = vpop.f32.mrb[0].mxu0
  %v3631 = vpop.f32.mrb[0].mxu0
  %v3632 = vadd.f32 %v3576, %v3631
  %v3633 = vpop.f32.mrb[0].mxu0
  %3634 = vmatprep.mubr.bf16.mxu0 %v1203
  %3635 = vmatmul.mubr.bf16.gmra.mrb[0].mxu0 %v1202
  %v3636 = vpop.f32.mrb[0].mxu0
  %v3637 = vadd.f32 %v3576, %v3636
  %v3638 = vpop.f32.mrb[0].mxu0
  %v3639 = vpop.f32.mrb[0].mxu0
  %v3640 = vadd.f32 %v3576, %v3639
  %v3641 = vpop.f32.mrb[0].mxu0
  %3642 = vmatprep.mubr.bf16.mxu0 %v1207
  %3643 = vmatmul.mubr.bf16.gmra.mrb[0].mxu0 %v1206
  %v3644 = vpop.f32.mrb[0].mxu0
  %v3645 = vadd.f32 %v3576, %v3644
  %v3646 = vpop.f32.mrb[0].mxu0
  %v3647 = vpop.f32.mrb[0].mxu0
  %v3648 = vadd.f32 %v3576, %v3647
  %v3649 = vpop.f32.mrb[0].mxu0
  %3650 = vmatprep.mubr.bf16.mxu0 %v1211
  %3651 = vmatmul.mubr.bf16.gmra.mrb[0].mxu0 %v1210
  %v3652 = vpop.f32.mrb[0].mxu0
  %v3653 = vadd.f32 %v3576, %v3652
  %v3654 = vpop.f32.mrb[0].mxu0
  %v3655 = vpop.f32.mrb[0].mxu0
  %v3656 = vadd.f32 %v3576, %v3655
  %v3657 = vpop.f32.mrb[0].mxu0
  %3658 = vmatprep.mubr.bf16.mxu0 %v1215
  %3659 = vmatmul.mubr.bf16.gmra.mrb[0].mxu0 %v1214
  %v3660 = vpop.f32.mrb[0].mxu0
  %v3661 = vadd.f32 %v3576, %v3660
  %v3662 = vpop.f32.mrb[0].mxu0
  %v3663 = vpop.f32.mrb[0].mxu0
  %v3664 = vadd.f32 %v3576, %v3663
  %v3665 = vpop.f32.mrb[0].mxu0
  %3666 = vmatprep.mubr.bf16.mxu0 %v1219
  %3667 = vmatmul.mubr.bf16.gmra.mrb[0].mxu0 %v1218
  %v3668 = vpop.f32.mrb[0].mxu0
  %v3669 = vadd.f32 %v3576, %v3668
  %v3670 = vpop.f32.mrb[0].mxu0
  %v3671 = vpop.f32.mrb[0].mxu0
  %v3672 = vadd.f32 %v3576, %v3671
  %v3673 = vpop.f32.mrb[0].mxu0
  %3674 = vmatprep.mubr.bf16.mxu0 %v1223
  %3675 = vmatmul.mubr.bf16.gmra.mrb[0].mxu0 %v1222
  %v3676 = vpop.f32.mrb[0].mxu0
  %v3677 = vadd.f32 %v3576, %v3676
  %v3678 = vpop.f32.mrb[0].mxu0
  %v3679 = vpop.f32.mrb[0].mxu0
  %v3680 = vadd.f32 %v3576, %v3679
  %v3681 = vpop.f32.mrb[0].mxu0
  %3682 = vmatprep.mubr.bf16.mxu0 %v1227
  %3683 = vmatmul.mubr.bf16.gmra.mrb[0].mxu0 %v1226
  %v3684 = vpop.f32.mrb[0].mxu0
  %v3685 = vadd.f32 %v3576, %v3684
  %v3686 = vpop.f32.mrb[0].mxu0
  %v3687 = vpop.f32.mrb[0].mxu0
  %v3688 = vadd.f32 %v3576, %v3687
  %v3689 = vpop.f32.mrb[0].mxu0
  %3690 = vmatprep.mubr.bf16.mxu0 %v1231
  %3691 = vmatmul.mubr.bf16.gmra.mrb[0].mxu0 %v1230
  %v3692 = vpop.f32.mrb[0].mxu0
  %v3693 = vadd.f32 %v3576, %v3692
  %v3694 = vpop.f32.mrb[0].mxu0
  %v3695 = vpop.f32.mrb[0].mxu0
  %v3696 = vadd.f32 %v3576, %v3695
  %v3697 = vpop.f32.mrb[0].mxu0
  %3698 = vmatprep.mubr.bf16.mxu0 %v1235
  %3699 = vmatmul.mubr.bf16.gmra.mrb[0].mxu0 %v1234
  %v3700 = vpop.f32.mrb[0].mxu0
  %v3701 = vadd.f32 %v3576, %v3700
  %v3702 = vpop.f32.mrb[0].mxu0
  %v3703 = vpop.f32.mrb[0].mxu0
  %v3704 = vadd.f32 %v3576, %v3703
  %v3705 = vpop.f32.mrb[0].mxu0
  %3706 = vmatprep.mubr.bf16.mxu0 %v1239
  %3707 = vmatmul.mubr.bf16.gmra.mrb[0].mxu0 %v1238
  %v3708 = vpop.f32.mrb[0].mxu0
  %v3709 = vadd.f32 %v3576, %v3708
  %v3710 = vpop.f32.mrb[0].mxu0
  %v3711 = vpop.f32.mrb[0].mxu0
  %v3712 = vadd.f32 %v3576, %v3711
  %v3713 = vpop.f32.mrb[0].mxu0
  %3714 = vmatprep.mubr.bf16.mxu0 %v1243
  %3715 = vmatmul.mubr.bf16.gmra.mrb[0].mxu0 %v1242
  %v3716 = vpop.f32.mrb[0].mxu0
  %v3717 = vadd.f32 %v3576, %v3716
  %v3718 = vpop.f32.mrb[0].mxu0
  %v3719 = vpop.f32.mrb[0].mxu0
  %v3720 = vadd.f32 %v3576, %v3719
  %v3721 = vpop.f32.mrb[0].mxu0
  %3722 = vmatprep.mubr.bf16.mxu0 %v1247
  %3723 = vmatmul.mubr.bf16.gmra.mrb[0].mxu0 %v1246
  %v3724 = vpop.f32.mrb[0].mxu0
  %v3725 = vadd.f32 %v3576, %v3724
  %v3726 = vpop.f32.mrb[0].mxu0
  %v3727 = vpop.f32.mrb[0].mxu0
  %v3728 = vadd.f32 %v3576, %v3727
  %v3729 = vpop.f32.mrb[0].mxu0
  %3730 = vmatprep.mubr.bf16.mxu0 %v1251
  %3731 = vmatmul.mubr.bf16.gmra.mrb[0].mxu0 %v1250
  %v3732 = vpop.f32.mrb[0].mxu0
  %v3733 = vadd.f32 %v3576, %v3732
  %v3734 = vpop.f32.mrb[0].mxu0
  %v3735 = vpop.f32.mrb[0].mxu0
  %v3736 = vadd.f32 %v3576, %v3735
  %v3737 = vpop.f32.mrb[0].mxu0
  %3738 = vmatprep.mubr.bf16.mxu0 %v1255
  %3739 = vmatmul.mubr.bf16.gmra.mrb[0].mxu0 %v1254
  %v3740 = vpop.f32.mrb[0].mxu0
  %v3741 = vadd.f32 %v3576, %v3740
  %v3742 = vpop.f32.mrb[0].mxu0
  %v3743 = vpop.f32.mrb[0].mxu0
  %v3744 = vadd.f32 %v3576, %v3743
  %v3745 = vpop.f32.mrb[0].mxu0
  %3746 = vmatprep.mubr.bf16.mxu0 %v1259
  %3747 = vmatmul.mubr.bf16.gmra.mrb[0].mxu0 %v1258
  %v3748 = vpop.f32.mrb[0].mxu0
  %v3749 = vadd.f32 %v3576, %v3748
  %v3750 = vpop.f32.mrb[0].mxu0
  %v3751 = vpop.f32.mrb[0].mxu0
  %v3752 = vadd.f32 %v3576, %v3751
  %v3753 = vpop.f32.mrb[0].mxu0
  %3754 = vmatprep.mubr.bf16.mxu0 %v1263
  %3755 = vmatmul.mubr.bf16.gmra.mrb[0].mxu0 %v1262
  %v3756 = vpop.f32.mrb[0].mxu0
  %v3757 = vadd.f32 %v3576, %v3756
  %v3758 = vpop.f32.mrb[0].mxu0
  %v3759 = vpop.f32.mrb[0].mxu0
  %v3760 = vadd.f32 %v3576, %v3759
  %v3761 = vpop.f32.mrb[0].mxu0
  %3762 = vmatprep.mubr.bf16.mxu0 %v1267
  %3763 = vmatmul.mubr.bf16.gmra.mrb[0].mxu0 %v1266
  %v3764 = vpop.f32.mrb[0].mxu0
  %v3765 = vadd.f32 %v3576, %v3764
  %v3766 = vpop.f32.mrb[0].mxu0
  %v3767 = vpop.f32.mrb[0].mxu0
  %v3768 = vadd.f32 %v3576, %v3767
  %v3769 = vpop.f32.mrb[0].mxu0
  %3770 = vmatprep.mubr.bf16.mxu0 %v1271
  %3771 = vmatmul.mubr.bf16.gmra.mrb[0].mxu0 %v1270
  %v3772 = vpop.f32.mrb[0].mxu0
  %v3773 = vadd.f32 %v3576, %v3772
  %v3774 = vpop.f32.mrb[0].mxu0
  %v3775 = vpop.f32.mrb[0].mxu0
  %v3776 = vadd.f32 %v3576, %v3775
  %v3777 = vpop.f32.mrb[0].mxu0
  %3778 = vmatprep.mubr.bf16.mxu0 %v1275
  %3779 = vmatmul.mubr.bf16.gmra.mrb[0].mxu0 %v1274
  %v3780 = vpop.f32.mrb[0].mxu0
  %v3781 = vadd.f32 %v3576, %v3780
  %v3782 = vpop.f32.mrb[0].mxu0
  %v3783 = vpop.f32.mrb[0].mxu0
  %v3784 = vadd.f32 %v3576, %v3783
  %v3785 = vpop.f32.mrb[0].mxu0
  %3786 = vmatprep.mubr.bf16.mxu0 %v1279
  %3787 = vmatmul.mubr.bf16.gmra.mrb[0].mxu0 %v1278
  %v3788 = vpop.f32.mrb[0].mxu0
  %v3789 = vadd.f32 %v3576, %v3788
  %v3790 = vpop.f32.mrb[0].mxu0
  %v3791 = vpop.f32.mrb[0].mxu0
  %v3792 = vadd.f32 %v3576, %v3791
  %v3793 = vpop.f32.mrb[0].mxu0
  %3794 = vmatprep.mubr.bf16.mxu0 %v1283
  %3795 = vmatmul.mubr.bf16.gmra.mrb[0].mxu0 %v1282
  %v3796 = vpop.f32.mrb[0].mxu0
  %v3797 = vadd.f32 %v3576, %v3796
  %v3798 = vpop.f32.mrb[0].mxu0
  %v3799 = vpop.f32.mrb[0].mxu0
  %v3800 = vadd.f32 %v3576, %v3799
  %v3801 = vpop.f32.mrb[0].mxu0
  %3802 = vmatprep.mubr.bf16.mxu0 %v1287
  %3803 = vmatmul.mubr.bf16.gmra.mrb[0].mxu0 %v1286
  %v3804 = vpop.f32.mrb[0].mxu0
  %v3805 = vadd.f32 %v3576, %v3804
  %v3806 = vpop.f32.mrb[0].mxu0
  %v3807 = vpop.f32.mrb[0].mxu0
  %v3808 = vadd.f32 %v3576, %v3807
  %v3809 = vpop.f32.mrb[0].mxu0
  %3810 = vmatprep.mubr.bf16.mxu0 %v1291
  %3811 = vmatmul.mubr.bf16.gmra.mrb[0].mxu0 %v1290
  %v3812 = vpop.f32.mrb[0].mxu0
  %v3813 = vadd.f32 %v3576, %v3812
  %v3814 = vpop.f32.mrb[0].mxu0
  %v3815 = vpop.f32.mrb[0].mxu0
  %v3816 = vadd.f32 %v3576, %v3815
  %v3817 = vpop.f32.mrb[0].mxu0
  %3818 = vmatprep.mubr.bf16.mxu0 %v1295
  %3819 = vmatmul.mubr.bf16.gmra.mrb[0].mxu0 %v1294
  %v3820 = vpop.f32.mrb[0].mxu0
  %v3821 = vadd.f32 %v3576, %v3820
  %v3822 = vpop.f32.mrb[0].mxu0
  %v3823 = vpop.f32.mrb[0].mxu0
  %v3824 = vadd.f32 %v3576, %v3823
  %v3825 = vpop.f32.mrb[0].mxu0
  %3826 = vmatprep.mubr.bf16.mxu0 %v1299
  %3827 = vmatmul.mubr.bf16.gmra.mrb[0].mxu0 %v1298
  %v3828 = vpop.f32.mrb[0].mxu0
  %v3829 = vadd.f32 %v3576, %v3828
  %v3830 = vpop.f32.mrb[0].mxu0
  %v3831 = vpop.f32.mrb[0].mxu0
  %v3832 = vadd.f32 %v3576, %v3831
  %v3833 = vpop.f32.mrb[0].mxu0
  %3834 = vmatprep.mubr.bf16.mxu0 %v1303
  %3835 = vmatmul.mubr.bf16.gmra.mrb[0].mxu0 %v1302
  %v3836 = vpop.f32.mrb[0].mxu0
  %v3837 = vadd.f32 %v3576, %v3836
  %v3838 = vpop.f32.mrb[0].mxu0
  %v3839 = vpop.f32.mrb[0].mxu0
  %v3840 = vadd.f32 %v3576, %v3839
  %v3841 = vpop.f32.mrb[0].mxu0
  %3842 = vmatprep.mubr.bf16.mxu0 %v1307
  %3843 = vmatmul.mubr.bf16.gmra.mrb[0].mxu0 %v1306
  %v3844 = vpop.f32.mrb[0].mxu0
  %v3845 = vadd.f32 %v3576, %v3844
  %v3846 = vpop.f32.mrb[0].mxu0
  %v3847 = vpop.f32.mrb[0].mxu0
  %v3848 = vadd.f32 %v3576, %v3847
  %v3849 = vpop.f32.mrb[0].mxu0
  %3850 = vmatprep.mubr.bf16.mxu0 %v1311
  %3851 = vmatmul.mubr.bf16.gmra.mrb[0].mxu0 %v1310
  %v3852 = vpop.f32.mrb[0].mxu0
  %v3853 = vadd.f32 %v3576, %v3852
  %v3854 = vpop.f32.mrb[0].mxu0
  %v3855 = vpop.f32.mrb[0].mxu0
  %v3856 = vadd.f32 %v3576, %v3855
  %v3857 = vpop.f32.mrb[0].mxu0
  %3858 = vmatprep.mubr.bf16.mxu0 %v1315
  %3859 = vmatmul.mubr.bf16.gmra.mrb[0].mxu0 %v1314
  %v3860 = vpop.f32.mrb[0].mxu0
  %v3861 = vadd.f32 %v3576, %v3860
  %v3862 = vpop.f32.mrb[0].mxu0
  %v3863 = vpop.f32.mrb[0].mxu0
  %v3864 = vadd.f32 %v3576, %v3863
  %v3865 = vpop.f32.mrb[0].mxu0
  %3866 = vdwg.mxu0
  %3867 = vmatprep.subr.bf16.mxu0 0
  %3868 = vmatpush1.bf16.msra.mxu0 %v3555
  %3869 = vmatprep.subr.bf16.mxu0 0
  %3870 = vmatpush1.bf16.msra.mxu0 %v3556
  %3871 = vmatprep.subr.bf16.mxu0 0
  %3872 = vmatpush1.bf16.msra.mxu0 %v3557
  %3873 = vmatprep.subr.bf16.mxu0 0
  %3874 = vmatpush1.bf16.msra.mxu0 %v3558
  %3875 = vmatprep.subr.bf16.mxu0 0
  %3876 = vmatpush1.bf16.msra.mxu0 %v3559
  %3877 = vmatprep.subr.bf16.mxu0 0
  %3878 = vmatpush1.bf16.msra.mxu0 %v3560
  %3879 = vmatprep.subr.bf16.mxu0 0
  %3880 = vmatpush1.bf16.msra.mxu0 %v3561
  %3881 = vmatprep.subr.bf16.mxu0 0
  %3882 = vmatpush1.bf16.msra.mxu0 %v3562
  %3883 = vmatprep.subr.bf16.mxu0 0
  %3884 = vmatpush1.bf16.msra.mxu0 %v3563
  %3885 = vmatprep.subr.bf16.mxu0 0
  %3886 = vmatpush1.bf16.msra.mxu0 %v3564
  %3887 = vmatprep.subr.bf16.mxu0 0
  %3888 = vmatpush1.bf16.msra.mxu0 %v3565
  %3889 = vmatprep.subr.bf16.mxu0 0
  %3890 = vmatpush1.bf16.msra.mxu0 %v3566
  %3891 = vmatprep.subr.bf16.mxu0 0
  %3892 = vmatpush1.bf16.msra.mxu0 %v3567
  %3893 = vmatprep.subr.bf16.mxu0 0
  %3894 = vmatpush1.bf16.msra.mxu0 %v3568
  %3895 = vmatprep.subr.bf16.mxu0 0
  %3896 = vmatpush1.bf16.msra.mxu0 %v3569
  %3897 = vmatprep.subr.bf16.mxu0 0
  %3898 = vmatpush1.bf16.msra.mxu0 %v3570
  %3899 = vmatprep.mubr.bf16.mxu0 %v1193
  %3900 = vmatmul.mubr.bf16.gmra.mrb[0].mxu0 %v1192
  %v3901 = vpop.f32.mrb[0].mxu0
  %v3902 = vadd.f32 %v3613, %v3901
  %v3903 = vpop.f32.mrb[0].mxu0
  %v3904 = vpop.f32.mrb[0].mxu0
  %v3905 = vadd.f32 %v3616, %v3904
  %v3906 = vpop.f32.mrb[0].mxu0
  %3907 = vmatprep.mubr.bf16.mxu0 %v1197
  %3908 = vmatmul.mubr.bf16.gmra.mrb[0].mxu0 %v1196
  %v3909 = vpop.f32.mrb[0].mxu0
  %v3910 = vadd.f32 %v3621, %v3909
  %v3911 = vpop.f32.mrb[0].mxu0
  %v3912 = vpop.f32.mrb[0].mxu0
  %v3913 = vadd.f32 %v3624, %v3912
  %v3914 = vpop.f32.mrb[0].mxu0
  %3915 = vmatprep.mubr.bf16.mxu0 %v1201
  %3916 = vmatmul.mubr.bf16.gmra.mrb[0].mxu0 %v1200
  %v3917 = vpop.f32.mrb[0].mxu0
  %v3918 = vadd.f32 %v3629, %v3917
  %v3919 = vpop.f32.mrb[0].mxu0
  %v3920 = vpop.f32.mrb[0].mxu0
  %v3921 = vadd.f32 %v3632, %v3920
  %v3922 = vpop.f32.mrb[0].mxu0
  %3923 = vmatprep.mubr.bf16.mxu0 %v1205
  %3924 = vmatmul.mubr.bf16.gmra.mrb[0].mxu0 %v1204
  %v3925 = vpop.f32.mrb[0].mxu0
  %v3926 = vadd.f32 %v3637, %v3925
  %v3927 = vpop.f32.mrb[0].mxu0
  %v3928 = vpop.f32.mrb[0].mxu0
  %v3929 = vadd.f32 %v3640, %v3928
  %v3930 = vpop.f32.mrb[0].mxu0
  %3931 = vmatprep.mubr.bf16.mxu0 %v1209
  %3932 = vmatmul.mubr.bf16.gmra.mrb[0].mxu0 %v1208
  %v3933 = vpop.f32.mrb[0].mxu0
  %v3934 = vadd.f32 %v3645, %v3933
  %v3935 = vpop.f32.mrb[0].mxu0
  %v3936 = vpop.f32.mrb[0].mxu0
  %v3937 = vadd.f32 %v3648, %v3936
  %v3938 = vpop.f32.mrb[0].mxu0
  %3939 = vmatprep.mubr.bf16.mxu0 %v1213
  %3940 = vmatmul.mubr.bf16.gmra.mrb[0].mxu0 %v1212
  %v3941 = vpop.f32.mrb[0].mxu0
  %v3942 = vadd.f32 %v3653, %v3941
  %v3943 = vpop.f32.mrb[0].mxu0
  %v3944 = vpop.f32.mrb[0].mxu0
  %v3945 = vadd.f32 %v3656, %v3944
  %v3946 = vpop.f32.mrb[0].mxu0
  %3947 = vmatprep.mubr.bf16.mxu0 %v1217
  %3948 = vmatmul.mubr.bf16.gmra.mrb[0].mxu0 %v1216
  %v3949 = vpop.f32.mrb[0].mxu0
  %v3950 = vadd.f32 %v3661, %v3949
  %v3951 = vpop.f32.mrb[0].mxu0
  %v3952 = vpop.f32.mrb[0].mxu0
  %v3953 = vadd.f32 %v3664, %v3952
  %v3954 = vpop.f32.mrb[0].mxu0
  %3955 = vmatprep.mubr.bf16.mxu0 %v1221
  %3956 = vmatmul.mubr.bf16.gmra.mrb[0].mxu0 %v1220
  %v3957 = vpop.f32.mrb[0].mxu0
  %v3958 = vadd.f32 %v3669, %v3957
  %v3959 = vpop.f32.mrb[0].mxu0
  %v3960 = vpop.f32.mrb[0].mxu0
  %v3961 = vadd.f32 %v3672, %v3960
  %v3962 = vpop.f32.mrb[0].mxu0
  %3963 = vmatprep.mubr.bf16.mxu0 %v1225
  %3964 = vmatmul.mubr.bf16.gmra.mrb[0].mxu0 %v1224
  %v3965 = vpop.f32.mrb[0].mxu0
  %v3966 = vadd.f32 %v3677, %v3965
  %v3967 = vpop.f32.mrb[0].mxu0
  %v3968 = vpop.f32.mrb[0].mxu0
  %v3969 = vadd.f32 %v3680, %v3968
  %v3970 = vpop.f32.mrb[0].mxu0
  %3971 = vmatprep.mubr.bf16.mxu0 %v1229
  %3972 = vmatmul.mubr.bf16.gmra.mrb[0].mxu0 %v1228
  %v3973 = vpop.f32.mrb[0].mxu0
  %v3974 = vadd.f32 %v3685, %v3973
  %v3975 = vpop.f32.mrb[0].mxu0
  %v3976 = vpop.f32.mrb[0].mxu0
  %v3977 = vadd.f32 %v3688, %v3976
  %v3978 = vpop.f32.mrb[0].mxu0
  %3979 = vmatprep.mubr.bf16.mxu0 %v1233
  %3980 = vmatmul.mubr.bf16.gmra.mrb[0].mxu0 %v1232
  %v3981 = vpop.f32.mrb[0].mxu0
  %v3982 = vadd.f32 %v3693, %v3981
  %v3983 = vpop.f32.mrb[0].mxu0
  %v3984 = vpop.f32.mrb[0].mxu0
  %v3985 = vadd.f32 %v3696, %v3984
  %v3986 = vpop.f32.mrb[0].mxu0
  %3987 = vmatprep.mubr.bf16.mxu0 %v1237
  %3988 = vmatmul.mubr.bf16.gmra.mrb[0].mxu0 %v1236
  %v3989 = vpop.f32.mrb[0].mxu0
  %v3990 = vadd.f32 %v3701, %v3989
  %v3991 = vpop.f32.mrb[0].mxu0
  %v3992 = vpop.f32.mrb[0].mxu0
  %v3993 = vadd.f32 %v3704, %v3992
  %v3994 = vpop.f32.mrb[0].mxu0
  %3995 = vmatprep.mubr.bf16.mxu0 %v1241
  %3996 = vmatmul.mubr.bf16.gmra.mrb[0].mxu0 %v1240
  %v3997 = vpop.f32.mrb[0].mxu0
  %v3998 = vadd.f32 %v3709, %v3997
  %v3999 = vpop.f32.mrb[0].mxu0
  %v4000 = vpop.f32.mrb[0].mxu0
  %v4001 = vadd.f32 %v3712, %v4000
  %v4002 = vpop.f32.mrb[0].mxu0
  %4003 = vmatprep.mubr.bf16.mxu0 %v1245
  %4004 = vmatmul.mubr.bf16.gmra.mrb[0].mxu0 %v1244
  %v4005 = vpop.f32.mrb[0].mxu0
  %v4006 = vadd.f32 %v3717, %v4005
  %v4007 = vpop.f32.mrb[0].mxu0
  %v4008 = vpop.f32.mrb[0].mxu0
  %v4009 = vadd.f32 %v3720, %v4008
  %v4010 = vpop.f32.mrb[0].mxu0
  %4011 = vmatprep.mubr.bf16.mxu0 %v1249
  %4012 = vmatmul.mubr.bf16.gmra.mrb[0].mxu0 %v1248
  %v4013 = vpop.f32.mrb[0].mxu0
  %v4014 = vadd.f32 %v3725, %v4013
  %v4015 = vpop.f32.mrb[0].mxu0
  %v4016 = vpop.f32.mrb[0].mxu0
  %v4017 = vadd.f32 %v3728, %v4016
  %v4018 = vpop.f32.mrb[0].mxu0
  %4019 = vmatprep.mubr.bf16.mxu0 %v1253
  %4020 = vmatmul.mubr.bf16.gmra.mrb[0].mxu0 %v1252
  %v4021 = vpop.f32.mrb[0].mxu0
  %v4022 = vadd.f32 %v3733, %v4021
  %v4023 = vpop.f32.mrb[0].mxu0
  %v4024 = vpop.f32.mrb[0].mxu0
  %v4025 = vadd.f32 %v3736, %v4024
  %v4026 = vpop.f32.mrb[0].mxu0
  %4027 = vmatprep.mubr.bf16.mxu0 %v1257
  %4028 = vmatmul.mubr.bf16.gmra.mrb[0].mxu0 %v1256
  %v4029 = vpop.f32.mrb[0].mxu0
  %v4030 = vadd.f32 %v3741, %v4029
  %v4031 = vpop.f32.mrb[0].mxu0
  %v4032 = vpop.f32.mrb[0].mxu0
  %v4033 = vadd.f32 %v3744, %v4032
  %v4034 = vpop.f32.mrb[0].mxu0
  %4035 = vmatprep.mubr.bf16.mxu0 %v1261
  %4036 = vmatmul.mubr.bf16.gmra.mrb[0].mxu0 %v1260
  %v4037 = vpop.f32.mrb[0].mxu0
  %v4038 = vadd.f32 %v3749, %v4037
  %v4039 = vpop.f32.mrb[0].mxu0
  %v4040 = vpop.f32.mrb[0].mxu0
  %v4041 = vadd.f32 %v3752, %v4040
  %v4042 = vpop.f32.mrb[0].mxu0
  %4043 = vmatprep.mubr.bf16.mxu0 %v1265
  %4044 = vmatmul.mubr.bf16.gmra.mrb[0].mxu0 %v1264
  %v4045 = vpop.f32.mrb[0].mxu0
  %v4046 = vadd.f32 %v3757, %v4045
  %v4047 = vpop.f32.mrb[0].mxu0
  %v4048 = vpop.f32.mrb[0].mxu0
  %v4049 = vadd.f32 %v3760, %v4048
  %v4050 = vpop.f32.mrb[0].mxu0
  %4051 = vmatprep.mubr.bf16.mxu0 %v1269
  %4052 = vmatmul.mubr.bf16.gmra.mrb[0].mxu0 %v1268
  %v4053 = vpop.f32.mrb[0].mxu0
  %v4054 = vadd.f32 %v3765, %v4053
  %v4055 = vpop.f32.mrb[0].mxu0
  %v4056 = vpop.f32.mrb[0].mxu0
  %v4057 = vadd.f32 %v3768, %v4056
  %v4058 = vpop.f32.mrb[0].mxu0
  %4059 = vmatprep.mubr.bf16.mxu0 %v1273
  %4060 = vmatmul.mubr.bf16.gmra.mrb[0].mxu0 %v1272
  %v4061 = vpop.f32.mrb[0].mxu0
  %v4062 = vadd.f32 %v3773, %v4061
  %v4063 = vpop.f32.mrb[0].mxu0
  %v4064 = vpop.f32.mrb[0].mxu0
  %v4065 = vadd.f32 %v3776, %v4064
  %v4066 = vpop.f32.mrb[0].mxu0
  %4067 = vmatprep.mubr.bf16.mxu0 %v1277
  %4068 = vmatmul.mubr.bf16.gmra.mrb[0].mxu0 %v1276
  %v4069 = vpop.f32.mrb[0].mxu0
  %v4070 = vadd.f32 %v3781, %v4069
  %v4071 = vpop.f32.mrb[0].mxu0
  %v4072 = vpop.f32.mrb[0].mxu0
  %v4073 = vadd.f32 %v3784, %v4072
  %v4074 = vpop.f32.mrb[0].mxu0
  %4075 = vmatprep.mubr.bf16.mxu0 %v1281
  %4076 = vmatmul.mubr.bf16.gmra.mrb[0].mxu0 %v1280
  %v4077 = vpop.f32.mrb[0].mxu0
  %v4078 = vadd.f32 %v3789, %v4077
  %v4079 = vpop.f32.mrb[0].mxu0
  %v4080 = vpop.f32.mrb[0].mxu0
  %v4081 = vadd.f32 %v3792, %v4080
  %v4082 = vpop.f32.mrb[0].mxu0
  %4083 = vmatprep.mubr.bf16.mxu0 %v1285
  %4084 = vmatmul.mubr.bf16.gmra.mrb[0].mxu0 %v1284
  %v4085 = vpop.f32.mrb[0].mxu0
  %v4086 = vadd.f32 %v3797, %v4085
  %v4087 = vpop.f32.mrb[0].mxu0
  %v4088 = vpop.f32.mrb[0].mxu0
  %v4089 = vadd.f32 %v3800, %v4088
  %v4090 = vpop.f32.mrb[0].mxu0
  %4091 = vmatprep.mubr.bf16.mxu0 %v1289
  %4092 = vmatmul.mubr.bf16.gmra.mrb[0].mxu0 %v1288
  %v4093 = vpop.f32.mrb[0].mxu0
  %v4094 = vadd.f32 %v3805, %v4093
  %v4095 = vpop.f32.mrb[0].mxu0
  %v4096 = vpop.f32.mrb[0].mxu0
  %v4097 = vadd.f32 %v3808, %v4096
  %v4098 = vpop.f32.mrb[0].mxu0
  %4099 = vmatprep.mubr.bf16.mxu0 %v1293
  %4100 = vmatmul.mubr.bf16.gmra.mrb[0].mxu0 %v1292
  %v4101 = vpop.f32.mrb[0].mxu0
  %v4102 = vadd.f32 %v3813, %v4101
  %v4103 = vpop.f32.mrb[0].mxu0
  %v4104 = vpop.f32.mrb[0].mxu0
  %v4105 = vadd.f32 %v3816, %v4104
  %v4106 = vpop.f32.mrb[0].mxu0
  %4107 = vmatprep.mubr.bf16.mxu0 %v1297
  %4108 = vmatmul.mubr.bf16.gmra.mrb[0].mxu0 %v1296
  %v4109 = vpop.f32.mrb[0].mxu0
  %v4110 = vadd.f32 %v3821, %v4109
  %v4111 = vpop.f32.mrb[0].mxu0
  %v4112 = vpop.f32.mrb[0].mxu0
  %v4113 = vadd.f32 %v3824, %v4112
  %v4114 = vpop.f32.mrb[0].mxu0
  %4115 = vmatprep.mubr.bf16.mxu0 %v1301
  %4116 = vmatmul.mubr.bf16.gmra.mrb[0].mxu0 %v1300
  %v4117 = vpop.f32.mrb[0].mxu0
  %v4118 = vadd.f32 %v3829, %v4117
  %v4119 = vpop.f32.mrb[0].mxu0
  %v4120 = vpop.f32.mrb[0].mxu0
  %v4121 = vadd.f32 %v3832, %v4120
  %v4122 = vpop.f32.mrb[0].mxu0
  %4123 = vmatprep.mubr.bf16.mxu0 %v1305
  %4124 = vmatmul.mubr.bf16.gmra.mrb[0].mxu0 %v1304
  %v4125 = vpop.f32.mrb[0].mxu0
  %v4126 = vadd.f32 %v3837, %v4125
  %v4127 = vpop.f32.mrb[0].mxu0
  %v4128 = vpop.f32.mrb[0].mxu0
  %v4129 = vadd.f32 %v3840, %v4128
  %v4130 = vpop.f32.mrb[0].mxu0
  %4131 = vmatprep.mubr.bf16.mxu0 %v1309
  %4132 = vmatmul.mubr.bf16.gmra.mrb[0].mxu0 %v1308
  %v4133 = vpop.f32.mrb[0].mxu0
  %v4134 = vadd.f32 %v3845, %v4133
  %v4135 = vpop.f32.mrb[0].mxu0
  %v4136 = vpop.f32.mrb[0].mxu0
  %v4137 = vadd.f32 %v3848, %v4136
  %v4138 = vpop.f32.mrb[0].mxu0
  %4139 = vmatprep.mubr.bf16.mxu0 %v1313
  %4140 = vmatmul.mubr.bf16.gmra.mrb[0].mxu0 %v1312
  %v4141 = vpop.f32.mrb[0].mxu0
  %v4142 = vadd.f32 %v3853, %v4141
  %v4143 = vpop.f32.mrb[0].mxu0
  %v4144 = vpop.f32.mrb[0].mxu0
  %v4145 = vadd.f32 %v3856, %v4144
  %v4146 = vpop.f32.mrb[0].mxu0
  %4147 = vmatprep.mubr.bf16.mxu0 %v1317
  %4148 = vmatmul.mubr.bf16.gmra.mrb[0].mxu0 %v1316
  %v4149 = vpop.f32.mrb[0].mxu0
  %v4150 = vadd.f32 %v3861, %v4149
  %v4151 = vpop.f32.mrb[0].mxu0
  %v4152 = vpop.f32.mrb[0].mxu0
  %v4153 = vadd.f32 %v3864, %v4152
  %v4154 = vpop.f32.mrb[0].mxu0
  %4155 = vdwg.mxu0
  %v4156 = vtanh.pop %v3902
  %v4157 = vtanh.pop %v3905
  %v4158 = vtanh.pop %v3910
  %v4159 = vtanh.pop %v3913
  %v4160 = vtanh.pop %v3918
  %v4161 = vtanh.pop %v3921
  %v4162 = vtanh.pop %v3926
  %v4163 = vtanh.pop %v3929
  %v4164 = vtanh.pop %v3934
  %v4165 = vtanh.pop %v3937
  %v4166 = vtanh.pop %v3942
  %v4167 = vtanh.pop %v3945
  %v4168 = vtanh.pop %v3950
  %v4169 = vtanh.pop %v3953
  %v4170 = vtanh.pop %v3958
  %v4171 = vtanh.pop %v3961
  %v4172 = vtanh.pop %v3966
  %v4173 = vtanh.pop %v3969
  %v4174 = vtanh.pop %v3974
  %v4175 = vtanh.pop %v3977
  %v4176 = vtanh.pop %v3982
  %v4177 = vtanh.pop %v3985
  %v4178 = vtanh.pop %v3990
  %v4179 = vtanh.pop %v3993
  %v4180 = vtanh.pop %v3998
  %v4181 = vtanh.pop %v4001
  %v4182 = vtanh.pop %v4006
  %v4183 = vtanh.pop %v4009
  %v4184 = vtanh.pop %v4014
  %v4185 = vtanh.pop %v4017
  %v4186 = vtanh.pop %v4022
  %v4187 = vtanh.pop %v4025
  %v4188 = vtanh.pop %v4030
  %v4189 = vtanh.pop %v4033
  %v4190 = vtanh.pop %v4038
  %v4191 = vtanh.pop %v4041
  %v4192 = vtanh.pop %v4046
  %v4193 = vtanh.pop %v4049
  %v4194 = vtanh.pop %v4054
  %v4195 = vtanh.pop %v4057
  %v4196 = vtanh.pop %v4062
  %v4197 = vtanh.pop %v4065
  %v4198 = vtanh.pop %v4070
  %v4199 = vtanh.pop %v4073
  %v4200 = vtanh.pop %v4078
  %v4201 = vtanh.pop %v4081
  %v4202 = vtanh.pop %v4086
  %v4203 = vtanh.pop %v4089
  %v4204 = vtanh.pop %v4094
  %v4205 = vtanh.pop %v4097
  %v4206 = vtanh.pop %v4102
  %v4207 = vtanh.pop %v4105
  %v4208 = vtanh.pop %v4110
  %v4209 = vtanh.pop %v4113
  %v4210 = vtanh.pop %v4118
  %v4211 = vtanh.pop %v4121
  %v4212 = vtanh.pop %v4126
  %v4213 = vtanh.pop %v4129
  %v4214 = vtanh.pop %v4134
  %v4215 = vtanh.pop %v4137
  %v4216 = vtanh.pop %v4142
  %v4217 = vtanh.pop %v4145
  %v4218 = vtanh.pop %v4150
  %v4219 = vtanh.pop %v4153
  %4220 = vst [vmem:[%s8] sm:$0xff] %v4156
  %4221 = vst [vmem:[%s8 + $0x8] sm:$0xff] %v4157
  %4222 = vst [vmem:[%s8 + $0x10] sm:$0xff] %v4158
  %4223 = vst [vmem:[%s8 + $0x18] sm:$0xff] %v4159
  %4224 = vst [vmem:[%s8 + $0x20] sm:$0xff] %v4160
  %4225 = vst [vmem:[%s8 + $0x28] sm:$0xff] %v4161
  %4226 = vst [vmem:[%s8 + $0x30] sm:$0xff] %v4162
  %4227 = vst [vmem:[%s8 + $0x38] sm:$0xff] %v4163
  %4228 = vst [vmem:[%s8 + $0x40] sm:$0xff] %v4164
  %4229 = vst [vmem:[%s8 + $0x48] sm:$0xff] %v4165
  %4230 = vst [vmem:[%s8 + $0x50] sm:$0xff] %v4166
  %4231 = vst [vmem:[%s8 + $0x58] sm:$0xff] %v4167
  %4232 = vst [vmem:[%s8 + $0x60] sm:$0xff] %v4168
  %4233 = vst [vmem:[%s8 + $0x68] sm:$0xff] %v4169
  %4234 = vst [vmem:[%s8 + $0x70] sm:$0xff] %v4170
  %4235 = vst [vmem:[%s8 + $0x78] sm:$0xff] %v4171
  %4236 = vst [vmem:[%s8 + $0x80] sm:$0xff] %v4172
  %4237 = vst [vmem:[%s8 + $0x88] sm:$0xff] %v4173
  %4238 = vst [vmem:[%s8 + $0x90] sm:$0xff] %v4174
  %4239 = vst [vmem:[%s8 + $0x98] sm:$0xff] %v4175
  %4240 = vst [vmem:[%s8 + $0xa0] sm:$0xff] %v4176
  %4241 = vst [vmem:[%s8 + $0xa8] sm:$0xff] %v4177
  %4242 = vst [vmem:[%s8 + $0xb0] sm:$0xff] %v4178
  %4243 = vst [vmem:[%s8 + $0xb8] sm:$0xff] %v4179
  %4244 = vst [vmem:[%s8 + $0xc0] sm:$0xff] %v4180
  %4245 = vst [vmem:[%s8 + $0xc8] sm:$0xff] %v4181
  %4246 = vst [vmem:[%s8 + $0xd0] sm:$0xff] %v4182
  %4247 = vst [vmem:[%s8 + $0xd8] sm:$0xff] %v4183
  %4248 = vst [vmem:[%s8 + $0xe0] sm:$0xff] %v4184
  %4249 = vst [vmem:[%s8 + $0xe8] sm:$0xff] %v4185
  %4250 = vst [vmem:[%s8 + $0xf0] sm:$0xff] %v4186
  %4251 = vst [vmem:[%s8 + $0xf8] sm:$0xff] %v4187
  %4252 = vst [vmem:[%s8 + $0x100] sm:$0xff] %v4188
  %4253 = vst [vmem:[%s8 + $0x108] sm:$0xff] %v4189
  %4254 = vst [vmem:[%s8 + $0x110] sm:$0xff] %v4190
  %4255 = vst [vmem:[%s8 + $0x118] sm:$0xff] %v4191
  %4256 = vst [vmem:[%s8 + $0x120] sm:$0xff] %v4192
  %4257 = vst [vmem:[%s8 + $0x128] sm:$0xff] %v4193
  %4258 = vst [vmem:[%s8 + $0x130] sm:$0xff] %v4194
  %4259 = vst [vmem:[%s8 + $0x138] sm:$0xff] %v4195
  %4260 = vst [vmem:[%s8 + $0x140] sm:$0xff] %v4196
  %4261 = vst [vmem:[%s8 + $0x148] sm:$0xff] %v4197
  %4262 = vst [vmem:[%s8 + $0x150] sm:$0xff] %v4198
  %4263 = vst [vmem:[%s8 + $0x158] sm:$0xff] %v4199
  %4264 = vst [vmem:[%s8 + $0x160] sm:$0xff] %v4200
  %4265 = vst [vmem:[%s8 + $0x168] sm:$0xff] %v4201
  %4266 = vst [vmem:[%s8 + $0x170] sm:$0xff] %v4202
  %4267 = vst [vmem:[%s8 + $0x178] sm:$0xff] %v4203
  %4268 = vst [vmem:[%s8 + $0x180] sm:$0xff] %v4204
  %4269 = vst [vmem:[%s8 + $0x188] sm:$0xff] %v4205
  %4270 = vst [vmem:[%s8 + $0x190] sm:$0xff] %v4206
  %4271 = vst [vmem:[%s8 + $0x198] sm:$0xff] %v4207
  %4272 = vst [vmem:[%s8 + $0x1a0] sm:$0xff] %v4208
  %4273 = vst [vmem:[%s8 + $0x1a8] sm:$0xff] %v4209
  %4274 = vst [vmem:[%s8 + $0x1b0] sm:$0xff] %v4210
  %4275 = vst [vmem:[%s8 + $0x1b8] sm:$0xff] %v4211
  %4276 = vst [vmem:[%s8 + $0x1c0] sm:$0xff] %v4212
  %4277 = vst [vmem:[%s8 + $0x1c8] sm:$0xff] %v4213
  %4278 = vst [vmem:[%s8 + $0x1d0] sm:$0xff] %v4214
  %4279 = vst [vmem:[%s8 + $0x1d8] sm:$0xff] %v4215
  %4280 = vst [vmem:[%s8 + $0x1e0] sm:$0xff] %v4216
  %4281 = vst [vmem:[%s8 + $0x1e8] sm:$0xff] %v4217
  %4282 = vst [vmem:[%s8 + $0x1f0] sm:$0xff] %v4218
  %4283 = vst [vmem:[%s8 + $0x1f8] sm:$0xff] %v4219
  // Predicated region
  $region34: #{action_value_forward.1} parent=0 // pred_check
    _
  $region35: #{action_value_forward.1} parent=0 // pred_check_branch
    %4285 = sbr.rel (0) target = $region37
  $region36: #{action_value_forward.1} parent=0 // pred_region
    _
  $region37: #{action_value_forward.1} parent=0 // pred_fallthru
    _
  // Predicated region
  $region38: #{action_value_forward.1} parent=0 // pred_check
    _
  $region39: #{action_value_forward.1} parent=0 // pred_check_branch
    %4287 = sbr.rel (0) target = $region41
  $region40: #{action_value_forward.1} parent=0 // pred_region
    _
  $region41: #{action_value_forward.1} parent=0 // pred_fallthru
    _

</llo_original>
